<compile_context>
chip_gen: v6e
topology: v6e:2x2x1
jax: 0.10.0
libtpu: 0.0.40
codegen_flags: <defaults>
</compile_context>

<pallas_src>
import functools

import numpy as np
import jax
import jax.numpy as jnp
from jax.experimental import pallas as pl
from jax.experimental.pallas import tpu as pltpu

EPS = 1e-5
LANE = 128
_VMEM_LIMIT = 48 * 1024 * 1024   # cap only; per-step footprints stay << this


# ---------------------------------------------------------------------------
# small helpers
# ---------------------------------------------------------------------------
def _rup(x, m):
    return (x + m - 1) // m * m


def _pad_to(a, shape):
    pads = [(0, t - s) for s, t in zip(a.shape, shape)]
    if all(p == (0, 0) for p in pads):
        return a
    return jnp.pad(a, pads)


def _pad_vec(v, n, value=0.0):
    # gamma/beta are padded with 0.0 so folded scale/bias on padded channels
    # are exactly zero (no 1/sqrt(eps) gain on padded lanes).
    v = v.astype(jnp.float32)
    if v.shape[0] == n:
        return v
    return jnp.pad(v, (0, n - v.shape[0]), constant_values=value)


def _row_tile(m):
    for t in (512, 256, 128):
        if m % t == 0:
            return t
    raise ValueError(f"row count must be a multiple of 128, got {m}")


# ---------------------------------------------------------------------------
# fused 1x1-conv matmul:  y = [relu(x*scale+bias)] @ w  (+ BN column stats)
# Weight is a single resident VMEM block (constant index_map).
# ---------------------------------------------------------------------------
def _mm_kernel(*refs, apply_affine, m_valid, tm):
    if apply_affine:
        x_ref, s_ref, b_ref, w_ref, y_ref, sum_ref, ssq_ref = refs
        x = jnp.maximum(x_ref[...].astype(jnp.float32) * s_ref[...] + b_ref[...],
                        0.0)
        if m_valid is not None:   # zero padded rows so BN stats stay exact
            rid = (jax.lax.broadcasted_iota(jnp.int32, (tm, 1), 0)
                   + pl.program_id(0) * tm)
            x = jnp.where(rid < m_valid, x, 0.0)
        x = x.astype(jnp.bfloat16)
    else:
        x_ref, w_ref, y_ref, sum_ref, ssq_ref = refs
        x = x_ref[...]            # bf16, zero-padded rows/cols
    y = jnp.dot(x, w_ref[...], preferred_element_type=jnp.float32)
    y_ref[...] = y.astype(y_ref.dtype)          # bf16 store (half the HBM write)
    n = y.shape[1]
    sum_ref[...] = jnp.sum(y, axis=0, keepdims=True).reshape(1, 1, n)
    ssq_ref[...] = jnp.sum(y * y, axis=0, keepdims=True).reshape(1, 1, n)


def fused_matmul(x, w, in_scale=None, in_bias=None, m_valid=None):
    """(M,K)@(K,N) on the MXU with optional fused input BN-affine+ReLU.

    Returns (y bf16 (M,N), per-channel sum (N,) f32, per-channel sumsq (N,) f32).
    """
    M, K = x.shape
    K2, Np = w.shape
    assert K == K2 and M % 128 == 0 and K % LANE == 0 and Np % LANE == 0
    tm = _row_tile(M)
    gm = M // tm
    apply_affine = in_scale is not None
    mask = m_valid if (apply_affine and m_valid is not None and m_valid < M) else None

    in_specs = [pl.BlockSpec((tm, K), lambda i: (i, 0))]
    args = [x]
    if apply_affine:
        in_specs += [pl.BlockSpec((1, K), lambda i: (0, 0)),
                     pl.BlockSpec((1, K), lambda i: (0, 0))]
        args += [in_scale.reshape(1, K).astype(jnp.float32),
                 in_bias.reshape(1, K).astype(jnp.float32)]
    # full-extent weight block, constant index -> fetched once, stays resident
    in_specs.append(pl.BlockSpec((K, Np), lambda i: (0, 0)))
    args.append(w)

    y, psum, pssq = pl.pallas_call(
        functools.partial(_mm_kernel, apply_affine=apply_affine,
                          m_valid=mask, tm=tm),
        out_shape=(jax.ShapeDtypeStruct((M, Np), jnp.bfloat16),
                   jax.ShapeDtypeStruct((gm, 1, Np), jnp.float32),
                   jax.ShapeDtypeStruct((gm, 1, Np), jnp.float32)),
        grid=(gm,),
        in_specs=in_specs,
        out_specs=(pl.BlockSpec((tm, Np), lambda i: (i, 0)),
                   pl.BlockSpec((1, 1, Np), lambda i: (i, 0, 0)),
                   pl.BlockSpec((1, 1, Np), lambda i: (i, 0, 0))),
        compiler_params=pltpu.CompilerParams(
            dimension_semantics=("parallel",),
            vmem_limit_bytes=_VMEM_LIMIT),
    )(*args)
    # tiny (gm, C) partial-stat reduction left to XLA
    return y, jnp.sum(psum[:, 0, :], axis=0), jnp.sum(pssq[:, 0, :], axis=0)


# ---------------------------------------------------------------------------
# 3x3 conv kernel with fused BN1 affine + ReLU + pad mask, tap accumulation in
# a VMEM f32 scratch, resident 9-tap weights, grid = (sample, Cout tiles).
# ---------------------------------------------------------------------------
def _conv3x3_kernel(x_ref, mask_ref, s_ref, b_ref, w_ref,
                    y_ref, sum_ref, ssq_ref, h_ref, acc_ref,
                    *, stride, Hq, Ho, Wo):
    s = stride
    cin = x_ref.shape[-1]
    tc = y_ref.shape[-1]

    # BN1 affine + ReLU + zero-pad mask, done once per sample (Cout tile 0),
    # entirely in VMEM -- no standalone HBM elementwise pass.
    @pl.when(pl.program_id(1) == 0)
    def _():
        h = jnp.maximum(x_ref[0].astype(jnp.float32) * s_ref[...] + b_ref[...],
                        0.0)
        h_ref[...] = (h * mask_ref[...]).astype(jnp.bfloat16)

    # Tap (kh, kw) is a contiguous (Ho, Wo) window of phase (kh%s, kw%s).
    for kh in range(3):
        for kw in range(3):
            ph = (kh % s) * s + (kw % s)
            h0 = ph * Hq + kh // s
            w0 = kw // s
            win = h_ref[h0:h0 + Ho, w0:w0 + Wo, :]            # (Ho, Wo, Cin)
            # TODO(synk): window reshape is not sublane-aligned for odd Wo; a
            # Wo pad / kw-folded (K=3*Cin) layout would remove per-tap copies.
            tap = jnp.dot(win.reshape(Ho * Wo, cin), w_ref[kh * 3 + kw],
                          preferred_element_type=jnp.float32)
            if kh == 0 and kw == 0:
                acc_ref[...] = tap          # init from first tap (no zeros pass)
            else:
                acc_ref[...] += tap

    acc = acc_ref[...]
    y_ref[0] = acc.astype(y_ref.dtype)      # bf16 store
    sum_ref[...] = jnp.sum(acc, axis=0, keepdims=True).reshape(1, 1, tc)
    ssq_ref[...] = jnp.sum(acc * acc, axis=0, keepdims=True).reshape(1, 1, tc)


def conv3x3(phases, mask, bn_scale, bn_bias, w_taps, stride, Hq, Ho, Wo):
    N, PHHq, Wq, Cin = phases.shape
    Cout = w_taps.shape[2]
    tc = 256 if Cout % 256 == 0 else 128
    gc = Cout // tc
    y, psum, pssq = pl.pallas_call(
        functools.partial(_conv3x3_kernel, stride=stride, Hq=Hq, Ho=Ho, Wo=Wo),
        out_shape=(jax.ShapeDtypeStruct((N, Ho * Wo, Cout), jnp.bfloat16),
                   jax.ShapeDtypeStruct((N, 1, Cout), jnp.float32),
                   jax.ShapeDtypeStruct((N, 1, Cout), jnp.float32)),
        grid=(N, gc),
        in_specs=[pl.BlockSpec((1, PHHq, Wq, Cin), lambda n, j: (n, 0, 0, 0)),
                  pl.BlockSpec((PHHq, Wq, 1), lambda n, j: (0, 0, 0)),
                  pl.BlockSpec((1, 1, Cin), lambda n, j: (0, 0, 0)),
                  pl.BlockSpec((1, 1, Cin), lambda n, j: (0, 0, 0)),
                  pl.BlockSpec((9, Cin, tc), lambda n, j: (0, 0, j))],
        out_specs=(pl.BlockSpec((1, Ho * Wo, tc), lambda n, j: (n, 0, j)),
                   pl.BlockSpec((1, 1, tc), lambda n, j: (n, 0, j)),
                   pl.BlockSpec((1, 1, tc), lambda n, j: (n, 0, j))),
        scratch_shapes=[pltpu.VMEM((PHHq, Wq, Cin), jnp.bfloat16),   # processed phases
                        pltpu.VMEM((Ho * Wo, tc), jnp.float32)],     # tap accumulator
        compiler_params=pltpu.CompilerParams(
            dimension_semantics=("parallel", "arbitrary"),
            vmem_limit_bytes=_VMEM_LIMIT),
    )(phases, mask, bn_scale.reshape(1, 1, Cin).astype(jnp.float32),
      bn_bias.reshape(1, 1, Cin).astype(jnp.float32), w_taps)
    return y, jnp.sum(psum[:, 0, :], axis=0), jnp.sum(pssq[:, 0, :], axis=0)


# ---------------------------------------------------------------------------
# residual kernel: ReLU( (a*sa+ba) + (b*sb+bb | b) )   (BN3 + shortcut fused)
# ---------------------------------------------------------------------------
def _residual_kernel(*refs, has_proj):
    if has_proj:
        a_ref, sa_ref, ba_ref, b_ref, sb_ref, bb_ref, o_ref = refs
        shortcut = b_ref[...].astype(jnp.float32) * sb_ref[...] + bb_ref[...]
    else:                      # identity shortcut stays f32, no dummy affine
        a_ref, sa_ref, ba_ref, b_ref, o_ref = refs
        shortcut = b_ref[...].astype(jnp.float32)
    a = a_ref[...].astype(jnp.float32) * sa_ref[...] + ba_ref[...]
    o_ref[...] = jnp.maximum(a + shortcut, 0.0)


def fused_residual(a, sa, ba, b, sb=None, bb=None):
    M, C = a.shape
    tm = _row_tile(M)
    has_proj = sb is not None
    row = pl.BlockSpec((tm, C), lambda i: (i, 0))
    chan = pl.BlockSpec((1, C), lambda i: (0, 0))          # resident channel vecs
    in_specs = [row, chan, chan, row] + ([chan, chan] if has_proj else [])
    args = [a, sa.reshape(1, C), ba.reshape(1, C), b]
    if has_proj:
        args += [sb.reshape(1, C), bb.reshape(1, C)]
    return pl.pallas_call(
        functools.partial(_residual_kernel, has_proj=has_proj),
        out_shape=jax.ShapeDtypeStruct((M, C), jnp.float32),
        grid=(M // tm,),
        in_specs=in_specs,
        out_specs=row,
        compiler_params=pltpu.CompilerParams(
            dimension_semantics=("parallel",),
            vmem_limit_bytes=_VMEM_LIMIT),
    )(*args)


# ---------------------------------------------------------------------------
# JAX glue: BN fold (tiny per-channel math) and conv2 phase relayout + mask
# ---------------------------------------------------------------------------
def _bn_fold(col_sum, col_ssq, m, gamma, beta):
    # NOTE: E[x^2]-E[x]^2 in f32 is fine at these sizes; a Kahan/two-pass
    # variance would be needed for very large M with large means.
    mean = col_sum / m
    var = jnp.maximum(col_ssq / m - mean * mean, 0.0)   # biased var (PyTorch train)
    scale = gamma / jnp.sqrt(var + EPS)
    return scale, beta - mean * scale


def _make_phases(h, stride, Ho, Wo):
    """Zero-pad + split bf16 (N,H,W,C) into stride phases so every 3x3 tap is a
    contiguous (Ho,Wo) window.  Pure pad/slice/concat (no elementwise math).
    Also builds the static spatial validity mask (1=real pixel, 0=padding)."""
    N, H, W, C = h.shape
    s = stride
    assert s in (1, 2), "phase decomposition implemented for stride in {1, 2}"
    Hq, Wq = Ho + (2 // s), Wo + (2 // s)
    rmax = max(k % s for k in range(3))
    need_h = s * (Hq - 1) + rmax + 1
    need_w = s * (Wq - 1) + rmax + 1
    hp = jnp.pad(h, ((0, 0), (1, need_h - H - 1), (1, need_w - W - 1), (0, 0)))
    phases = [hp[:, rh:rh + s * (Hq - 1) + 1:s, rw:rw + s * (Wq - 1) + 1:s, :]
              for rh in range(s) for rw in range(s)]
    phases = jnp.concatenate(phases, axis=1)          # (N, s*s*Hq, Wq, C) bf16

    mask = np.zeros((s * s * Hq, Wq), np.float32)     # static, computed on host
    for rh in range(s):
        for rw in range(s):
            rv = (np.arange(Hq) * s + rh >= 1) & (np.arange(Hq) * s + rh <= H)
            cv = (np.arange(Wq) * s + rw >= 1) & (np.arange(Wq) * s + rw <= W)
            ph = rh * s + rw
            mask[ph * Hq:(ph + 1) * Hq, :] = (rv[:, None] & cv[None, :])
    return phases, jnp.asarray(mask)[:, :, None], Hq, Wq


def block_forward(x_nchw, params, stride):
    """Pallas implementation of Block.forward.  x: NCHW float32."""
    assert stride in (1, 2)
    x = jnp.transpose(x_nchw, (0, 2, 3, 1)).astype(jnp.float32)     # NHWC
    N, H, W, Cin = x.shape
    C1 = params["w1"].shape[0]
    C4 = params["w3"].shape[0]
    Cin_p, C1_p, C4_p = _rup(Cin, LANE), _rup(C1, LANE), _rup(C4, LANE)
    Ho = (H - 1) // stride + 1
    Wo = (W - 1) // stride + 1
    M1, M2 = N * H * W, N * Ho * Wo
    M1p, M2p = _rup(M1, 128), _rup(M2, 128)

    # ---- conv1 (1x1): bf16 output + in-kernel BN1 column statistics ---------
    x_flat = _pad_to(x.reshape(M1, Cin), (M1p, Cin_p)).astype(jnp.bfloat16)
    w1 = _pad_to(params["w1"][:, :, 0, 0].T, (Cin_p, C1_p)).astype(jnp.bfloat16)
    y1, s1, q1 = fused_matmul(x_flat, w1)
    sc1, bi1 = _bn_fold(s1, q1, M1, _pad_vec(params["g1"], C1_p),
                        _pad_vec(params["b1"], C1_p))

    # ---- conv2 (3x3, stride, pad=1): BN1+ReLU fused into the kernel ---------
    phases, pmask, Hq, Wq = _make_phases(
        y1[:M1].reshape(N, H, W, C1_p), stride, Ho, Wo)
    w2 = _pad_to(jnp.transpose(params["w2"], (2, 3, 1, 0)).reshape(9, C1, C1),
                 (9, C1_p, C1_p)).astype(jnp.bfloat16)
    y2, s2, q2 = conv3x3(phases, pmask, sc1, bi1, w2, stride, Hq, Ho, Wo)
    sc2, bi2 = _bn_fold(s2, q2, M2, _pad_vec(params["g2"], C1_p),
                        _pad_vec(params["b2"], C1_p))

    # ---- conv3 (1x1): BN2 + ReLU fused into the input load of this matmul ---
    y2_flat = _pad_to(y2.reshape(M2, C1_p), (M2p, C1_p))   # no-op when aligned
    w3 = _pad_to(params["w3"][:, :, 0, 0].T, (C1_p, C4_p)).astype(jnp.bfloat16)
    y3, s3, q3 = fused_matmul(y2_flat, w3, in_scale=sc2, in_bias=bi2, m_valid=M2)
    sc3, bi3 = _bn_fold(s3, q3, M2, _pad_vec(params["g3"], C4_p),
                        _pad_vec(params["b3"], C4_p))

    # ---- shortcut + BN3 + add + ReLU (single fused kernel) -------------------
    if stride != 1 or Cin != C4:
        xs = x[:, ::stride, ::stride, :].reshape(M2, Cin)
        xs = _pad_to(xs, (M2p, Cin_p)).astype(jnp.bfloat16)
        ws = _pad_to(params["ws"][:, :, 0, 0].T, (Cin_p, C4_p)).astype(jnp.bfloat16)
        yb, sb_, qb = fused_matmul(xs, ws)
        scb, bib = _bn_fold(sb_, qb, M2, _pad_vec(params["gs"], C4_p),
                            _pad_vec(params["bs"], C4_p))
        out = fused_residual(y3, sc3, bi3, yb, scb, bib)
    else:
        xid = _pad_to(x.reshape(M1, Cin), (M2p, C4_p))     # identity stays f32
        out = fused_residual(y3, sc3, bi3, xid)

    out = out[:M2, :C4].reshape(N, Ho, Wo, C4)
    return jnp.transpose(out, (0, 3, 1, 2))                # back to NCHW


# ---------------------------------------------------------------------------
# Pure-JAX reference (lax.conv) with the same bf16 quantization points as the
# Pallas pipeline: bf16 MXU inputs and bf16-stored conv outputs, f32 BN stats.
# ---------------------------------------------------------------------------
def _conv_ref(x_nhwc, w_oihw, stride, pad):
    w = jnp.transpose(w_oihw, (2, 3, 1, 0)).astype(jnp.bfloat16)
    return jax.lax.conv_general_dilated(
        x_nhwc.astype(jnp.bfloat16), w, (stride, stride),
        [(pad, pad), (pad, pad)],
        dimension_numbers=("NHWC", "HWIO", "NHWC"),
        preferred_element_type=jnp.float32)


def _bn_ref(y, gamma, beta):
    mean = jnp.mean(y, axis=(0, 1, 2))
    var = jnp.mean(jnp.square(y - mean), axis=(0, 1, 2))
    scale = gamma / jnp.sqrt(var + EPS)
    yq = y.astype(jnp.bfloat16).astype(jnp.float32)   # match bf16 activation store
    return yq * scale + (beta - mean * scale)


def block_ref(x_nchw, params, stride):
    x = jnp.transpose(x_nchw, (0, 2, 3, 1)).astype(jnp.float32)
    c4 = params["w3"].shape[0]
    cin = x.shape[-1]
    a = jax.nn.relu(_bn_ref(_conv_ref(x, params["w1"], 1, 0),
                            params["g1"], params["b1"]))
    a = jax.nn.relu(_bn_ref(_conv_ref(a, params["w2"], stride, 1),
                            params["g2"], params["b2"]))
    a = _bn_ref(_conv_ref(a, params["w3"], 1, 0), params["g3"], params["b3"])
    if stride != 1 or cin != c4:
        b = _bn_ref(_conv_ref(x, params["ws"], stride, 0),
                    params["gs"], params["bs"])
    else:
        b = x
    return jnp.transpose(jax.nn.relu(a + b), (0, 3, 1, 2))


# ---------------------------------------------------------------------------
def make_params(key, cin, cout, stride):
    c4 = cout * 4
    ks = jax.random.split(key, 8)
    p = {
        "w1": 0.1 * jax.random.normal(ks[0], (cout, cin, 1, 1), jnp.float32),
        "g1": 1.0 + 0.1 * jax.random.normal(ks[1], (cout,), jnp.float32),
        "b1": 0.1 * jax.random.normal(ks[1], (cout,), jnp.float32),
        "w2": 0.1 * jax.random.normal(ks[2], (cout, cout, 3, 3), jnp.float32),
        "g2": 1.0 + 0.1 * jax.random.normal(ks[3], (cout,), jnp.float32),
        "b2": 0.1 * jax.random.normal(ks[3], (cout,), jnp.float32),
        "w3": 0.1 * jax.random.normal(ks[4], (c4, cout, 1, 1), jnp.float32),
        "g3": 1.0 + 0.1 * jax.random.normal(ks[5], (c4,), jnp.float32),
        "b3": 0.1 * jax.random.normal(ks[5], (c4,), jnp.float32),
    }
    if stride != 1 or cin != c4:
        p["ws"] = 0.1 * jax.random.normal(ks[6], (c4, cin, 1, 1), jnp.float32)
        p["gs"] = 1.0 + 0.1 * jax.random.normal(ks[7], (c4,), jnp.float32)
        p["bs"] = 0.1 * jax.random.normal(ks[7], (c4,), jnp.float32)
    return p


if __name__ == "__main__":
    key = jax.random.PRNGKey(0)
    k1, k2, k3, k4 = jax.random.split(key, 4)
    fwd = jax.jit(block_forward, static_argnames=("stride",))

    # config 1: projection shortcut (stride=2, Cin != 4*Cout)
    x1 = jax.random.normal(k1, (2, 4, 16, 16), jnp.float32)
    p1 = make_params(k2, cin=4, cout=8, stride=2)
    out1 = jax.block_until_ready(fwd(x1, p1, stride=2))
    ref1 = block_ref(x1, p1, stride=2)
    assert out1.shape == (2, 32, 8, 8), out1.shape
    err1 = float(jnp.max(jnp.abs(out1 - ref1)))
    assert jnp.allclose(out1, ref1, atol=1e-2, rtol=1e-2), err1

    # config 2: identity shortcut (stride=1, Cin == 4*Cout)
    x2 = jax.random.normal(k3, (2, 32, 16, 16), jnp.float32)
    p2 = make_params(k4, cin=32, cout=8, stride=1)
    out2 = jax.block_until_ready(fwd(x2, p2, stride=1))
    ref2 = block_ref(x2, p2, stride=1)
    assert out2.shape == (2, 32, 16, 16), out2.shape
    err2 = float(jnp.max(jnp.abs(out2 - ref2)))
    assert jnp.allclose(out2, ref2, atol=1e-2, rtol=1e-2), err2

    print("KERNEL_OK")
</pallas_src>

<mosaic_0001>
module attributes {stable_mosaic.version = 11 : i64} {
  func.func @_mm_kernel(%arg0: i32, %arg1: memref<512x128xbf16, #tpu.memory_space<vmem>>, %arg2: memref<128x128xbf16, #tpu.memory_space<vmem>>, %arg3: memref<512x128xbf16, #tpu.memory_space<vmem>>, %arg4: memref<1x1x128xf32, #tpu.memory_space<vmem>>, %arg5: memref<1x1x128xf32, #tpu.memory_space<vmem>>) attributes {dimension_semantics = [#tpu.dimension_semantics<parallel>], iteration_bounds = array<i64: 1>, scalar_prefetch = 0 : i64, scratch_operands = 0 : i64, tpu.core_type = #tpu.core_type<tc>, window_params = [{transform_indices = @transform_0, window_bounds = array<i64: 512, 128>}, {pipeline_mode = #tpu.pipeline_mode<synchronous>, transform_indices = @transform_1, window_bounds = array<i64: 128, 128>}, {transform_indices = @transform_2, window_bounds = array<i64: 512, 128>}, {transform_indices = @transform_3, window_bounds = array<i64: 1, 1, 128>}, {transform_indices = @transform_4, window_bounds = array<i64: 1, 1, 128>}]} {
    %c0 = arith.constant 0 : index
    %c0_0 = arith.constant 0 : index
    %0 = vector.load %arg1[%c0, %c0_0] : memref<512x128xbf16, #tpu.memory_space<vmem>>, vector<512x128xbf16>
    %c0_1 = arith.constant 0 : index
    %c0_2 = arith.constant 0 : index
    %1 = vector.load %arg2[%c0_1, %c0_2] : memref<128x128xbf16, #tpu.memory_space<vmem>>, vector<128x128xbf16>
    %cst = arith.constant dense<0.000000e+00> : vector<512x128xf32>
    %2 = tpu.matmul %0, %1, %cst {dimension_numbers = #tpu.dot_dimension_numbers<[1], [0], [0], [1], [0, 0, 1, 1], [], []>} : vector<512x128xbf16>, vector<128x128xbf16>, vector<512x128xf32> -> vector<512x128xf32>
    %3 = arith.truncf %2 : vector<512x128xf32> to vector<512x128xbf16>
    %c0_3 = arith.constant 0 : index
    %c0_4 = arith.constant 0 : index
    %4 = vector.load %arg3[%c0_3, %c0_4] : memref<512x128xbf16, #tpu.memory_space<vmem>>, vector<512x128xbf16>
    tpu.vector_store %arg3[%c0_3, %c0_4], %3 {strides = array<i32>} : memref<512x128xbf16, #tpu.memory_space<vmem>>, vector<512x128xbf16>,
    %cst_5 = arith.constant dense<0.000000e+00> : vector<128xf32>
    %5 = vector.multi_reduction <add>, %2, %cst_5 [0] : vector<512x128xf32> to vector<128xf32>
    %6 = vector.shape_cast %5 : vector<128xf32> to vector<1x128xf32>
    %7 = vector.shape_cast %6 : vector<1x128xf32> to vector<1x1x128xf32>
    %c0_6 = arith.constant 0 : index
    %c0_7 = arith.constant 0 : index
    %c0_8 = arith.constant 0 : index
    %8 = vector.load %arg4[%c0_6, %c0_7, %c0_8] : memref<1x1x128xf32, #tpu.memory_space<vmem>>, vector<1x1x128xf32>
    tpu.vector_store %arg4[%c0_6, %c0_7, %c0_8], %7 {strides = array<i32>} : memref<1x1x128xf32, #tpu.memory_space<vmem>>, vector<1x1x128xf32>,
    %9 = arith.mulf %2, %2 : vector<512x128xf32>
    %cst_9 = arith.constant dense<0.000000e+00> : vector<128xf32>
    %10 = vector.multi_reduction <add>, %9, %cst_9 [0] : vector<512x128xf32> to vector<128xf32>
    %11 = vector.shape_cast %10 : vector<128xf32> to vector<1x128xf32>
    %12 = vector.shape_cast %11 : vector<1x128xf32> to vector<1x1x128xf32>
    %c0_10 = arith.constant 0 : index
    %c0_11 = arith.constant 0 : index
    %c0_12 = arith.constant 0 : index
    %13 = vector.load %arg5[%c0_10, %c0_11, %c0_12] : memref<1x1x128xf32, #tpu.memory_space<vmem>>, vector<1x1x128xf32>
    tpu.vector_store %arg5[%c0_10, %c0_11, %c0_12], %12 {strides = array<i32>} : memref<1x1x128xf32, #tpu.memory_space<vmem>>, vector<1x1x128xf32>,
    return
  }
  func.func @transform_0(%arg0: i32) -> (i32, i32) {
    %c0_i32 = arith.constant 0 : i32
    %c0_i32_0 = arith.constant 0 : i32
    return %arg0, %c0_i32 : i32, i32
  }
  func.func @transform_1(%arg0: i32) -> (i32, i32) {
    %c0_i32 = arith.constant 0 : i32
    %c0_i32_0 = arith.constant 0 : i32
    %c0_i32_1 = arith.constant 0 : i32
    return %c0_i32, %c0_i32_0 : i32, i32
  }
  func.func @transform_2(%arg0: i32) -> (i32, i32) {
    %c0_i32 = arith.constant 0 : i32
    %c0_i32_0 = arith.constant 0 : i32
    return %arg0, %c0_i32 : i32, i32
  }
  func.func @transform_3(%arg0: i32) -> (i32, i32, i32) {
    %c0_i32 = arith.constant 0 : i32
    %c0_i32_0 = arith.constant 0 : i32
    %c0_i32_1 = arith.constant 0 : i32
    return %arg0, %c0_i32, %c0_i32_0 : i32, i32, i32
  }
  func.func @transform_4(%arg0: i32) -> (i32, i32, i32) {
    %c0_i32 = arith.constant 0 : i32
    %c0_i32_0 = arith.constant 0 : i32
    %c0_i32_1 = arith.constant 0 : i32
    return %arg0, %c0_i32, %c0_i32_0 : i32, i32, i32
  }
}

module attributes {stable_mosaic.version = 11 : i64} {
  func.func @_conv3x3_kernel(%arg0: i32, %arg1: i32, %arg2: memref<1x36x9x128xbf16, #tpu.memory_space<vmem>>, %arg3: memref<36x9x1xf32, #tpu.memory_space<vmem>>, %arg4: memref<1x1x128xf32, #tpu.memory_space<vmem>>, %arg5: memref<1x1x128xf32, #tpu.memory_space<vmem>>, %arg6: memref<9x128x128xbf16, #tpu.memory_space<vmem>>, %arg7: memref<1x64x128xbf16, #tpu.memory_space<vmem>>, %arg8: memref<1x1x128xf32, #tpu.memory_space<vmem>>, %arg9: memref<1x1x128xf32, #tpu.memory_space<vmem>>, %arg10: memref<36x9x128xbf16, #tpu.memory_space<vmem>>, %arg11: memref<64x128xf32, #tpu.memory_space<vmem>>) attributes {dimension_semantics = [#tpu.dimension_semantics<parallel>, #tpu.dimension_semantics<arbitrary>], iteration_bounds = array<i64: 2, 1>, scalar_prefetch = 0 : i64, scratch_operands = 2 : i64, tpu.core_type = #tpu.core_type<tc>, window_params = [{transform_indices = @transform_0, window_bounds = array<i64: 1, 36, 9, 128>}, {pipeline_mode = #tpu.pipeline_mode<synchronous>, transform_indices = @transform_1, window_bounds = array<i64: 36, 9, 1>}, {pipeline_mode = #tpu.pipeline_mode<synchronous>, transform_indices = @transform_2, window_bounds = array<i64: 1, 1, 128>}, {pipeline_mode = #tpu.pipeline_mode<synchronous>, transform_indices = @transform_3, window_bounds = array<i64: 1, 1, 128>}, {transform_indices = @transform_4, window_bounds = array<i64: 9, 128, 128>}, {transform_indices = @transform_5, window_bounds = array<i64: 1, 64, 128>}, {transform_indices = @transform_6, window_bounds = array<i64: 1, 1, 128>}, {transform_indices = @transform_7, window_bounds = array<i64: 1, 1, 128>}]} {
    %c0_i32 = arith.constant 0 : i32
    %0 = arith.cmpi eq, %arg1, %c0_i32 : i32
    %1 = arith.extui %0 : i1 to i32
    %c0_i32_0 = arith.constant 0 : i32
    %2 = arith.cmpi ne, %1, %c0_i32_0 : i32
    scf.if %2 {
      %c0_97 = arith.constant 0 : index
      %c0_98 = arith.constant 0 : index
      %c0_99 = arith.constant 0 : index
      %c0_100 = arith.constant 0 : index
      %87 = vector.load %arg2[%c0_97, %c0_98, %c0_99, %c0_100] : memref<1x36x9x128xbf16, #tpu.memory_space<vmem>>, vector<1x36x9x128xbf16>
      %88 = vector.shape_cast %87 : vector<1x36x9x128xbf16> to vector<36x9x128xbf16>
      %89 = arith.extf %88 : vector<36x9x128xbf16> to vector<36x9x128xf32>
      %c0_101 = arith.constant 0 : index
      %c0_102 = arith.constant 0 : index
      %c0_103 = arith.constant 0 : index
      %90 = vector.load %arg4[%c0_101, %c0_102, %c0_103] : memref<1x1x128xf32, #tpu.memory_space<vmem>>, vector<1x1x128xf32>
      %91 = vector.broadcast %90 : vector<1x1x128xf32> to vector<36x9x128xf32>
      %92 = arith.mulf %89, %91 : vector<36x9x128xf32>
      %c0_104 = arith.constant 0 : index
      %c0_105 = arith.constant 0 : index
      %c0_106 = arith.constant 0 : index
      %93 = vector.load %arg5[%c0_104, %c0_105, %c0_106] : memref<1x1x128xf32, #tpu.memory_space<vmem>>, vector<1x1x128xf32>
      %94 = vector.broadcast %93 : vector<1x1x128xf32> to vector<36x9x128xf32>
      %95 = arith.addf %92, %94 : vector<36x9x128xf32>
      %cst_107 = arith.constant 0.000000e+00 : f32
      %96 = vector.broadcast %cst_107 : f32 to vector<36x9x128xf32>
      %97 = arith.maximumf %95, %96 : vector<36x9x128xf32>
      %c0_108 = arith.constant 0 : index
      %c0_109 = arith.constant 0 : index
      %c0_110 = arith.constant 0 : index
      %98 = vector.load %arg3[%c0_108, %c0_109, %c0_110] : memref<36x9x1xf32, #tpu.memory_space<vmem>>, vector<36x9x1xf32>
      %99 = vector.broadcast %98 : vector<36x9x1xf32> to vector<36x9x128xf32>
      %100 = arith.mulf %97, %99 : vector<36x9x128xf32>
      %101 = arith.truncf %100 : vector<36x9x128xf32> to vector<36x9x128xbf16>
      %c0_111 = arith.constant 0 : index
      %c0_112 = arith.constant 0 : index
      %c0_113 = arith.constant 0 : index
      %102 = vector.load %arg10[%c0_111, %c0_112, %c0_113] : memref<36x9x128xbf16, #tpu.memory_space<vmem>>, vector<36x9x128xbf16>
      tpu.vector_store %arg10[%c0_111, %c0_112, %c0_113], %101 {strides = array<i32>} : memref<36x9x128xbf16, #tpu.memory_space<vmem>>, vector<36x9x128xbf16>,
    } else {
    }
    %c0 = arith.constant 0 : index
    %c0_1 = arith.constant 0 : index
    %c0_2 = arith.constant 0 : index
    %3 = vector.load %arg10[%c0, %c0_1, %c0_2] : memref<36x9x128xbf16, #tpu.memory_space<vmem>>, vector<8x8x128xbf16>
    %4 = vector.shape_cast %3 : vector<8x8x128xbf16> to vector<64x128xbf16>
    %c0_3 = arith.constant 0 : index
    %c0_4 = arith.constant 0 : index
    %c0_5 = arith.constant 0 : index
    %5 = vector.load %arg6[%c0_3, %c0_4, %c0_5] : memref<9x128x128xbf16, #tpu.memory_space<vmem>>, vector<1x128x128xbf16>
    %6 = vector.shape_cast %5 : vector<1x128x128xbf16> to vector<128x128xbf16>
    %cst = arith.constant dense<0.000000e+00> : vector<64x128xf32>
    %7 = tpu.matmul %4, %6, %cst {dimension_numbers = #tpu.dot_dimension_numbers<[1], [0], [0], [1], [0, 0, 1, 1], [], []>} : vector<64x128xbf16>, vector<128x128xbf16>, vector<64x128xf32> -> vector<64x128xf32>
    %c0_6 = arith.constant 0 : index
    %c0_7 = arith.constant 0 : index
    %8 = vector.load %arg11[%c0_6, %c0_7] : memref<64x128xf32, #tpu.memory_space<vmem>>, vector<64x128xf32>
    tpu.vector_store %arg11[%c0_6, %c0_7], %7 {strides = array<i32>} : memref<64x128xf32, #tpu.memory_space<vmem>>, vector<64x128xf32>,
    %c9 = arith.constant 9 : index
    %c0_8 = arith.constant 0 : index
    %c0_9 = arith.constant 0 : index
    %9 = vector.load %arg10[%c9, %c0_8, %c0_9] : memref<36x9x128xbf16, #tpu.memory_space<vmem>>, vector<8x8x128xbf16>
    %10 = vector.shape_cast %9 : vector<8x8x128xbf16> to vector<64x128xbf16>
    %c1 = arith.constant 1 : index
    %c0_10 = arith.constant 0 : index
    %c0_11 = arith.constant 0 : index
    %11 = vector.load %arg6[%c1, %c0_10, %c0_11] : memref<9x128x128xbf16, #tpu.memory_space<vmem>>, vector<1x128x128xbf16>
    %12 = vector.shape_cast %11 : vector<1x128x128xbf16> to vector<128x128xbf16>
    %cst_12 = arith.constant dense<0.000000e+00> : vector<64x128xf32>
    %13 = tpu.matmul %10, %12, %cst_12 {dimension_numbers = #tpu.dot_dimension_numbers<[1], [0], [0], [1], [0, 0, 1, 1], [], []>} : vector<64x128xbf16>, vector<128x128xbf16>, vector<64x128xf32> -> vector<64x128xf32>
    %c0_13 = arith.constant 0 : index
    %c0_14 = arith.constant 0 : index
    %14 = vector.load %arg11[%c0_13, %c0_14] : memref<64x128xf32, #tpu.memory_space<vmem>>, vector<64x128xf32>
    %15 = arith.addf %14, %13 : vector<64x128xf32>
    %c0_15 = arith.constant 0 : index
    %c0_16 = arith.constant 0 : index
    %16 = vector.load %arg11[%c0_15, %c0_16] : memref<64x128xf32, #tpu.memory_space<vmem>>, vector<64x128xf32>
    tpu.vector_store %arg11[%c0_15, %c0_16], %15 {strides = array<i32>} : memref<64x128xf32, #tpu.memory_space<vmem>>, vector<64x128xf32>,
    %c0_17 = arith.constant 0 : index
    %c1_18 = arith.constant 1 : index
    %c0_19 = arith.constant 0 : index
    %17 = vector.load %arg10[%c0_17, %c1_18, %c0_19] : memref<36x9x128xbf16, #tpu.memory_space<vmem>>, vector<8x8x128xbf16>
    %18 = vector.shape_cast %17 : vector<8x8x128xbf16> to vector<64x128xbf16>
    %c2 = arith.constant 2 : index
    %c0_20 = arith.constant 0 : index
    %c0_21 = arith.constant 0 : index
    %19 = vector.load %arg6[%c2, %c0_20, %c0_21] : memref<9x128x128xbf16, #tpu.memory_space<vmem>>, vector<1x128x128xbf16>
    %20 = vector.shape_cast %19 : vector<1x128x128xbf16> to vector<128x128xbf16>
    %cst_22 = arith.constant dense<0.000000e+00> : vector<64x128xf32>
    %21 = tpu.matmul %18, %20, %cst_22 {dimension_numbers = #tpu.dot_dimension_numbers<[1], [0], [0], [1], [0, 0, 1, 1], [], []>} : vector<64x128xbf16>, vector<128x128xbf16>, vector<64x128xf32> -> vector<64x128xf32>
    %c0_23 = arith.constant 0 : index
    %c0_24 = arith.constant 0 : index
    %22 = vector.load %arg11[%c0_23, %c0_24] : memref<64x128xf32, #tpu.memory_space<vmem>>, vector<64x128xf32>
    %23 = arith.addf %22, %21 : vector<64x128xf32>
    %c0_25 = arith.constant 0 : index
    %c0_26 = arith.constant 0 : index
    %24 = vector.load %arg11[%c0_25, %c0_26] : memref<64x128xf32, #tpu.memory_space<vmem>>, vector<64x128xf32>
    tpu.vector_store %arg11[%c0_25, %c0_26], %23 {strides = array<i32>} : memref<64x128xf32, #tpu.memory_space<vmem>>, vector<64x128xf32>,
    %c18 = arith.constant 18 : index
    %c0_27 = arith.constant 0 : index
    %c0_28 = arith.constant 0 : index
    %25 = vector.load %arg10[%c18, %c0_27, %c0_28] : memref<36x9x128xbf16, #tpu.memory_space<vmem>>, vector<8x8x128xbf16>
    %26 = vector.shape_cast %25 : vector<8x8x128xbf16> to vector<64x128xbf16>
    %c3 = arith.constant 3 : index
    %c0_29 = arith.constant 0 : index
    %c0_30 = arith.constant 0 : index
    %27 = vector.load %arg6[%c3, %c0_29, %c0_30] : memref<9x128x128xbf16, #tpu.memory_space<vmem>>, vector<1x128x128xbf16>
    %28 = vector.shape_cast %27 : vector<1x128x128xbf16> to vector<128x128xbf16>
    %cst_31 = arith.constant dense<0.000000e+00> : vector<64x128xf32>
    %29 = tpu.matmul %26, %28, %cst_31 {dimension_numbers = #tpu.dot_dimension_numbers<[1], [0], [0], [1], [0, 0, 1, 1], [], []>} : vector<64x128xbf16>, vector<128x128xbf16>, vector<64x128xf32> -> vector<64x128xf32>
    %c0_32 = arith.constant 0 : index
    %c0_33 = arith.constant 0 : index
    %30 = vector.load %arg11[%c0_32, %c0_33] : memref<64x128xf32, #tpu.memory_space<vmem>>, vector<64x128xf32>
    %31 = arith.addf %30, %29 : vector<64x128xf32>
    %c0_34 = arith.constant 0 : index
    %c0_35 = arith.constant 0 : index
    %32 = vector.load %arg11[%c0_34, %c0_35] : memref<64x128xf32, #tpu.memory_space<vmem>>, vector<64x128xf32>
    tpu.vector_store %arg11[%c0_34, %c0_35], %31 {strides = array<i32>} : memref<64x128xf32, #tpu.memory_space<vmem>>, vector<64x128xf32>,
    %c27 = arith.constant 27 : index
    %c0_36 = arith.constant 0 : index
    %c0_37 = arith.constant 0 : index
    %33 = vector.load %arg10[%c27, %c0_36, %c0_37] : memref<36x9x128xbf16, #tpu.memory_space<vmem>>, vector<8x8x128xbf16>
    %34 = vector.shape_cast %33 : vector<8x8x128xbf16> to vector<64x128xbf16>
    %c4 = arith.constant 4 : index
    %c0_38 = arith.constant 0 : index
    %c0_39 = arith.constant 0 : index
    %35 = vector.load %arg6[%c4, %c0_38, %c0_39] : memref<9x128x128xbf16, #tpu.memory_space<vmem>>, vector<1x128x128xbf16>
    %36 = vector.shape_cast %35 : vector<1x128x128xbf16> to vector<128x128xbf16>
    %cst_40 = arith.constant dense<0.000000e+00> : vector<64x128xf32>
    %37 = tpu.matmul %34, %36, %cst_40 {dimension_numbers = #tpu.dot_dimension_numbers<[1], [0], [0], [1], [0, 0, 1, 1], [], []>} : vector<64x128xbf16>, vector<128x128xbf16>, vector<64x128xf32> -> vector<64x128xf32>
    %c0_41 = arith.constant 0 : index
    %c0_42 = arith.constant 0 : index
    %38 = vector.load %arg11[%c0_41, %c0_42] : memref<64x128xf32, #tpu.memory_space<vmem>>, vector<64x128xf32>
    %39 = arith.addf %38, %37 : vector<64x128xf32>
    %c0_43 = arith.constant 0 : index
    %c0_44 = arith.constant 0 : index
    %40 = vector.load %arg11[%c0_43, %c0_44] : memref<64x128xf32, #tpu.memory_space<vmem>>, vector<64x128xf32>
    tpu.vector_store %arg11[%c0_43, %c0_44], %39 {strides = array<i32>} : memref<64x128xf32, #tpu.memory_space<vmem>>, vector<64x128xf32>,
    %c18_45 = arith.constant 18 : index
    %c1_46 = arith.constant 1 : index
    %c0_47 = arith.constant 0 : index
    %41 = vector.load %arg10[%c18_45, %c1_46, %c0_47] : memref<36x9x128xbf16, #tpu.memory_space<vmem>>, vector<8x8x128xbf16>
    %42 = vector.shape_cast %41 : vector<8x8x128xbf16> to vector<64x128xbf16>
    %c5 = arith.constant 5 : index
    %c0_48 = arith.constant 0 : index
    %c0_49 = arith.constant 0 : index
    %43 = vector.load %arg6[%c5, %c0_48, %c0_49] : memref<9x128x128xbf16, #tpu.memory_space<vmem>>, vector<1x128x128xbf16>
    %44 = vector.shape_cast %43 : vector<1x128x128xbf16> to vector<128x128xbf16>
    %cst_50 = arith.constant dense<0.000000e+00> : vector<64x128xf32>
    %45 = tpu.matmul %42, %44, %cst_50 {dimension_numbers = #tpu.dot_dimension_numbers<[1], [0], [0], [1], [0, 0, 1, 1], [], []>} : vector<64x128xbf16>, vector<128x128xbf16>, vector<64x128xf32> -> vector<64x128xf32>
    %c0_51 = arith.constant 0 : index
    %c0_52 = arith.constant 0 : index
    %46 = vector.load %arg11[%c0_51, %c0_52] : memref<64x128xf32, #tpu.memory_space<vmem>>, vector<64x128xf32>
    %47 = arith.addf %46, %45 : vector<64x128xf32>
    %c0_53 = arith.constant 0 : index
    %c0_54 = arith.constant 0 : index
    %48 = vector.load %arg11[%c0_53, %c0_54] : memref<64x128xf32, #tpu.memory_space<vmem>>, vector<64x128xf32>
    tpu.vector_store %arg11[%c0_53, %c0_54], %47 {strides = array<i32>} : memref<64x128xf32, #tpu.memory_space<vmem>>, vector<64x128xf32>,
    %c1_55 = arith.constant 1 : index
    %c0_56 = arith.constant 0 : index
    %c0_57 = arith.constant 0 : index
    %49 = vector.load %arg10[%c1_55, %c0_56, %c0_57] : memref<36x9x128xbf16, #tpu.memory_space<vmem>>, vector<8x8x128xbf16>
    %50 = vector.shape_cast %49 : vector<8x8x128xbf16> to vector<64x128xbf16>
    %c6 = arith.constant 6 : index
    %c0_58 = arith.constant 0 : index
    %c0_59 = arith.constant 0 : index
    %51 = vector.load %arg6[%c6, %c0_58, %c0_59] : memref<9x128x128xbf16, #tpu.memory_space<vmem>>, vector<1x128x128xbf16>
    %52 = vector.shape_cast %51 : vector<1x128x128xbf16> to vector<128x128xbf16>
    %cst_60 = arith.constant dense<0.000000e+00> : vector<64x128xf32>
    %53 = tpu.matmul %50, %52, %cst_60 {dimension_numbers = #tpu.dot_dimension_numbers<[1], [0], [0], [1], [0, 0, 1, 1], [], []>} : vector<64x128xbf16>, vector<128x128xbf16>, vector<64x128xf32> -> vector<64x128xf32>
    %c0_61 = arith.constant 0 : index
    %c0_62 = arith.constant 0 : index
    %54 = vector.load %arg11[%c0_61, %c0_62] : memref<64x128xf32, #tpu.memory_space<vmem>>, vector<64x128xf32>
    %55 = arith.addf %54, %53 : vector<64x128xf32>
    %c0_63 = arith.constant 0 : index
    %c0_64 = arith.constant 0 : index
    %56 = vector.load %arg11[%c0_63, %c0_64] : memref<64x128xf32, #tpu.memory_space<vmem>>, vector<64x128xf32>
    tpu.vector_store %arg11[%c0_63, %c0_64], %55 {strides = array<i32>} : memref<64x128xf32, #tpu.memory_space<vmem>>, vector<64x128xf32>,
    %c10 = arith.constant 10 : index
    %c0_65 = arith.constant 0 : index
    %c0_66 = arith.constant 0 : index
    %57 = vector.load %arg10[%c10, %c0_65, %c0_66] : memref<36x9x128xbf16, #tpu.memory_space<vmem>>, vector<8x8x128xbf16>
    %58 = vector.shape_cast %57 : vector<8x8x128xbf16> to vector<64x128xbf16>
    %c7 = arith.constant 7 : index
    %c0_67 = arith.constant 0 : index
    %c0_68 = arith.constant 0 : index
    %59 = vector.load %arg6[%c7, %c0_67, %c0_68] : memref<9x128x128xbf16, #tpu.memory_space<vmem>>, vector<1x128x128xbf16>
    %60 = vector.shape_cast %59 : vector<1x128x128xbf16> to vector<128x128xbf16>
    %cst_69 = arith.constant dense<0.000000e+00> : vector<64x128xf32>
    %61 = tpu.matmul %58, %60, %cst_69 {dimension_numbers = #tpu.dot_dimension_numbers<[1], [0], [0], [1], [0, 0, 1, 1], [], []>} : vector<64x128xbf16>, vector<128x128xbf16>, vector<64x128xf32> -> vector<64x128xf32>
    %c0_70 = arith.constant 0 : index
    %c0_71 = arith.constant 0 : index
    %62 = vector.load %arg11[%c0_70, %c0_71] : memref<64x128xf32, #tpu.memory_space<vmem>>, vector<64x128xf32>
    %63 = arith.addf %62, %61 : vector<64x128xf32>
    %c0_72 = arith.constant 0 : index
    %c0_73 = arith.constant 0 : index
    %64 = vector.load %arg11[%c0_72, %c0_73] : memref<64x128xf32, #tpu.memory_space<vmem>>, vector<64x128xf32>
    tpu.vector_store %arg11[%c0_72, %c0_73], %63 {strides = array<i32>} : memref<64x128xf32, #tpu.memory_space<vmem>>, vector<64x128xf32>,
    %c1_74 = arith.constant 1 : index
    %c1_75 = arith.constant 1 : index
    %c0_76 = arith.constant 0 : index
    %65 = vector.load %arg10[%c1_74, %c1_75, %c0_76] : memref<36x9x128xbf16, #tpu.memory_space<vmem>>, vector<8x8x128xbf16>
    %66 = vector.shape_cast %65 : vector<8x8x128xbf16> to vector<64x128xbf16>
    %c8 = arith.constant 8 : index
    %c0_77 = arith.constant 0 : index
    %c0_78 = arith.constant 0 : index
    %67 = vector.load %arg6[%c8, %c0_77, %c0_78] : memref<9x128x128xbf16, #tpu.memory_space<vmem>>, vector<1x128x128xbf16>
    %68 = vector.shape_cast %67 : vector<1x128x128xbf16> to vector<128x128xbf16>
    %cst_79 = arith.constant dense<0.000000e+00> : vector<64x128xf32>
    %69 = tpu.matmul %66, %68, %cst_79 {dimension_numbers = #tpu.dot_dimension_numbers<[1], [0], [0], [1], [0, 0, 1, 1], [], []>} : vector<64x128xbf16>, vector<128x128xbf16>, vector<64x128xf32> -> vector<64x128xf32>
    %c0_80 = arith.constant 0 : index
    %c0_81 = arith.constant 0 : index
    %70 = vector.load %arg11[%c0_80, %c0_81] : memref<64x128xf32, #tpu.memory_space<vmem>>, vector<64x128xf32>
    %71 = arith.addf %70, %69 : vector<64x128xf32>
    %c0_82 = arith.constant 0 : index
    %c0_83 = arith.constant 0 : index
    %72 = vector.load %arg11[%c0_82, %c0_83] : memref<64x128xf32, #tpu.memory_space<vmem>>, vector<64x128xf32>
    tpu.vector_store %arg11[%c0_82, %c0_83], %71 {strides = array<i32>} : memref<64x128xf32, #tpu.memory_space<vmem>>, vector<64x128xf32>,
    %c0_84 = arith.constant 0 : index
    %c0_85 = arith.constant 0 : index
    %73 = vector.load %arg11[%c0_84, %c0_85] : memref<64x128xf32, #tpu.memory_space<vmem>>, vector<64x128xf32>
    %74 = arith.truncf %73 : vector<64x128xf32> to vector<64x128xbf16>
    %c0_86 = arith.constant 0 : index
    %c0_87 = arith.constant 0 : index
    %c0_88 = arith.constant 0 : index
    %75 = vector.load %arg7[%c0_86, %c0_87, %c0_88] : memref<1x64x128xbf16, #tpu.memory_space<vmem>>, vector<1x64x128xbf16>
    %76 = vector.shape_cast %75 : vector<1x64x128xbf16> to vector<64x128xbf16>
    %77 = vector.shape_cast %74 : vector<64x128xbf16> to vector<1x64x128xbf16>
    tpu.vector_store %arg7[%c0_86, %c0_87, %c0_88], %77 {strides = array<i32>} : memref<1x64x128xbf16, #tpu.memory_space<vmem>>, vector<1x64x128xbf16>,
    %cst_89 = arith.constant dense<0.000000e+00> : vector<128xf32>
    %78 = vector.multi_reduction <add>, %73, %cst_89 [0] : vector<64x128xf32> to vector<128xf32>
    %79 = vector.shape_cast %78 : vector<128xf32> to vector<1x128xf32>
    %80 = vector.shape_cast %79 : vector<1x128xf32> to vector<1x1x128xf32>
    %c0_90 = arith.constant 0 : index
    %c0_91 = arith.constant 0 : index
    %c0_92 = arith.constant 0 : index
    %81 = vector.load %arg8[%c0_90, %c0_91, %c0_92] : memref<1x1x128xf32, #tpu.memory_space<vmem>>, vector<1x1x128xf32>
    tpu.vector_store %arg8[%c0_90, %c0_91, %c0_92], %80 {strides = array<i32>} : memref<1x1x128xf32, #tpu.memory_space<vmem>>, vector<1x1x128xf32>,
    %82 = arith.mulf %73, %73 : vector<64x128xf32>
    %cst_93 = arith.constant dense<0.000000e+00> : vector<128xf32>
    %83 = vector.multi_reduction <add>, %82, %cst_93 [0] : vector<64x128xf32> to vector<128xf32>
    %84 = vector.shape_cast %83 : vector<128xf32> to vector<1x128xf32>
    %85 = vector.shape_cast %84 : vector<1x128xf32> to vector<1x1x128xf32>
    %c0_94 = arith.constant 0 : index
    %c0_95 = arith.constant 0 : index
    %c0_96 = arith.constant 0 : index
    %86 = vector.load %arg9[%c0_94, %c0_95, %c0_96] : memref<1x1x128xf32, #tpu.memory_space<vmem>>, vector<1x1x128xf32>
    tpu.vector_store %arg9[%c0_94, %c0_95, %c0_96], %85 {strides = array<i32>} : memref<1x1x128xf32, #tpu.memory_space<vmem>>, vector<1x1x128xf32>,
    return
  }
  func.func @transform_0(%arg0: i32, %arg1: i32) -> (i32, i32, i32, i32) {
    %c0_i32 = arith.constant 0 : i32
    %c0_i32_0 = arith.constant 0 : i32
    %c0_i32_1 = arith.constant 0 : i32
    %c0_i32_2 = arith.constant 0 : i32
    return %arg0, %c0_i32, %c0_i32_0, %c0_i32_1 : i32, i32, i32, i32
  }
  func.func @transform_1(%arg0: i32, %arg1: i32) -> (i32, i32, i32) {
    %c0_i32 = arith.constant 0 : i32
    %c0_i32_0 = arith.constant 0 : i32
    %c0_i32_1 = arith.constant 0 : i32
    %c0_i32_2 = arith.constant 0 : i32
    return %c0_i32, %c0_i32_0, %c0_i32_1 : i32, i32, i32
  }
  func.func @transform_2(%arg0: i32, %arg1: i32) -> (i32, i32, i32) {
    %c0_i32 = arith.constant 0 : i32
    %c0_i32_0 = arith.constant 0 : i32
    %c0_i32_1 = arith.constant 0 : i32
    %c0_i32_2 = arith.constant 0 : i32
    return %c0_i32, %c0_i32_0, %c0_i32_1 : i32, i32, i32
  }
  func.func @transform_3(%arg0: i32, %arg1: i32) -> (i32, i32, i32) {
    %c0_i32 = arith.constant 0 : i32
    %c0_i32_0 = arith.constant 0 : i32
    %c0_i32_1 = arith.constant 0 : i32
    %c0_i32_2 = arith.constant 0 : i32
    return %c0_i32, %c0_i32_0, %c0_i32_1 : i32, i32, i32
  }
  func.func @transform_4(%arg0: i32, %arg1: i32) -> (i32, i32, i32) {
    %c0_i32 = arith.constant 0 : i32
    %c0_i32_0 = arith.constant 0 : i32
    %c0_i32_1 = arith.constant 0 : i32
    return %c0_i32, %c0_i32_0, %arg1 : i32, i32, i32
  }
  func.func @transform_5(%arg0: i32, %arg1: i32) -> (i32, i32, i32) {
    %c0_i32 = arith.constant 0 : i32
    %c0_i32_0 = arith.constant 0 : i32
    return %arg0, %c0_i32, %arg1 : i32, i32, i32
  }
  func.func @transform_6(%arg0: i32, %arg1: i32) -> (i32, i32, i32) {
    %c0_i32 = arith.constant 0 : i32
    %c0_i32_0 = arith.constant 0 : i32
    return %arg0, %c0_i32, %arg1 : i32, i32, i32
  }
  func.func @transform_7(%arg0: i32, %arg1: i32) -> (i32, i32, i32) {
    %c0_i32 = arith.constant 0 : i32
    %c0_i32_0 = arith.constant 0 : i32
    return %arg0, %c0_i32, %arg1 : i32, i32, i32
  }
}

module attributes {stable_mosaic.version = 11 : i64} {
  func.func @_mm_kernel(%arg0: i32, %arg1: memref<128x128xbf16, #tpu.memory_space<vmem>>, %arg2: memref<1x128xf32, #tpu.memory_space<vmem>>, %arg3: memref<1x128xf32, #tpu.memory_space<vmem>>, %arg4: memref<128x128xbf16, #tpu.memory_space<vmem>>, %arg5: memref<128x128xbf16, #tpu.memory_space<vmem>>, %arg6: memref<1x1x128xf32, #tpu.memory_space<vmem>>, %arg7: memref<1x1x128xf32, #tpu.memory_space<vmem>>) attributes {dimension_semantics = [#tpu.dimension_semantics<parallel>], iteration_bounds = array<i64: 1>, scalar_prefetch = 0 : i64, scratch_operands = 0 : i64, tpu.core_type = #tpu.core_type<tc>, window_params = [{transform_indices = @transform_0, window_bounds = array<i64: 128, 128>}, {pipeline_mode = #tpu.pipeline_mode<synchronous>, transform_indices = @transform_1, window_bounds = array<i64: 1, 128>}, {pipeline_mode = #tpu.pipeline_mode<synchronous>, transform_indices = @transform_2, window_bounds = array<i64: 1, 128>}, {pipeline_mode = #tpu.pipeline_mode<synchronous>, transform_indices = @transform_3, window_bounds = array<i64: 128, 128>}, {transform_indices = @transform_4, window_bounds = array<i64: 128, 128>}, {transform_indices = @transform_5, window_bounds = array<i64: 1, 1, 128>}, {transform_indices = @transform_6, window_bounds = array<i64: 1, 1, 128>}]} {
    %c0 = arith.constant 0 : index
    %c0_0 = arith.constant 0 : index
    %0 = vector.load %arg1[%c0, %c0_0] : memref<128x128xbf16, #tpu.memory_space<vmem>>, vector<128x128xbf16>
    %1 = arith.extf %0 : vector<128x128xbf16> to vector<128x128xf32>
    %c0_1 = arith.constant 0 : index
    %c0_2 = arith.constant 0 : index
    %2 = vector.load %arg2[%c0_1, %c0_2] : memref<1x128xf32, #tpu.memory_space<vmem>>, vector<1x128xf32>
    %3 = vector.broadcast %2 : vector<1x128xf32> to vector<128x128xf32>
    %4 = arith.mulf %1, %3 : vector<128x128xf32>
    %c0_3 = arith.constant 0 : index
    %c0_4 = arith.constant 0 : index
    %5 = vector.load %arg3[%c0_3, %c0_4] : memref<1x128xf32, #tpu.memory_space<vmem>>, vector<1x128xf32>
    %6 = vector.broadcast %5 : vector<1x128xf32> to vector<128x128xf32>
    %7 = arith.addf %4, %6 : vector<128x128xf32>
    %cst = arith.constant 0.000000e+00 : f32
    %8 = vector.broadcast %cst : f32 to vector<128x128xf32>
    %9 = arith.maximumf %7, %8 : vector<128x128xf32>
    %10 = arith.truncf %9 : vector<128x128xf32> to vector<128x128xbf16>
    %c0_5 = arith.constant 0 : index
    %c0_6 = arith.constant 0 : index
    %11 = vector.load %arg4[%c0_5, %c0_6] : memref<128x128xbf16, #tpu.memory_space<vmem>>, vector<128x128xbf16>
    %cst_7 = arith.constant dense<0.000000e+00> : vector<128x128xf32>
    %12 = tpu.matmul %10, %11, %cst_7 {dimension_numbers = #tpu.dot_dimension_numbers<[1], [0], [0], [1], [0, 0, 1, 1], [], []>} : vector<128x128xbf16>, vector<128x128xbf16>, vector<128x128xf32> -> vector<128x128xf32>
    %13 = arith.truncf %12 : vector<128x128xf32> to vector<128x128xbf16>
    %c0_8 = arith.constant 0 : index
    %c0_9 = arith.constant 0 : index
    %14 = vector.load %arg5[%c0_8, %c0_9] : memref<128x128xbf16, #tpu.memory_space<vmem>>, vector<128x128xbf16>
    tpu.vector_store %arg5[%c0_8, %c0_9], %13 {strides = array<i32>} : memref<128x128xbf16, #tpu.memory_space<vmem>>, vector<128x128xbf16>,
    %cst_10 = arith.constant dense<0.000000e+00> : vector<128xf32>
    %15 = vector.multi_reduction <add>, %12, %cst_10 [0] : vector<128x128xf32> to vector<128xf32>
    %16 = vector.shape_cast %15 : vector<128xf32> to vector<1x128xf32>
    %17 = vector.shape_cast %16 : vector<1x128xf32> to vector<1x1x128xf32>
    %c0_11 = arith.constant 0 : index
    %c0_12 = arith.constant 0 : index
    %c0_13 = arith.constant 0 : index
    %18 = vector.load %arg6[%c0_11, %c0_12, %c0_13] : memref<1x1x128xf32, #tpu.memory_space<vmem>>, vector<1x1x128xf32>
    tpu.vector_store %arg6[%c0_11, %c0_12, %c0_13], %17 {strides = array<i32>} : memref<1x1x128xf32, #tpu.memory_space<vmem>>, vector<1x1x128xf32>,
    %19 = arith.mulf %12, %12 : vector<128x128xf32>
    %cst_14 = arith.constant dense<0.000000e+00> : vector<128xf32>
    %20 = vector.multi_reduction <add>, %19, %cst_14 [0] : vector<128x128xf32> to vector<128xf32>
    %21 = vector.shape_cast %20 : vector<128xf32> to vector<1x128xf32>
    %22 = vector.shape_cast %21 : vector<1x128xf32> to vector<1x1x128xf32>
    %c0_15 = arith.constant 0 : index
    %c0_16 = arith.constant 0 : index
    %c0_17 = arith.constant 0 : index
    %23 = vector.load %arg7[%c0_15, %c0_16, %c0_17] : memref<1x1x128xf32, #tpu.memory_space<vmem>>, vector<1x1x128xf32>
    tpu.vector_store %arg7[%c0_15, %c0_16, %c0_17], %22 {strides = array<i32>} : memref<1x1x128xf32, #tpu.memory_space<vmem>>, vector<1x1x128xf32>,
    return
  }
  func.func @transform_0(%arg0: i32) -> (i32, i32) {
    %c0_i32 = arith.constant 0 : i32
    %c0_i32_0 = arith.constant 0 : i32
    return %arg0, %c0_i32 : i32, i32
  }
  func.func @transform_1(%arg0: i32) -> (i32, i32) {
    %c0_i32 = arith.constant 0 : i32
    %c0_i32_0 = arith.constant 0 : i32
    %c0_i32_1 = arith.constant 0 : i32
    return %c0_i32, %c0_i32_0 : i32, i32
  }
  func.func @transform_2(%arg0: i32) -> (i32, i32) {
    %c0_i32 = arith.constant 0 : i32
    %c0_i32_0 = arith.constant 0 : i32
    %c0_i32_1 = arith.constant 0 : i32
    return %c0_i32, %c0_i32_0 : i32, i32
  }
  func.func @transform_3(%arg0: i32) -> (i32, i32) {
    %c0_i32 = arith.constant 0 : i32
    %c0_i32_0 = arith.constant 0 : i32
    %c0_i32_1 = arith.constant 0 : i32
    return %c0_i32, %c0_i32_0 : i32, i32
  }
  func.func @transform_4(%arg0: i32) -> (i32, i32) {
    %c0_i32 = arith.constant 0 : i32
    %c0_i32_0 = arith.constant 0 : i32
    return %arg0, %c0_i32 : i32, i32
  }
  func.func @transform_5(%arg0: i32) -> (i32, i32, i32) {
    %c0_i32 = arith.constant 0 : i32
    %c0_i32_0 = arith.constant 0 : i32
    %c0_i32_1 = arith.constant 0 : i32
    return %arg0, %c0_i32, %c0_i32_0 : i32, i32, i32
  }
  func.func @transform_6(%arg0: i32) -> (i32, i32, i32) {
    %c0_i32 = arith.constant 0 : i32
    %c0_i32_0 = arith.constant 0 : i32
    %c0_i32_1 = arith.constant 0 : i32
    return %arg0, %c0_i32, %c0_i32_0 : i32, i32, i32
  }
}

module attributes {stable_mosaic.version = 11 : i64} {
  func.func @_residual_kernel(%arg0: i32, %arg1: memref<128x128xbf16, #tpu.memory_space<vmem>>, %arg2: memref<1x128xf32, #tpu.memory_space<vmem>>, %arg3: memref<1x128xf32, #tpu.memory_space<vmem>>, %arg4: memref<128x128xbf16, #tpu.memory_space<vmem>>, %arg5: memref<1x128xf32, #tpu.memory_space<vmem>>, %arg6: memref<1x128xf32, #tpu.memory_space<vmem>>, %arg7: memref<128x128xf32, #tpu.memory_space<vmem>>) attributes {dimension_semantics = [#tpu.dimension_semantics<parallel>], iteration_bounds = array<i64: 1>, scalar_prefetch = 0 : i64, scratch_operands = 0 : i64, tpu.core_type = #tpu.core_type<tc>, window_params = [{transform_indices = @transform_0, window_bounds = array<i64: 128, 128>}, {pipeline_mode = #tpu.pipeline_mode<synchronous>, transform_indices = @transform_1, window_bounds = array<i64: 1, 128>}, {pipeline_mode = #tpu.pipeline_mode<synchronous>, transform_indices = @transform_2, window_bounds = array<i64: 1, 128>}, {transform_indices = @transform_3, window_bounds = array<i64: 128, 128>}, {pipeline_mode = #tpu.pipeline_mode<synchronous>, transform_indices = @transform_4, window_bounds = array<i64: 1, 128>}, {pipeline_mode = #tpu.pipeline_mode<synchronous>, transform_indices = @transform_5, window_bounds = array<i64: 1, 128>}, {transform_indices = @transform_6, window_bounds = array<i64: 128, 128>}]} {
    %c0 = arith.constant 0 : index
    %c0_0 = arith.constant 0 : index
    %0 = vector.load %arg4[%c0, %c0_0] : memref<128x128xbf16, #tpu.memory_space<vmem>>, vector<128x128xbf16>
    %1 = arith.extf %0 : vector<128x128xbf16> to vector<128x128xf32>
    %c0_1 = arith.constant 0 : index
    %c0_2 = arith.constant 0 : index
    %2 = vector.load %arg5[%c0_1, %c0_2] : memref<1x128xf32, #tpu.memory_space<vmem>>, vector<1x128xf32>
    %3 = vector.broadcast %2 : vector<1x128xf32> to vector<128x128xf32>
    %4 = arith.mulf %1, %3 : vector<128x128xf32>
    %c0_3 = arith.constant 0 : index
    %c0_4 = arith.constant 0 : index
    %5 = vector.load %arg6[%c0_3, %c0_4] : memref<1x128xf32, #tpu.memory_space<vmem>>, vector<1x128xf32>
    %6 = vector.broadcast %5 : vector<1x128xf32> to vector<128x128xf32>
    %7 = arith.addf %4, %6 : vector<128x128xf32>
    %c0_5 = arith.constant 0 : index
    %c0_6 = arith.constant 0 : index
    %8 = vector.load %arg1[%c0_5, %c0_6] : memref<128x128xbf16, #tpu.memory_space<vmem>>, vector<128x128xbf16>
    %9 = arith.extf %8 : vector<128x128xbf16> to vector<128x128xf32>
    %c0_7 = arith.constant 0 : index
    %c0_8 = arith.constant 0 : index
    %10 = vector.load %arg2[%c0_7, %c0_8] : memref<1x128xf32, #tpu.memory_space<vmem>>, vector<1x128xf32>
    %11 = vector.broadcast %10 : vector<1x128xf32> to vector<128x128xf32>
    %12 = arith.mulf %9, %11 : vector<128x128xf32>
    %c0_9 = arith.constant 0 : index
    %c0_10 = arith.constant 0 : index
    %13 = vector.load %arg3[%c0_9, %c0_10] : memref<1x128xf32, #tpu.memory_space<vmem>>, vector<1x128xf32>
    %14 = vector.broadcast %13 : vector<1x128xf32> to vector<128x128xf32>
    %15 = arith.addf %12, %14 : vector<128x128xf32>
    %16 = arith.addf %15, %7 : vector<128x128xf32>
    %cst = arith.constant 0.000000e+00 : f32
    %17 = vector.broadcast %cst : f32 to vector<128x128xf32>
    %18 = arith.maximumf %16, %17 : vector<128x128xf32>
    %c0_11 = arith.constant 0 : index
    %c0_12 = arith.constant 0 : index
    %19 = vector.load %arg7[%c0_11, %c0_12] : memref<128x128xf32, #tpu.memory_space<vmem>>, vector<128x128xf32>
    tpu.vector_store %arg7[%c0_11, %c0_12], %18 {strides = array<i32>} : memref<128x128xf32, #tpu.memory_space<vmem>>, vector<128x128xf32>,
    return
  }
  func.func @transform_0(%arg0: i32) -> (i32, i32) {
    %c0_i32 = arith.constant 0 : i32
    %c0_i32_0 = arith.constant 0 : i32
    return %arg0, %c0_i32 : i32, i32
  }
  func.func @transform_1(%arg0: i32) -> (i32, i32) {
    %c0_i32 = arith.constant 0 : i32
    %c0_i32_0 = arith.constant 0 : i32
    %c0_i32_1 = arith.constant 0 : i32
    return %c0_i32, %c0_i32_0 : i32, i32
  }
  func.func @transform_2(%arg0: i32) -> (i32, i32) {
    %c0_i32 = arith.constant 0 : i32
    %c0_i32_0 = arith.constant 0 : i32
    %c0_i32_1 = arith.constant 0 : i32
    return %c0_i32, %c0_i32_0 : i32, i32
  }
  func.func @transform_3(%arg0: i32) -> (i32, i32) {
    %c0_i32 = arith.constant 0 : i32
    %c0_i32_0 = arith.constant 0 : i32
    return %arg0, %c0_i32 : i32, i32
  }
  func.func @transform_4(%arg0: i32) -> (i32, i32) {
    %c0_i32 = arith.constant 0 : i32
    %c0_i32_0 = arith.constant 0 : i32
    %c0_i32_1 = arith.constant 0 : i32
    return %c0_i32, %c0_i32_0 : i32, i32
  }
  func.func @transform_5(%arg0: i32) -> (i32, i32) {
    %c0_i32 = arith.constant 0 : i32
    %c0_i32_0 = arith.constant 0 : i32
    %c0_i32_1 = arith.constant 0 : i32
    return %c0_i32, %c0_i32_0 : i32, i32
  }
  func.func @transform_6(%arg0: i32) -> (i32, i32) {
    %c0_i32 = arith.constant 0 : i32
    %c0_i32_0 = arith.constant 0 : i32
    return %arg0, %c0_i32 : i32, i32
  }
}

module attributes {stable_mosaic.version = 11 : i64} {
  func.func @_mm_kernel(%arg0: i32, %arg1: memref<128x128xbf16, #tpu.memory_space<vmem>>, %arg2: memref<128x128xbf16, #tpu.memory_space<vmem>>, %arg3: memref<128x128xbf16, #tpu.memory_space<vmem>>, %arg4: memref<1x1x128xf32, #tpu.memory_space<vmem>>, %arg5: memref<1x1x128xf32, #tpu.memory_space<vmem>>) attributes {dimension_semantics = [#tpu.dimension_semantics<parallel>], iteration_bounds = array<i64: 1>, scalar_prefetch = 0 : i64, scratch_operands = 0 : i64, tpu.core_type = #tpu.core_type<tc>, window_params = [{transform_indices = @transform_0, window_bounds = array<i64: 128, 128>}, {pipeline_mode = #tpu.pipeline_mode<synchronous>, transform_indices = @transform_1, window_bounds = array<i64: 128, 128>}, {transform_indices = @transform_2, window_bounds = array<i64: 128, 128>}, {transform_indices = @transform_3, window_bounds = array<i64: 1, 1, 128>}, {transform_indices = @transform_4, window_bounds = array<i64: 1, 1, 128>}]} {
    %c0 = arith.constant 0 : index
    %c0_0 = arith.constant 0 : index
    %0 = vector.load %arg1[%c0, %c0_0] : memref<128x128xbf16, #tpu.memory_space<vmem>>, vector<128x128xbf16>
    %c0_1 = arith.constant 0 : index
    %c0_2 = arith.constant 0 : index
    %1 = vector.load %arg2[%c0_1, %c0_2] : memref<128x128xbf16, #tpu.memory_space<vmem>>, vector<128x128xbf16>
    %cst = arith.constant dense<0.000000e+00> : vector<128x128xf32>
    %2 = tpu.matmul %0, %1, %cst {dimension_numbers = #tpu.dot_dimension_numbers<[1], [0], [0], [1], [0, 0, 1, 1], [], []>} : vector<128x128xbf16>, vector<128x128xbf16>, vector<128x128xf32> -> vector<128x128xf32>
    %3 = arith.truncf %2 : vector<128x128xf32> to vector<128x128xbf16>
    %c0_3 = arith.constant 0 : index
    %c0_4 = arith.constant 0 : index
    %4 = vector.load %arg3[%c0_3, %c0_4] : memref<128x128xbf16, #tpu.memory_space<vmem>>, vector<128x128xbf16>
    tpu.vector_store %arg3[%c0_3, %c0_4], %3 {strides = array<i32>} : memref<128x128xbf16, #tpu.memory_space<vmem>>, vector<128x128xbf16>,
    %cst_5 = arith.constant dense<0.000000e+00> : vector<128xf32>
    %5 = vector.multi_reduction <add>, %2, %cst_5 [0] : vector<128x128xf32> to vector<128xf32>
    %6 = vector.shape_cast %5 : vector<128xf32> to vector<1x128xf32>
    %7 = vector.shape_cast %6 : vector<1x128xf32> to vector<1x1x128xf32>
    %c0_6 = arith.constant 0 : index
    %c0_7 = arith.constant 0 : index
    %c0_8 = arith.constant 0 : index
    %8 = vector.load %arg4[%c0_6, %c0_7, %c0_8] : memref<1x1x128xf32, #tpu.memory_space<vmem>>, vector<1x1x128xf32>
    tpu.vector_store %arg4[%c0_6, %c0_7, %c0_8], %7 {strides = array<i32>} : memref<1x1x128xf32, #tpu.memory_space<vmem>>, vector<1x1x128xf32>,
    %9 = arith.mulf %2, %2 : vector<128x128xf32>
    %cst_9 = arith.constant dense<0.000000e+00> : vector<128xf32>
    %10 = vector.multi_reduction <add>, %9, %cst_9 [0] : vector<128x128xf32> to vector<128xf32>
    %11 = vector.shape_cast %10 : vector<128xf32> to vector<1x128xf32>
    %12 = vector.shape_cast %11 : vector<1x128xf32> to vector<1x1x128xf32>
    %c0_10 = arith.constant 0 : index
    %c0_11 = arith.constant 0 : index
    %c0_12 = arith.constant 0 : index
    %13 = vector.load %arg5[%c0_10, %c0_11, %c0_12] : memref<1x1x128xf32, #tpu.memory_space<vmem>>, vector<1x1x128xf32>
    tpu.vector_store %arg5[%c0_10, %c0_11, %c0_12], %12 {strides = array<i32>} : memref<1x1x128xf32, #tpu.memory_space<vmem>>, vector<1x1x128xf32>,
    return
  }
  func.func @transform_0(%arg0: i32) -> (i32, i32) {
    %c0_i32 = arith.constant 0 : i32
    %c0_i32_0 = arith.constant 0 : i32
    return %arg0, %c0_i32 : i32, i32
  }
  func.func @transform_1(%arg0: i32) -> (i32, i32) {
    %c0_i32 = arith.constant 0 : i32
    %c0_i32_0 = arith.constant 0 : i32
    %c0_i32_1 = arith.constant 0 : i32
    return %c0_i32, %c0_i32_0 : i32, i32
  }
  func.func @transform_2(%arg0: i32) -> (i32, i32) {
    %c0_i32 = arith.constant 0 : i32
    %c0_i32_0 = arith.constant 0 : i32
    return %arg0, %c0_i32 : i32, i32
  }
  func.func @transform_3(%arg0: i32) -> (i32, i32, i32) {
    %c0_i32 = arith.constant 0 : i32
    %c0_i32_0 = arith.constant 0 : i32
    %c0_i32_1 = arith.constant 0 : i32
    return %arg0, %c0_i32, %c0_i32_0 : i32, i32, i32
  }
  func.func @transform_4(%arg0: i32) -> (i32, i32, i32) {
    %c0_i32 = arith.constant 0 : i32
    %c0_i32_0 = arith.constant 0 : i32
    %c0_i32_1 = arith.constant 0 : i32
    return %arg0, %c0_i32, %c0_i32_0 : i32, i32, i32
  }
}

</mosaic_0001>

<llo_original>
// kernel: block_forward.7
$region0: #{block_forward.7}
  #allocation0 [shape = 'u32[]', space=smem, size = 0x4, offset = 0x4, fixed_abs, tag = 'smem constant byte address 0x4 - core index']
  #allocation1 [shape = 'u32[144,128]{1,0:T(1,128)}', space=vmem, size = 0x12000, scoped, tag = 'internal scratch']
  %s0 = inlined_call_operand.vmem [shape: bf16[128,128], index: 0, kind: input, shape index: {}]
  %s1 = inlined_call_operand.vmem [shape: f32[1,128], index: 1, kind: input, shape index: {}]
  %s2 = inlined_call_operand.vmem [shape: f32[1,128], index: 2, kind: input, shape index: {}]
  %s3 = inlined_call_operand.vmem [shape: bf16[128,128], index: 3, kind: input, shape index: {}]
  %s4 = inlined_call_operand.vmem [shape: bf16[128,128], index: 4, kind: output, shape index: {0}]
  %s5 = inlined_call_operand.vmem [shape: f32[1,1,128], index: 5, kind: output, shape index: {1}]
  %s6 = inlined_call_operand.vmem [shape: f32[1,1,128], index: 6, kind: output, shape index: {2}]
  %7 = xla_tuple %s4, %s5, %s6
  %s8 = sld [smem:[#allocation0]]
  $region42: #{block_forward.7} parent=0
    _
  %s10 = ssub.s32 1, %s8
  %s11 = scalar_select 0, %s10, %s8
  // Predicated region
  $region2: #{block_forward.7} parent=0 // pred_check
    _
  $region3: #{block_forward.7} parent=0 // pred_check_branch
    %13 = sbr.rel (0) target = $region5
  $region4: #{block_forward.7} parent=0 // pred_region
    _
  $region5: #{block_forward.7} parent=0 // pred_fallthru
    _
  // Predicated region
  $region6: #{block_forward.7} parent=0 // pred_check
    _
  $region7: #{block_forward.7} parent=0 // pred_check_branch
    %15 = sbr.rel (0) target = $region9
  $region8: #{block_forward.7} parent=0 // pred_region
    _
  $region9: #{block_forward.7} parent=0 // pred_fallthru
    _
  // Predicated region
  $region10: #{block_forward.7} parent=0 // pred_check
    _
  $region11: #{block_forward.7} parent=0 // pred_check_branch
    %17 = sbr.rel (0) target = $region13
  $region12: #{block_forward.7} parent=0 // pred_region
    _
  $region13: #{block_forward.7} parent=0 // pred_fallthru
    _
  // Predicated region
  $region14: #{block_forward.7} parent=0 // pred_check
    _
  $region15: #{block_forward.7} parent=0 // pred_check_branch
    %19 = sbr.rel (0) target = $region17
  $region16: #{block_forward.7} parent=0 // pred_region
    _
  $region17: #{block_forward.7} parent=0 // pred_fallthru
    _
  %v21 = vld [vmem:[%s0] sm:$0xf]
  %v22 = vld [vmem:[%s0 + $0x4] sm:$0xf]
  %v23 = vld [vmem:[%s0 + $0x8] sm:$0xf]
  %v24 = vld [vmem:[%s0 + $0xc] sm:$0xf]
  %v25 = vld [vmem:[%s0 + $0x10] sm:$0xf]
  %v26 = vld [vmem:[%s0 + $0x14] sm:$0xf]
  %v27 = vld [vmem:[%s0 + $0x18] sm:$0xf]
  %v28 = vld [vmem:[%s0 + $0x1c] sm:$0xf]
  %v29 = vld [vmem:[%s0 + $0x20] sm:$0xf]
  %v30 = vld [vmem:[%s0 + $0x24] sm:$0xf]
  %v31 = vld [vmem:[%s0 + $0x28] sm:$0xf]
  %v32 = vld [vmem:[%s0 + $0x2c] sm:$0xf]
  %v33 = vld [vmem:[%s0 + $0x30] sm:$0xf]
  %v34 = vld [vmem:[%s0 + $0x34] sm:$0xf]
  %v35 = vld [vmem:[%s0 + $0x38] sm:$0xf]
  %v36 = vld [vmem:[%s0 + $0x3c] sm:$0xf]
  %v37 = vunpack.c.l.bf16 %v21
  %v38 = vunpack.c.l.bf16 %v22
  %v39 = vunpack.c.l.bf16 %v23
  %v40 = vunpack.c.l.bf16 %v24
  %v41 = vunpack.c.l.bf16 %v25
  %v42 = vunpack.c.l.bf16 %v26
  %v43 = vunpack.c.l.bf16 %v27
  %v44 = vunpack.c.l.bf16 %v28
  %v45 = vunpack.c.l.bf16 %v29
  %v46 = vunpack.c.l.bf16 %v30
  %v47 = vunpack.c.l.bf16 %v31
  %v48 = vunpack.c.l.bf16 %v32
  %v49 = vunpack.c.l.bf16 %v33
  %v50 = vunpack.c.l.bf16 %v34
  %v51 = vunpack.c.l.bf16 %v35
  %v52 = vunpack.c.l.bf16 %v36
  %v53 = vld [vmem:[%s1] sm:$0x1]
  %v55 = vlaneseq
  %v56 = vshrl.u32 %v55, 7
  %v57 = vsub.s32 0, %v56
  %v58 = vrot.slane %v53, %v57
  %v60 = vmul.f32 %v37, %v58
  %v61 = vmul.f32 %v38, %v58
  %v62 = vmul.f32 %v39, %v58
  %v63 = vmul.f32 %v40, %v58
  %v64 = vmul.f32 %v41, %v58
  %v65 = vmul.f32 %v42, %v58
  %v66 = vmul.f32 %v43, %v58
  %v67 = vmul.f32 %v44, %v58
  %v68 = vmul.f32 %v45, %v58
  %v69 = vmul.f32 %v46, %v58
  %v70 = vmul.f32 %v47, %v58
  %v71 = vmul.f32 %v48, %v58
  %v72 = vmul.f32 %v49, %v58
  %v73 = vmul.f32 %v50, %v58
  %v74 = vmul.f32 %v51, %v58
  %v75 = vmul.f32 %v52, %v58
  %v76 = vld [vmem:[%s2] sm:$0x1]
  %v78 = vlaneseq
  %v79 = vshrl.u32 %v78, 7
  %v80 = vsub.s32 0, %v79
  %v81 = vrot.slane %v76, %v80
  %v83 = vadd.f32 %v60, %v81
  %v84 = vadd.f32 %v61, %v81
  %v85 = vadd.f32 %v62, %v81
  %v86 = vadd.f32 %v63, %v81
  %v87 = vadd.f32 %v64, %v81
  %v88 = vadd.f32 %v65, %v81
  %v89 = vadd.f32 %v66, %v81
  %v90 = vadd.f32 %v67, %v81
  %v91 = vadd.f32 %v68, %v81
  %v92 = vadd.f32 %v69, %v81
  %v93 = vadd.f32 %v70, %v81
  %v94 = vadd.f32 %v71, %v81
  %v95 = vadd.f32 %v72, %v81
  %v96 = vadd.f32 %v73, %v81
  %v97 = vadd.f32 %v74, %v81
  %v98 = vadd.f32 %v75, %v81
  %v99 = vmax.f32 %v83, 0.0
  %v100 = vmax.f32 %v84, 0.0
  %v101 = vmax.f32 %v85, 0.0
  %v102 = vmax.f32 %v86, 0.0
  %v103 = vmax.f32 %v87, 0.0
  %v104 = vmax.f32 %v88, 0.0
  %v105 = vmax.f32 %v89, 0.0
  %v106 = vmax.f32 %v90, 0.0
  %v107 = vmax.f32 %v91, 0.0
  %v108 = vmax.f32 %v92, 0.0
  %v109 = vmax.f32 %v93, 0.0
  %v110 = vmax.f32 %v94, 0.0
  %v111 = vmax.f32 %v95, 0.0
  %v112 = vmax.f32 %v96, 0.0
  %v113 = vmax.f32 %v97, 0.0
  %v114 = vmax.f32 %v98, 0.0
  %v115 = vpack.c.bf16 %v100, %v99
  %v116 = vpack.c.bf16 %v102, %v101
  %v117 = vpack.c.bf16 %v104, %v103
  %v118 = vpack.c.bf16 %v106, %v105
  %v119 = vpack.c.bf16 %v108, %v107
  %v120 = vpack.c.bf16 %v110, %v109
  %v121 = vpack.c.bf16 %v112, %v111
  %v122 = vpack.c.bf16 %v114, %v113
  %v123 = vld [vmem:[%s3] sm:$0xf]
  %v124 = vld [vmem:[%s3 + $0x4] sm:$0xf]
  %v125 = vld [vmem:[%s3 + $0x8] sm:$0xf]
  %v126 = vld [vmem:[%s3 + $0xc] sm:$0xf]
  %v127 = vld [vmem:[%s3 + $0x10] sm:$0xf]
  %v128 = vld [vmem:[%s3 + $0x14] sm:$0xf]
  %v129 = vld [vmem:[%s3 + $0x18] sm:$0xf]
  %v130 = vld [vmem:[%s3 + $0x1c] sm:$0xf]
  %v131 = vld [vmem:[%s3 + $0x20] sm:$0xf]
  %v132 = vld [vmem:[%s3 + $0x24] sm:$0xf]
  %v133 = vld [vmem:[%s3 + $0x28] sm:$0xf]
  %v134 = vld [vmem:[%s3 + $0x2c] sm:$0xf]
  %v135 = vld [vmem:[%s3 + $0x30] sm:$0xf]
  %v136 = vld [vmem:[%s3 + $0x34] sm:$0xf]
  %v137 = vld [vmem:[%s3 + $0x38] sm:$0xf]
  %v138 = vld [vmem:[%s3 + $0x3c] sm:$0xf]
  %v155 = vunpack.c.l.b16 %v123
  %v156 = vunpack.c.l.b16 %v124
  %v157 = vunpack.c.l.b16 %v125
  %v158 = vunpack.c.l.b16 %v126
  %v159 = vunpack.c.l.b16 %v127
  %v160 = vunpack.c.l.b16 %v128
  %v161 = vunpack.c.l.b16 %v129
  %v162 = vunpack.c.l.b16 %v130
  %v163 = vunpack.c.l.b16 %v131
  %v164 = vunpack.c.l.b16 %v132
  %v165 = vunpack.c.l.b16 %v133
  %v166 = vunpack.c.l.b16 %v134
  %v167 = vunpack.c.l.b16 %v135
  %v168 = vunpack.c.l.b16 %v136
  %v169 = vunpack.c.l.b16 %v137
  %v170 = vunpack.c.l.b16 %v138
  %v171 = vpack.c.b16 %v156, %v155
  %v172 = vpack.c.b16 %v158, %v157
  %v173 = vpack.c.b16 %v160, %v159
  %v174 = vpack.c.b16 %v162, %v161
  %v175 = vpack.c.b16 %v164, %v163
  %v176 = vpack.c.b16 %v166, %v165
  %v177 = vpack.c.b16 %v168, %v167
  %v178 = vpack.c.b16 %v170, %v169
  %187 = vmatprep.subr.bf16.mxu0 0
  %188 = vmatpush1.bf16.msra.mxu0 %v178
  %189 = vmatprep.subr.bf16.mxu0 0
  %190 = vmatpush1.bf16.msra.mxu0 %v177
  %191 = vmatprep.subr.bf16.mxu0 0
  %192 = vmatpush1.bf16.msra.mxu0 %v176
  %193 = vmatprep.subr.bf16.mxu0 0
  %194 = vmatpush1.bf16.msra.mxu0 %v175
  %195 = vmatprep.subr.bf16.mxu0 0
  %196 = vmatpush1.bf16.msra.mxu0 %v174
  %197 = vmatprep.subr.bf16.mxu0 0
  %198 = vmatpush1.bf16.msra.mxu0 %v173
  %199 = vmatprep.subr.bf16.mxu0 0
  %200 = vmatpush1.bf16.msra.mxu0 %v172
  %201 = vmatprep.subr.bf16.mxu0 0
  %202 = vmatpush1.bf16.msra.mxu0 %v171
  %203 = vmatprep.subr.bf16.mxu0 0
  %204 = vmatpush2.bf16.msra.mxu0 0
  %205 = vmatprep.subr.bf16.mxu0 0
  %206 = vmatpush2.bf16.msra.mxu0 0
  %207 = vmatprep.subr.bf16.mxu0 0
  %208 = vmatpush2.bf16.msra.mxu0 0
  %209 = vmatprep.subr.bf16.mxu0 0
  %210 = vmatpush2.bf16.msra.mxu0 0
  %211 = vmatprep.subr.bf16.mxu0 0
  %212 = vmatpush2.bf16.msra.mxu0 0
  %213 = vmatprep.subr.bf16.mxu0 0
  %214 = vmatpush2.bf16.msra.mxu0 0
  %215 = vmatprep.subr.bf16.mxu0 0
  %216 = vmatpush2.bf16.msra.mxu0 0
  %217 = vmatprep.subr.bf16.mxu0 0
  %218 = vmatpush2.bf16.msra.mxu0 0
  %219 = vmatprep.mubr.bf16.mxu0 0
  %220 = vmatmul.mubr.bf16.gmra.mxu0 %v115
  %v221 = vpop.f32.mrf.mxu0
  %v222 = vadd.f32 0.0, %v221
  %v223 = vpop.f32.mrf.mxu0
  %v224 = vpop.f32.mrf.mxu0
  %v225 = vadd.f32 0.0, %v224
  %v226 = vpop.f32.mrf.mxu0
  %227 = vmatprep.mubr.bf16.mxu0 0
  %228 = vmatmul.mubr.bf16.gmra.mxu0 %v116
  %v229 = vpop.f32.mrf.mxu0
  %v230 = vadd.f32 0.0, %v229
  %v231 = vpop.f32.mrf.mxu0
  %v232 = vpop.f32.mrf.mxu0
  %v233 = vadd.f32 0.0, %v232
  %v234 = vpop.f32.mrf.mxu0
  %235 = vmatprep.mubr.bf16.mxu0 0
  %236 = vmatmul.mubr.bf16.gmra.mxu0 %v117
  %v237 = vpop.f32.mrf.mxu0
  %v238 = vadd.f32 0.0, %v237
  %v239 = vpop.f32.mrf.mxu0
  %v240 = vpop.f32.mrf.mxu0
  %v241 = vadd.f32 0.0, %v240
  %v242 = vpop.f32.mrf.mxu0
  %243 = vmatprep.mubr.bf16.mxu0 0
  %244 = vmatmul.mubr.bf16.gmra.mxu0 %v118
  %v245 = vpop.f32.mrf.mxu0
  %v246 = vadd.f32 0.0, %v245
  %v247 = vpop.f32.mrf.mxu0
  %v248 = vpop.f32.mrf.mxu0
  %v249 = vadd.f32 0.0, %v248
  %v250 = vpop.f32.mrf.mxu0
  %251 = vmatprep.mubr.bf16.mxu0 0
  %252 = vmatmul.mubr.bf16.gmra.mxu0 %v119
  %v253 = vpop.f32.mrf.mxu0
  %v254 = vadd.f32 0.0, %v253
  %v255 = vpop.f32.mrf.mxu0
  %v256 = vpop.f32.mrf.mxu0
  %v257 = vadd.f32 0.0, %v256
  %v258 = vpop.f32.mrf.mxu0
  %259 = vmatprep.mubr.bf16.mxu0 0
  %260 = vmatmul.mubr.bf16.gmra.mxu0 %v120
  %v261 = vpop.f32.mrf.mxu0
  %v262 = vadd.f32 0.0, %v261
  %v263 = vpop.f32.mrf.mxu0
  %v264 = vpop.f32.mrf.mxu0
  %v265 = vadd.f32 0.0, %v264
  %v266 = vpop.f32.mrf.mxu0
  %267 = vmatprep.mubr.bf16.mxu0 0
  %268 = vmatmul.mubr.bf16.gmra.mxu0 %v121
  %v269 = vpop.f32.mrf.mxu0
  %v270 = vadd.f32 0.0, %v269
  %v271 = vpop.f32.mrf.mxu0
  %v272 = vpop.f32.mrf.mxu0
  %v273 = vadd.f32 0.0, %v272
  %v274 = vpop.f32.mrf.mxu0
  %275 = vmatprep.mubr.bf16.mxu0 0
  %276 = vmatmul.mubr.bf16.gmra.mxu0 %v122
  %v277 = vpop.f32.mrf.mxu0
  %v278 = vadd.f32 0.0, %v277
  %v279 = vpop.f32.mrf.mxu0
  %v280 = vpop.f32.mrf.mxu0
  %v281 = vadd.f32 0.0, %v280
  %v282 = vpop.f32.mrf.mxu0
  %283 = vdwg.mxu0
  %v284 = vpack.c.bf16 %v225, %v222
  %v285 = vpack.c.bf16 %v233, %v230
  %v286 = vpack.c.bf16 %v241, %v238
  %v287 = vpack.c.bf16 %v249, %v246
  %v288 = vpack.c.bf16 %v257, %v254
  %v289 = vpack.c.bf16 %v265, %v262
  %v290 = vpack.c.bf16 %v273, %v270
  %v291 = vpack.c.bf16 %v281, %v278
  %v300 = vunpack.c.l.b16 %v284
  %v301 = vunpack.c.h.b16 %v284
  %v302 = vunpack.c.l.b16 %v285
  %v303 = vunpack.c.h.b16 %v285
  %v304 = vunpack.c.l.b16 %v286
  %v305 = vunpack.c.h.b16 %v286
  %v306 = vunpack.c.l.b16 %v287
  %v307 = vunpack.c.h.b16 %v287
  %v308 = vunpack.c.l.b16 %v288
  %v309 = vunpack.c.h.b16 %v288
  %v310 = vunpack.c.l.b16 %v289
  %v311 = vunpack.c.h.b16 %v289
  %v312 = vunpack.c.l.b16 %v290
  %v313 = vunpack.c.h.b16 %v290
  %v314 = vunpack.c.l.b16 %v291
  %v315 = vunpack.c.h.b16 %v291
  %v316 = vpack.c.b16 %v300, %v300
  %v317 = vpack.c.b16 %v301, %v301
  %v318 = vpack.c.b16 %v302, %v302
  %v319 = vpack.c.b16 %v303, %v303
  %v320 = vpack.c.b16 %v304, %v304
  %v321 = vpack.c.b16 %v305, %v305
  %v322 = vpack.c.b16 %v306, %v306
  %v323 = vpack.c.b16 %v307, %v307
  %v324 = vpack.c.b16 %v308, %v308
  %v325 = vpack.c.b16 %v309, %v309
  %v326 = vpack.c.b16 %v310, %v310
  %v327 = vpack.c.b16 %v311, %v311
  %v328 = vpack.c.b16 %v312, %v312
  %v329 = vpack.c.b16 %v313, %v313
  %v330 = vpack.c.b16 %v314, %v314
  %v331 = vpack.c.b16 %v315, %v315
  %348 = vst [vmem:[%s4] sm:$0xf] %v316
  %349 = vst [vmem:[%s4 + $0x4] sm:$0xf] %v317
  %350 = vst [vmem:[%s4 + $0x8] sm:$0xf] %v318
  %351 = vst [vmem:[%s4 + $0xc] sm:$0xf] %v319
  %352 = vst [vmem:[%s4 + $0x10] sm:$0xf] %v320
  %353 = vst [vmem:[%s4 + $0x14] sm:$0xf] %v321
  %354 = vst [vmem:[%s4 + $0x18] sm:$0xf] %v322
  %355 = vst [vmem:[%s4 + $0x1c] sm:$0xf] %v323
  %356 = vst [vmem:[%s4 + $0x20] sm:$0xf] %v324
  %357 = vst [vmem:[%s4 + $0x24] sm:$0xf] %v325
  %358 = vst [vmem:[%s4 + $0x28] sm:$0xf] %v326
  %359 = vst [vmem:[%s4 + $0x2c] sm:$0xf] %v327
  %360 = vst [vmem:[%s4 + $0x30] sm:$0xf] %v328
  %361 = vst [vmem:[%s4 + $0x34] sm:$0xf] %v329
  %362 = vst [vmem:[%s4 + $0x38] sm:$0xf] %v330
  %363 = vst [vmem:[%s4 + $0x3c] sm:$0xf] %v331
  %v364 = vadd.f32 %v222, %v225
  %v365 = vadd.f32 %v364, %v230
  %v366 = vadd.f32 %v365, %v233
  %v367 = vadd.f32 %v366, %v238
  %v368 = vadd.f32 %v367, %v241
  %v369 = vadd.f32 %v368, %v246
  %v370 = vadd.f32 %v369, %v249
  %v371 = vadd.f32 %v370, %v254
  %v372 = vadd.f32 %v371, %v257
  %v373 = vadd.f32 %v372, %v262
  %v374 = vadd.f32 %v373, %v265
  %v375 = vadd.f32 %v374, %v270
  %v376 = vadd.f32 %v375, %v273
  %v377 = vadd.f32 %v376, %v278
  %v378 = vadd.f32 %v377, %v281
  %v379 = vrot.slane %v378, 4
  %v380 = vadd.f32 %v378, %v379
  %v381 = vrot.slane %v380, 2
  %v382 = vadd.f32 %v380, %v381
  %v383 = vrot.slane %v382, 1
  %v384 = vadd.f32 %v382, %v383
  %385 = vst [vmem:[%s5] sm:$0x1] %v384
  %v386 = vmul.f32 %v222, %v222
  %v387 = vmul.f32 %v225, %v225
  %v388 = vmul.f32 %v230, %v230
  %v389 = vmul.f32 %v233, %v233
  %v390 = vmul.f32 %v238, %v238
  %v391 = vmul.f32 %v241, %v241
  %v392 = vmul.f32 %v246, %v246
  %v393 = vmul.f32 %v249, %v249
  %v394 = vmul.f32 %v254, %v254
  %v395 = vmul.f32 %v257, %v257
  %v396 = vmul.f32 %v262, %v262
  %v397 = vmul.f32 %v265, %v265
  %v398 = vmul.f32 %v270, %v270
  %v399 = vmul.f32 %v273, %v273
  %v400 = vmul.f32 %v278, %v278
  %v401 = vmul.f32 %v281, %v281
  %v402 = vadd.f32 %v386, %v387
  %v403 = vadd.f32 %v402, %v388
  %v404 = vadd.f32 %v403, %v389
  %v405 = vadd.f32 %v404, %v390
  %v406 = vadd.f32 %v405, %v391
  %v407 = vadd.f32 %v406, %v392
  %v408 = vadd.f32 %v407, %v393
  %v409 = vadd.f32 %v408, %v394
  %v410 = vadd.f32 %v409, %v395
  %v411 = vadd.f32 %v410, %v396
  %v412 = vadd.f32 %v411, %v397
  %v413 = vadd.f32 %v412, %v398
  %v414 = vadd.f32 %v413, %v399
  %v415 = vadd.f32 %v414, %v400
  %v416 = vadd.f32 %v415, %v401
  %v417 = vrot.slane %v416, 4
  %v418 = vadd.f32 %v416, %v417
  %v419 = vrot.slane %v418, 2
  %v420 = vadd.f32 %v418, %v419
  %v421 = vrot.slane %v420, 1
  %v422 = vadd.f32 %v420, %v421
  %423 = vst [vmem:[%s6] sm:$0x1] %v422
  // Predicated region
  $region18: #{block_forward.7} parent=0 // pred_check
    _
  $region19: #{block_forward.7} parent=0 // pred_check_branch
    %425 = sbr.rel (0) target = $region21
  $region20: #{block_forward.7} parent=0 // pred_region
    _
  $region21: #{block_forward.7} parent=0 // pred_fallthru
    _
  // Predicated region
  $region22: #{block_forward.7} parent=0 // pred_check
    _
  $region23: #{block_forward.7} parent=0 // pred_check_branch
    %427 = sbr.rel (0) target = $region25
  $region24: #{block_forward.7} parent=0 // pred_region
    _
  $region25: #{block_forward.7} parent=0 // pred_fallthru
    _
  // Predicated region
  $region26: #{block_forward.7} parent=0 // pred_check
    _
  $region27: #{block_forward.7} parent=0 // pred_check_branch
    %429 = sbr.rel (0) target = $region29
  $region28: #{block_forward.7} parent=0 // pred_region
    _
  $region29: #{block_forward.7} parent=0 // pred_fallthru
    _
  // Predicated region
  $region30: #{block_forward.7} parent=0 // pred_check
    _
  $region31: #{block_forward.7} parent=0 // pred_check_branch
    %431 = sbr.rel (0) target = $region33
  $region32: #{block_forward.7} parent=0 // pred_region
    _
  $region33: #{block_forward.7} parent=0 // pred_fallthru
    _
  // Predicated region
  $region34: #{block_forward.7} parent=0 // pred_check
    _
  $region35: #{block_forward.7} parent=0 // pred_check_branch
    %433 = sbr.rel (0) target = $region37
  $region36: #{block_forward.7} parent=0 // pred_region
    _
  $region37: #{block_forward.7} parent=0 // pred_fallthru
    _
  // Predicated region
  $region38: #{block_forward.7} parent=0 // pred_check
    _
  $region39: #{block_forward.7} parent=0 // pred_check_branch
    %435 = sbr.rel (0) target = $region41
  $region40: #{block_forward.7} parent=0 // pred_region
    _
  $region41: #{block_forward.7} parent=0 // pred_fallthru
    _

// kernel: block_forward.5
$region0: #{block_forward.5}
  #allocation0 [shape = 'u32[]', space=smem, size = 0x4, offset = 0x4, fixed_abs, tag = 'smem constant byte address 0x4 - core index']
  #allocation1 [shape = 'u32[144,128]{1,0:T(1,128)}', space=vmem, size = 0x12000, scoped, tag = 'internal scratch']
  %s0 = inlined_call_operand.vmem [shape: bf16[512,128], index: 0, kind: input, shape index: {}]
  %s1 = inlined_call_operand.vmem [shape: bf16[128,128], index: 1, kind: input, shape index: {}]
  %s2 = inlined_call_operand.vmem [shape: bf16[512,128], index: 2, kind: output, shape index: {0}]
  %s3 = inlined_call_operand.vmem [shape: f32[1,1,128], index: 3, kind: output, shape index: {1}]
  %s4 = inlined_call_operand.vmem [shape: f32[1,1,128], index: 4, kind: output, shape index: {2}]
  %5 = xla_tuple %s2, %s3, %s4
  %s6 = sld [smem:[#allocation0]]
  $region34: #{block_forward.5} parent=0
    _
  %s8 = ssub.s32 1, %s6
  %s9 = scalar_select 0, %s8, %s6
  // Predicated region
  $region2: #{block_forward.5} parent=0 // pred_check
    _
  $region3: #{block_forward.5} parent=0 // pred_check_branch
    %11 = sbr.rel (0) target = $region5
  $region4: #{block_forward.5} parent=0 // pred_region
    _
  $region5: #{block_forward.5} parent=0 // pred_fallthru
    _
  // Predicated region
  $region6: #{block_forward.5} parent=0 // pred_check
    _
  $region7: #{block_forward.5} parent=0 // pred_check_branch
    %13 = sbr.rel (0) target = $region9
  $region8: #{block_forward.5} parent=0 // pred_region
    _
  $region9: #{block_forward.5} parent=0 // pred_fallthru
    _
  %v15 = vld [vmem:[%s0] sm:$0xf]
  %v16 = vld [vmem:[%s0 + $0x4] sm:$0xf]
  %v17 = vld [vmem:[%s0 + $0x8] sm:$0xf]
  %v18 = vld [vmem:[%s0 + $0xc] sm:$0xf]
  %v19 = vld [vmem:[%s0 + $0x10] sm:$0xf]
  %v20 = vld [vmem:[%s0 + $0x14] sm:$0xf]
  %v21 = vld [vmem:[%s0 + $0x18] sm:$0xf]
  %v22 = vld [vmem:[%s0 + $0x1c] sm:$0xf]
  %v23 = vld [vmem:[%s0 + $0x20] sm:$0xf]
  %v24 = vld [vmem:[%s0 + $0x24] sm:$0xf]
  %v25 = vld [vmem:[%s0 + $0x28] sm:$0xf]
  %v26 = vld [vmem:[%s0 + $0x2c] sm:$0xf]
  %v27 = vld [vmem:[%s0 + $0x30] sm:$0xf]
  %v28 = vld [vmem:[%s0 + $0x34] sm:$0xf]
  %v29 = vld [vmem:[%s0 + $0x38] sm:$0xf]
  %v30 = vld [vmem:[%s0 + $0x3c] sm:$0xf]
  %v31 = vld [vmem:[%s0 + $0x40] sm:$0xf]
  %v32 = vld [vmem:[%s0 + $0x44] sm:$0xf]
  %v33 = vld [vmem:[%s0 + $0x48] sm:$0xf]
  %v34 = vld [vmem:[%s0 + $0x4c] sm:$0xf]
  %v35 = vld [vmem:[%s0 + $0x50] sm:$0xf]
  %v36 = vld [vmem:[%s0 + $0x54] sm:$0xf]
  %v37 = vld [vmem:[%s0 + $0x58] sm:$0xf]
  %v38 = vld [vmem:[%s0 + $0x5c] sm:$0xf]
  %v39 = vld [vmem:[%s0 + $0x60] sm:$0xf]
  %v40 = vld [vmem:[%s0 + $0x64] sm:$0xf]
  %v41 = vld [vmem:[%s0 + $0x68] sm:$0xf]
  %v42 = vld [vmem:[%s0 + $0x6c] sm:$0xf]
  %v43 = vld [vmem:[%s0 + $0x70] sm:$0xf]
  %v44 = vld [vmem:[%s0 + $0x74] sm:$0xf]
  %v45 = vld [vmem:[%s0 + $0x78] sm:$0xf]
  %v46 = vld [vmem:[%s0 + $0x7c] sm:$0xf]
  %v47 = vld [vmem:[%s0 + $0x80] sm:$0xf]
  %v48 = vld [vmem:[%s0 + $0x84] sm:$0xf]
  %v49 = vld [vmem:[%s0 + $0x88] sm:$0xf]
  %v50 = vld [vmem:[%s0 + $0x8c] sm:$0xf]
  %v51 = vld [vmem:[%s0 + $0x90] sm:$0xf]
  %v52 = vld [vmem:[%s0 + $0x94] sm:$0xf]
  %v53 = vld [vmem:[%s0 + $0x98] sm:$0xf]
  %v54 = vld [vmem:[%s0 + $0x9c] sm:$0xf]
  %v55 = vld [vmem:[%s0 + $0xa0] sm:$0xf]
  %v56 = vld [vmem:[%s0 + $0xa4] sm:$0xf]
  %v57 = vld [vmem:[%s0 + $0xa8] sm:$0xf]
  %v58 = vld [vmem:[%s0 + $0xac] sm:$0xf]
  %v59 = vld [vmem:[%s0 + $0xb0] sm:$0xf]
  %v60 = vld [vmem:[%s0 + $0xb4] sm:$0xf]
  %v61 = vld [vmem:[%s0 + $0xb8] sm:$0xf]
  %v62 = vld [vmem:[%s0 + $0xbc] sm:$0xf]
  %v63 = vld [vmem:[%s0 + $0xc0] sm:$0xf]
  %v64 = vld [vmem:[%s0 + $0xc4] sm:$0xf]
  %v65 = vld [vmem:[%s0 + $0xc8] sm:$0xf]
  %v66 = vld [vmem:[%s0 + $0xcc] sm:$0xf]
  %v67 = vld [vmem:[%s0 + $0xd0] sm:$0xf]
  %v68 = vld [vmem:[%s0 + $0xd4] sm:$0xf]
  %v69 = vld [vmem:[%s0 + $0xd8] sm:$0xf]
  %v70 = vld [vmem:[%s0 + $0xdc] sm:$0xf]
  %v71 = vld [vmem:[%s0 + $0xe0] sm:$0xf]
  %v72 = vld [vmem:[%s0 + $0xe4] sm:$0xf]
  %v73 = vld [vmem:[%s0 + $0xe8] sm:$0xf]
  %v74 = vld [vmem:[%s0 + $0xec] sm:$0xf]
  %v75 = vld [vmem:[%s0 + $0xf0] sm:$0xf]
  %v76 = vld [vmem:[%s0 + $0xf4] sm:$0xf]
  %v77 = vld [vmem:[%s0 + $0xf8] sm:$0xf]
  %v78 = vld [vmem:[%s0 + $0xfc] sm:$0xf]
  %v79 = vld [vmem:[%s1] sm:$0xf]
  %v80 = vld [vmem:[%s1 + $0x4] sm:$0xf]
  %v81 = vld [vmem:[%s1 + $0x8] sm:$0xf]
  %v82 = vld [vmem:[%s1 + $0xc] sm:$0xf]
  %v83 = vld [vmem:[%s1 + $0x10] sm:$0xf]
  %v84 = vld [vmem:[%s1 + $0x14] sm:$0xf]
  %v85 = vld [vmem:[%s1 + $0x18] sm:$0xf]
  %v86 = vld [vmem:[%s1 + $0x1c] sm:$0xf]
  %v87 = vld [vmem:[%s1 + $0x20] sm:$0xf]
  %v88 = vld [vmem:[%s1 + $0x24] sm:$0xf]
  %v89 = vld [vmem:[%s1 + $0x28] sm:$0xf]
  %v90 = vld [vmem:[%s1 + $0x2c] sm:$0xf]
  %v91 = vld [vmem:[%s1 + $0x30] sm:$0xf]
  %v92 = vld [vmem:[%s1 + $0x34] sm:$0xf]
  %v93 = vld [vmem:[%s1 + $0x38] sm:$0xf]
  %v94 = vld [vmem:[%s1 + $0x3c] sm:$0xf]
  %v159 = vunpack.c.l.b16 %v15
  %v160 = vunpack.c.l.b16 %v16
  %v161 = vunpack.c.l.b16 %v17
  %v162 = vunpack.c.l.b16 %v18
  %v163 = vunpack.c.l.b16 %v19
  %v164 = vunpack.c.l.b16 %v20
  %v165 = vunpack.c.l.b16 %v21
  %v166 = vunpack.c.l.b16 %v22
  %v167 = vunpack.c.l.b16 %v23
  %v168 = vunpack.c.l.b16 %v24
  %v169 = vunpack.c.l.b16 %v25
  %v170 = vunpack.c.l.b16 %v26
  %v171 = vunpack.c.l.b16 %v27
  %v172 = vunpack.c.l.b16 %v28
  %v173 = vunpack.c.l.b16 %v29
  %v174 = vunpack.c.l.b16 %v30
  %v175 = vunpack.c.l.b16 %v31
  %v176 = vunpack.c.l.b16 %v32
  %v177 = vunpack.c.l.b16 %v33
  %v178 = vunpack.c.l.b16 %v34
  %v179 = vunpack.c.l.b16 %v35
  %v180 = vunpack.c.l.b16 %v36
  %v181 = vunpack.c.l.b16 %v37
  %v182 = vunpack.c.l.b16 %v38
  %v183 = vunpack.c.l.b16 %v39
  %v184 = vunpack.c.l.b16 %v40
  %v185 = vunpack.c.l.b16 %v41
  %v186 = vunpack.c.l.b16 %v42
  %v187 = vunpack.c.l.b16 %v43
  %v188 = vunpack.c.l.b16 %v44
  %v189 = vunpack.c.l.b16 %v45
  %v190 = vunpack.c.l.b16 %v46
  %v191 = vunpack.c.l.b16 %v47
  %v192 = vunpack.c.l.b16 %v48
  %v193 = vunpack.c.l.b16 %v49
  %v194 = vunpack.c.l.b16 %v50
  %v195 = vunpack.c.l.b16 %v51
  %v196 = vunpack.c.l.b16 %v52
  %v197 = vunpack.c.l.b16 %v53
  %v198 = vunpack.c.l.b16 %v54
  %v199 = vunpack.c.l.b16 %v55
  %v200 = vunpack.c.l.b16 %v56
  %v201 = vunpack.c.l.b16 %v57
  %v202 = vunpack.c.l.b16 %v58
  %v203 = vunpack.c.l.b16 %v59
  %v204 = vunpack.c.l.b16 %v60
  %v205 = vunpack.c.l.b16 %v61
  %v206 = vunpack.c.l.b16 %v62
  %v207 = vunpack.c.l.b16 %v63
  %v208 = vunpack.c.l.b16 %v64
  %v209 = vunpack.c.l.b16 %v65
  %v210 = vunpack.c.l.b16 %v66
  %v211 = vunpack.c.l.b16 %v67
  %v212 = vunpack.c.l.b16 %v68
  %v213 = vunpack.c.l.b16 %v69
  %v214 = vunpack.c.l.b16 %v70
  %v215 = vunpack.c.l.b16 %v71
  %v216 = vunpack.c.l.b16 %v72
  %v217 = vunpack.c.l.b16 %v73
  %v218 = vunpack.c.l.b16 %v74
  %v219 = vunpack.c.l.b16 %v75
  %v220 = vunpack.c.l.b16 %v76
  %v221 = vunpack.c.l.b16 %v77
  %v222 = vunpack.c.l.b16 %v78
  %v223 = vpack.c.b16 %v160, %v159
  %v224 = vpack.c.b16 %v162, %v161
  %v225 = vpack.c.b16 %v164, %v163
  %v226 = vpack.c.b16 %v166, %v165
  %v227 = vpack.c.b16 %v168, %v167
  %v228 = vpack.c.b16 %v170, %v169
  %v229 = vpack.c.b16 %v172, %v171
  %v230 = vpack.c.b16 %v174, %v173
  %v231 = vpack.c.b16 %v176, %v175
  %v232 = vpack.c.b16 %v178, %v177
  %v233 = vpack.c.b16 %v180, %v179
  %v234 = vpack.c.b16 %v182, %v181
  %v235 = vpack.c.b16 %v184, %v183
  %v236 = vpack.c.b16 %v186, %v185
  %v237 = vpack.c.b16 %v188, %v187
  %v238 = vpack.c.b16 %v190, %v189
  %v239 = vpack.c.b16 %v192, %v191
  %v240 = vpack.c.b16 %v194, %v193
  %v241 = vpack.c.b16 %v196, %v195
  %v242 = vpack.c.b16 %v198, %v197
  %v243 = vpack.c.b16 %v200, %v199
  %v244 = vpack.c.b16 %v202, %v201
  %v245 = vpack.c.b16 %v204, %v203
  %v246 = vpack.c.b16 %v206, %v205
  %v247 = vpack.c.b16 %v208, %v207
  %v248 = vpack.c.b16 %v210, %v209
  %v249 = vpack.c.b16 %v212, %v211
  %v250 = vpack.c.b16 %v214, %v213
  %v251 = vpack.c.b16 %v216, %v215
  %v252 = vpack.c.b16 %v218, %v217
  %v253 = vpack.c.b16 %v220, %v219
  %v254 = vpack.c.b16 %v222, %v221
  %v303 = vunpack.c.l.b16 %v79
  %v304 = vunpack.c.l.b16 %v80
  %v305 = vunpack.c.l.b16 %v81
  %v306 = vunpack.c.l.b16 %v82
  %v307 = vunpack.c.l.b16 %v83
  %v308 = vunpack.c.l.b16 %v84
  %v309 = vunpack.c.l.b16 %v85
  %v310 = vunpack.c.l.b16 %v86
  %v311 = vunpack.c.l.b16 %v87
  %v312 = vunpack.c.l.b16 %v88
  %v313 = vunpack.c.l.b16 %v89
  %v314 = vunpack.c.l.b16 %v90
  %v315 = vunpack.c.l.b16 %v91
  %v316 = vunpack.c.l.b16 %v92
  %v317 = vunpack.c.l.b16 %v93
  %v318 = vunpack.c.l.b16 %v94
  %v319 = vpack.c.b16 %v304, %v303
  %v320 = vpack.c.b16 %v306, %v305
  %v321 = vpack.c.b16 %v308, %v307
  %v322 = vpack.c.b16 %v310, %v309
  %v323 = vpack.c.b16 %v312, %v311
  %v324 = vpack.c.b16 %v314, %v313
  %v325 = vpack.c.b16 %v316, %v315
  %v326 = vpack.c.b16 %v318, %v317
  %335 = vmatprep.subr.bf16.mxu0 0
  %336 = vmatpush1.bf16.msra.mxu0 %v326
  %337 = vmatprep.subr.bf16.mxu0 0
  %338 = vmatpush1.bf16.msra.mxu0 %v325
  %339 = vmatprep.subr.bf16.mxu0 0
  %340 = vmatpush1.bf16.msra.mxu0 %v324
  %341 = vmatprep.subr.bf16.mxu0 0
  %342 = vmatpush1.bf16.msra.mxu0 %v323
  %343 = vmatprep.subr.bf16.mxu0 0
  %344 = vmatpush1.bf16.msra.mxu0 %v322
  %345 = vmatprep.subr.bf16.mxu0 0
  %346 = vmatpush1.bf16.msra.mxu0 %v321
  %347 = vmatprep.subr.bf16.mxu0 0
  %348 = vmatpush1.bf16.msra.mxu0 %v320
  %349 = vmatprep.subr.bf16.mxu0 0
  %350 = vmatpush1.bf16.msra.mxu0 %v319
  %351 = vmatprep.subr.bf16.mxu0 0
  %352 = vmatpush2.bf16.msra.mxu0 0
  %353 = vmatprep.subr.bf16.mxu0 0
  %354 = vmatpush2.bf16.msra.mxu0 0
  %355 = vmatprep.subr.bf16.mxu0 0
  %356 = vmatpush2.bf16.msra.mxu0 0
  %357 = vmatprep.subr.bf16.mxu0 0
  %358 = vmatpush2.bf16.msra.mxu0 0
  %359 = vmatprep.subr.bf16.mxu0 0
  %360 = vmatpush2.bf16.msra.mxu0 0
  %361 = vmatprep.subr.bf16.mxu0 0
  %362 = vmatpush2.bf16.msra.mxu0 0
  %363 = vmatprep.subr.bf16.mxu0 0
  %364 = vmatpush2.bf16.msra.mxu0 0
  %365 = vmatprep.subr.bf16.mxu0 0
  %366 = vmatpush2.bf16.msra.mxu0 0
  %367 = vmatprep.mubr.bf16.mxu0 0
  %368 = vmatmul.mubr.bf16.gmra.mxu0 %v223
  %v369 = vpop.f32.mrf.mxu0
  %v370 = vadd.f32 0.0, %v369
  %v371 = vpop.f32.mrf.mxu0
  %v372 = vpop.f32.mrf.mxu0
  %v373 = vadd.f32 0.0, %v372
  %v374 = vpop.f32.mrf.mxu0
  %375 = vmatprep.mubr.bf16.mxu0 0
  %376 = vmatmul.mubr.bf16.gmra.mxu0 %v224
  %v377 = vpop.f32.mrf.mxu0
  %v378 = vadd.f32 0.0, %v377
  %v379 = vpop.f32.mrf.mxu0
  %v380 = vpop.f32.mrf.mxu0
  %v381 = vadd.f32 0.0, %v380
  %v382 = vpop.f32.mrf.mxu0
  %383 = vmatprep.mubr.bf16.mxu0 0
  %384 = vmatmul.mubr.bf16.gmra.mxu0 %v225
  %v385 = vpop.f32.mrf.mxu0
  %v386 = vadd.f32 0.0, %v385
  %v387 = vpop.f32.mrf.mxu0
  %v388 = vpop.f32.mrf.mxu0
  %v389 = vadd.f32 0.0, %v388
  %v390 = vpop.f32.mrf.mxu0
  %391 = vmatprep.mubr.bf16.mxu0 0
  %392 = vmatmul.mubr.bf16.gmra.mxu0 %v226
  %v393 = vpop.f32.mrf.mxu0
  %v394 = vadd.f32 0.0, %v393
  %v395 = vpop.f32.mrf.mxu0
  %v396 = vpop.f32.mrf.mxu0
  %v397 = vadd.f32 0.0, %v396
  %v398 = vpop.f32.mrf.mxu0
  %399 = vmatprep.mubr.bf16.mxu0 0
  %400 = vmatmul.mubr.bf16.gmra.mxu0 %v227
  %v401 = vpop.f32.mrf.mxu0
  %v402 = vadd.f32 0.0, %v401
  %v403 = vpop.f32.mrf.mxu0
  %v404 = vpop.f32.mrf.mxu0
  %v405 = vadd.f32 0.0, %v404
  %v406 = vpop.f32.mrf.mxu0
  %407 = vmatprep.mubr.bf16.mxu0 0
  %408 = vmatmul.mubr.bf16.gmra.mxu0 %v228
  %v409 = vpop.f32.mrf.mxu0
  %v410 = vadd.f32 0.0, %v409
  %v411 = vpop.f32.mrf.mxu0
  %v412 = vpop.f32.mrf.mxu0
  %v413 = vadd.f32 0.0, %v412
  %v414 = vpop.f32.mrf.mxu0
  %415 = vmatprep.mubr.bf16.mxu0 0
  %416 = vmatmul.mubr.bf16.gmra.mxu0 %v229
  %v417 = vpop.f32.mrf.mxu0
  %v418 = vadd.f32 0.0, %v417
  %v419 = vpop.f32.mrf.mxu0
  %v420 = vpop.f32.mrf.mxu0
  %v421 = vadd.f32 0.0, %v420
  %v422 = vpop.f32.mrf.mxu0
  %423 = vmatprep.mubr.bf16.mxu0 0
  %424 = vmatmul.mubr.bf16.gmra.mxu0 %v230
  %v425 = vpop.f32.mrf.mxu0
  %v426 = vadd.f32 0.0, %v425
  %v427 = vpop.f32.mrf.mxu0
  %v428 = vpop.f32.mrf.mxu0
  %v429 = vadd.f32 0.0, %v428
  %v430 = vpop.f32.mrf.mxu0
  %431 = vmatprep.mubr.bf16.mxu0 0
  %432 = vmatmul.mubr.bf16.gmra.mxu0 %v231
  %v433 = vpop.f32.mrf.mxu0
  %v434 = vadd.f32 0.0, %v433
  %v435 = vpop.f32.mrf.mxu0
  %v436 = vpop.f32.mrf.mxu0
  %v437 = vadd.f32 0.0, %v436
  %v438 = vpop.f32.mrf.mxu0
  %439 = vmatprep.mubr.bf16.mxu0 0
  %440 = vmatmul.mubr.bf16.gmra.mxu0 %v232
  %v441 = vpop.f32.mrf.mxu0
  %v442 = vadd.f32 0.0, %v441
  %v443 = vpop.f32.mrf.mxu0
  %v444 = vpop.f32.mrf.mxu0
  %v445 = vadd.f32 0.0, %v444
  %v446 = vpop.f32.mrf.mxu0
  %447 = vmatprep.mubr.bf16.mxu0 0
  %448 = vmatmul.mubr.bf16.gmra.mxu0 %v233
  %v449 = vpop.f32.mrf.mxu0
  %v450 = vadd.f32 0.0, %v449
  %v451 = vpop.f32.mrf.mxu0
  %v452 = vpop.f32.mrf.mxu0
  %v453 = vadd.f32 0.0, %v452
  %v454 = vpop.f32.mrf.mxu0
  %455 = vmatprep.mubr.bf16.mxu0 0
  %456 = vmatmul.mubr.bf16.gmra.mxu0 %v234
  %v457 = vpop.f32.mrf.mxu0
  %v458 = vadd.f32 0.0, %v457
  %v459 = vpop.f32.mrf.mxu0
  %v460 = vpop.f32.mrf.mxu0
  %v461 = vadd.f32 0.0, %v460
  %v462 = vpop.f32.mrf.mxu0
  %463 = vmatprep.mubr.bf16.mxu0 0
  %464 = vmatmul.mubr.bf16.gmra.mxu0 %v235
  %v465 = vpop.f32.mrf.mxu0
  %v466 = vadd.f32 0.0, %v465
  %v467 = vpop.f32.mrf.mxu0
  %v468 = vpop.f32.mrf.mxu0
  %v469 = vadd.f32 0.0, %v468
  %v470 = vpop.f32.mrf.mxu0
  %471 = vmatprep.mubr.bf16.mxu0 0
  %472 = vmatmul.mubr.bf16.gmra.mxu0 %v236
  %v473 = vpop.f32.mrf.mxu0
  %v474 = vadd.f32 0.0, %v473
  %v475 = vpop.f32.mrf.mxu0
  %v476 = vpop.f32.mrf.mxu0
  %v477 = vadd.f32 0.0, %v476
  %v478 = vpop.f32.mrf.mxu0
  %479 = vmatprep.mubr.bf16.mxu0 0
  %480 = vmatmul.mubr.bf16.gmra.mxu0 %v237
  %v481 = vpop.f32.mrf.mxu0
  %v482 = vadd.f32 0.0, %v481
  %v483 = vpop.f32.mrf.mxu0
  %v484 = vpop.f32.mrf.mxu0
  %v485 = vadd.f32 0.0, %v484
  %v486 = vpop.f32.mrf.mxu0
  %487 = vmatprep.mubr.bf16.mxu0 0
  %488 = vmatmul.mubr.bf16.gmra.mxu0 %v238
  %v489 = vpop.f32.mrf.mxu0
  %v490 = vadd.f32 0.0, %v489
  %v491 = vpop.f32.mrf.mxu0
  %v492 = vpop.f32.mrf.mxu0
  %v493 = vadd.f32 0.0, %v492
  %v494 = vpop.f32.mrf.mxu0
  %495 = vmatprep.mubr.bf16.mxu0 0
  %496 = vmatmul.mubr.bf16.gmra.mxu0 %v239
  %v497 = vpop.f32.mrf.mxu0
  %v498 = vadd.f32 0.0, %v497
  %v499 = vpop.f32.mrf.mxu0
  %v500 = vpop.f32.mrf.mxu0
  %v501 = vadd.f32 0.0, %v500
  %v502 = vpop.f32.mrf.mxu0
  %503 = vmatprep.mubr.bf16.mxu0 0
  %504 = vmatmul.mubr.bf16.gmra.mxu0 %v240
  %v505 = vpop.f32.mrf.mxu0
  %v506 = vadd.f32 0.0, %v505
  %v507 = vpop.f32.mrf.mxu0
  %v508 = vpop.f32.mrf.mxu0
  %v509 = vadd.f32 0.0, %v508
  %v510 = vpop.f32.mrf.mxu0
  %511 = vmatprep.mubr.bf16.mxu0 0
  %512 = vmatmul.mubr.bf16.gmra.mxu0 %v241
  %v513 = vpop.f32.mrf.mxu0
  %v514 = vadd.f32 0.0, %v513
  %v515 = vpop.f32.mrf.mxu0
  %v516 = vpop.f32.mrf.mxu0
  %v517 = vadd.f32 0.0, %v516
  %v518 = vpop.f32.mrf.mxu0
  %519 = vmatprep.mubr.bf16.mxu0 0
  %520 = vmatmul.mubr.bf16.gmra.mxu0 %v242
  %v521 = vpop.f32.mrf.mxu0
  %v522 = vadd.f32 0.0, %v521
  %v523 = vpop.f32.mrf.mxu0
  %v524 = vpop.f32.mrf.mxu0
  %v525 = vadd.f32 0.0, %v524
  %v526 = vpop.f32.mrf.mxu0
  %527 = vmatprep.mubr.bf16.mxu0 0
  %528 = vmatmul.mubr.bf16.gmra.mxu0 %v243
  %v529 = vpop.f32.mrf.mxu0
  %v530 = vadd.f32 0.0, %v529
  %v531 = vpop.f32.mrf.mxu0
  %v532 = vpop.f32.mrf.mxu0
  %v533 = vadd.f32 0.0, %v532
  %v534 = vpop.f32.mrf.mxu0
  %535 = vmatprep.mubr.bf16.mxu0 0
  %536 = vmatmul.mubr.bf16.gmra.mxu0 %v244
  %v537 = vpop.f32.mrf.mxu0
  %v538 = vadd.f32 0.0, %v537
  %v539 = vpop.f32.mrf.mxu0
  %v540 = vpop.f32.mrf.mxu0
  %v541 = vadd.f32 0.0, %v540
  %v542 = vpop.f32.mrf.mxu0
  %543 = vmatprep.mubr.bf16.mxu0 0
  %544 = vmatmul.mubr.bf16.gmra.mxu0 %v245
  %v545 = vpop.f32.mrf.mxu0
  %v546 = vadd.f32 0.0, %v545
  %v547 = vpop.f32.mrf.mxu0
  %v548 = vpop.f32.mrf.mxu0
  %v549 = vadd.f32 0.0, %v548
  %v550 = vpop.f32.mrf.mxu0
  %551 = vmatprep.mubr.bf16.mxu0 0
  %552 = vmatmul.mubr.bf16.gmra.mxu0 %v246
  %v553 = vpop.f32.mrf.mxu0
  %v554 = vadd.f32 0.0, %v553
  %v555 = vpop.f32.mrf.mxu0
  %v556 = vpop.f32.mrf.mxu0
  %v557 = vadd.f32 0.0, %v556
  %v558 = vpop.f32.mrf.mxu0
  %559 = vmatprep.mubr.bf16.mxu0 0
  %560 = vmatmul.mubr.bf16.gmra.mxu0 %v247
  %v561 = vpop.f32.mrf.mxu0
  %v562 = vadd.f32 0.0, %v561
  %v563 = vpop.f32.mrf.mxu0
  %v564 = vpop.f32.mrf.mxu0
  %v565 = vadd.f32 0.0, %v564
  %v566 = vpop.f32.mrf.mxu0
  %567 = vmatprep.mubr.bf16.mxu0 0
  %568 = vmatmul.mubr.bf16.gmra.mxu0 %v248
  %v569 = vpop.f32.mrf.mxu0
  %v570 = vadd.f32 0.0, %v569
  %v571 = vpop.f32.mrf.mxu0
  %v572 = vpop.f32.mrf.mxu0
  %v573 = vadd.f32 0.0, %v572
  %v574 = vpop.f32.mrf.mxu0
  %575 = vmatprep.mubr.bf16.mxu0 0
  %576 = vmatmul.mubr.bf16.gmra.mxu0 %v249
  %v577 = vpop.f32.mrf.mxu0
  %v578 = vadd.f32 0.0, %v577
  %v579 = vpop.f32.mrf.mxu0
  %v580 = vpop.f32.mrf.mxu0
  %v581 = vadd.f32 0.0, %v580
  %v582 = vpop.f32.mrf.mxu0
  %583 = vmatprep.mubr.bf16.mxu0 0
  %584 = vmatmul.mubr.bf16.gmra.mxu0 %v250
  %v585 = vpop.f32.mrf.mxu0
  %v586 = vadd.f32 0.0, %v585
  %v587 = vpop.f32.mrf.mxu0
  %v588 = vpop.f32.mrf.mxu0
  %v589 = vadd.f32 0.0, %v588
  %v590 = vpop.f32.mrf.mxu0
  %591 = vmatprep.mubr.bf16.mxu0 0
  %592 = vmatmul.mubr.bf16.gmra.mxu0 %v251
  %v593 = vpop.f32.mrf.mxu0
  %v594 = vadd.f32 0.0, %v593
  %v595 = vpop.f32.mrf.mxu0
  %v596 = vpop.f32.mrf.mxu0
  %v597 = vadd.f32 0.0, %v596
  %v598 = vpop.f32.mrf.mxu0
  %599 = vmatprep.mubr.bf16.mxu0 0
  %600 = vmatmul.mubr.bf16.gmra.mxu0 %v252
  %v601 = vpop.f32.mrf.mxu0
  %v602 = vadd.f32 0.0, %v601
  %v603 = vpop.f32.mrf.mxu0
  %v604 = vpop.f32.mrf.mxu0
  %v605 = vadd.f32 0.0, %v604
  %v606 = vpop.f32.mrf.mxu0
  %607 = vmatprep.mubr.bf16.mxu0 0
  %608 = vmatmul.mubr.bf16.gmra.mxu0 %v253
  %v609 = vpop.f32.mrf.mxu0
  %v610 = vadd.f32 0.0, %v609
  %v611 = vpop.f32.mrf.mxu0
  %v612 = vpop.f32.mrf.mxu0
  %v613 = vadd.f32 0.0, %v612
  %v614 = vpop.f32.mrf.mxu0
  %615 = vmatprep.mubr.bf16.mxu0 0
  %616 = vmatmul.mubr.bf16.gmra.mxu0 %v254
  %v617 = vpop.f32.mrf.mxu0
  %v618 = vadd.f32 0.0, %v617
  %v619 = vpop.f32.mrf.mxu0
  %v620 = vpop.f32.mrf.mxu0
  %v621 = vadd.f32 0.0, %v620
  %v622 = vpop.f32.mrf.mxu0
  %623 = vdwg.mxu0
  %v624 = vpack.c.bf16 %v373, %v370
  %v625 = vpack.c.bf16 %v381, %v378
  %v626 = vpack.c.bf16 %v389, %v386
  %v627 = vpack.c.bf16 %v397, %v394
  %v628 = vpack.c.bf16 %v405, %v402
  %v629 = vpack.c.bf16 %v413, %v410
  %v630 = vpack.c.bf16 %v421, %v418
  %v631 = vpack.c.bf16 %v429, %v426
  %v632 = vpack.c.bf16 %v437, %v434
  %v633 = vpack.c.bf16 %v445, %v442
  %v634 = vpack.c.bf16 %v453, %v450
  %v635 = vpack.c.bf16 %v461, %v458
  %v636 = vpack.c.bf16 %v469, %v466
  %v637 = vpack.c.bf16 %v477, %v474
  %v638 = vpack.c.bf16 %v485, %v482
  %v639 = vpack.c.bf16 %v493, %v490
  %v640 = vpack.c.bf16 %v501, %v498
  %v641 = vpack.c.bf16 %v509, %v506
  %v642 = vpack.c.bf16 %v517, %v514
  %v643 = vpack.c.bf16 %v525, %v522
  %v644 = vpack.c.bf16 %v533, %v530
  %v645 = vpack.c.bf16 %v541, %v538
  %v646 = vpack.c.bf16 %v549, %v546
  %v647 = vpack.c.bf16 %v557, %v554
  %v648 = vpack.c.bf16 %v565, %v562
  %v649 = vpack.c.bf16 %v573, %v570
  %v650 = vpack.c.bf16 %v581, %v578
  %v651 = vpack.c.bf16 %v589, %v586
  %v652 = vpack.c.bf16 %v597, %v594
  %v653 = vpack.c.bf16 %v605, %v602
  %v654 = vpack.c.bf16 %v613, %v610
  %v655 = vpack.c.bf16 %v621, %v618
  %v688 = vunpack.c.l.b16 %v624
  %v689 = vunpack.c.h.b16 %v624
  %v690 = vunpack.c.l.b16 %v625
  %v691 = vunpack.c.h.b16 %v625
  %v692 = vunpack.c.l.b16 %v626
  %v693 = vunpack.c.h.b16 %v626
  %v694 = vunpack.c.l.b16 %v627
  %v695 = vunpack.c.h.b16 %v627
  %v696 = vunpack.c.l.b16 %v628
  %v697 = vunpack.c.h.b16 %v628
  %v698 = vunpack.c.l.b16 %v629
  %v699 = vunpack.c.h.b16 %v629
  %v700 = vunpack.c.l.b16 %v630
  %v701 = vunpack.c.h.b16 %v630
  %v702 = vunpack.c.l.b16 %v631
  %v703 = vunpack.c.h.b16 %v631
  %v704 = vunpack.c.l.b16 %v632
  %v705 = vunpack.c.h.b16 %v632
  %v706 = vunpack.c.l.b16 %v633
  %v707 = vunpack.c.h.b16 %v633
  %v708 = vunpack.c.l.b16 %v634
  %v709 = vunpack.c.h.b16 %v634
  %v710 = vunpack.c.l.b16 %v635
  %v711 = vunpack.c.h.b16 %v635
  %v712 = vunpack.c.l.b16 %v636
  %v713 = vunpack.c.h.b16 %v636
  %v714 = vunpack.c.l.b16 %v637
  %v715 = vunpack.c.h.b16 %v637
  %v716 = vunpack.c.l.b16 %v638
  %v717 = vunpack.c.h.b16 %v638
  %v718 = vunpack.c.l.b16 %v639
  %v719 = vunpack.c.h.b16 %v639
  %v720 = vunpack.c.l.b16 %v640
  %v721 = vunpack.c.h.b16 %v640
  %v722 = vunpack.c.l.b16 %v641
  %v723 = vunpack.c.h.b16 %v641
  %v724 = vunpack.c.l.b16 %v642
  %v725 = vunpack.c.h.b16 %v642
  %v726 = vunpack.c.l.b16 %v643
  %v727 = vunpack.c.h.b16 %v643
  %v728 = vunpack.c.l.b16 %v644
  %v729 = vunpack.c.h.b16 %v644
  %v730 = vunpack.c.l.b16 %v645
  %v731 = vunpack.c.h.b16 %v645
  %v732 = vunpack.c.l.b16 %v646
  %v733 = vunpack.c.h.b16 %v646
  %v734 = vunpack.c.l.b16 %v647
  %v735 = vunpack.c.h.b16 %v647
  %v736 = vunpack.c.l.b16 %v648
  %v737 = vunpack.c.h.b16 %v648
  %v738 = vunpack.c.l.b16 %v649
  %v739 = vunpack.c.h.b16 %v649
  %v740 = vunpack.c.l.b16 %v650
  %v741 = vunpack.c.h.b16 %v650
  %v742 = vunpack.c.l.b16 %v651
  %v743 = vunpack.c.h.b16 %v651
  %v744 = vunpack.c.l.b16 %v652
  %v745 = vunpack.c.h.b16 %v652
  %v746 = vunpack.c.l.b16 %v653
  %v747 = vunpack.c.h.b16 %v653
  %v748 = vunpack.c.l.b16 %v654
  %v749 = vunpack.c.h.b16 %v654
  %v750 = vunpack.c.l.b16 %v655
  %v751 = vunpack.c.h.b16 %v655
  %v752 = vpack.c.b16 %v688, %v688
  %v753 = vpack.c.b16 %v689, %v689
  %v754 = vpack.c.b16 %v690, %v690
  %v755 = vpack.c.b16 %v691, %v691
  %v756 = vpack.c.b16 %v692, %v692
  %v757 = vpack.c.b16 %v693, %v693
  %v758 = vpack.c.b16 %v694, %v694
  %v759 = vpack.c.b16 %v695, %v695
  %v760 = vpack.c.b16 %v696, %v696
  %v761 = vpack.c.b16 %v697, %v697
  %v762 = vpack.c.b16 %v698, %v698
  %v763 = vpack.c.b16 %v699, %v699
  %v764 = vpack.c.b16 %v700, %v700
  %v765 = vpack.c.b16 %v701, %v701
  %v766 = vpack.c.b16 %v702, %v702
  %v767 = vpack.c.b16 %v703, %v703
  %v768 = vpack.c.b16 %v704, %v704
  %v769 = vpack.c.b16 %v705, %v705
  %v770 = vpack.c.b16 %v706, %v706
  %v771 = vpack.c.b16 %v707, %v707
  %v772 = vpack.c.b16 %v708, %v708
  %v773 = vpack.c.b16 %v709, %v709
  %v774 = vpack.c.b16 %v710, %v710
  %v775 = vpack.c.b16 %v711, %v711
  %v776 = vpack.c.b16 %v712, %v712
  %v777 = vpack.c.b16 %v713, %v713
  %v778 = vpack.c.b16 %v714, %v714
  %v779 = vpack.c.b16 %v715, %v715
  %v780 = vpack.c.b16 %v716, %v716
  %v781 = vpack.c.b16 %v717, %v717
  %v782 = vpack.c.b16 %v718, %v718
  %v783 = vpack.c.b16 %v719, %v719
  %v784 = vpack.c.b16 %v720, %v720
  %v785 = vpack.c.b16 %v721, %v721
  %v786 = vpack.c.b16 %v722, %v722
  %v787 = vpack.c.b16 %v723, %v723
  %v788 = vpack.c.b16 %v724, %v724
  %v789 = vpack.c.b16 %v725, %v725
  %v790 = vpack.c.b16 %v726, %v726
  %v791 = vpack.c.b16 %v727, %v727
  %v792 = vpack.c.b16 %v728, %v728
  %v793 = vpack.c.b16 %v729, %v729
  %v794 = vpack.c.b16 %v730, %v730
  %v795 = vpack.c.b16 %v731, %v731
  %v796 = vpack.c.b16 %v732, %v732
  %v797 = vpack.c.b16 %v733, %v733
  %v798 = vpack.c.b16 %v734, %v734
  %v799 = vpack.c.b16 %v735, %v735
  %v800 = vpack.c.b16 %v736, %v736
  %v801 = vpack.c.b16 %v737, %v737
  %v802 = vpack.c.b16 %v738, %v738
  %v803 = vpack.c.b16 %v739, %v739
  %v804 = vpack.c.b16 %v740, %v740
  %v805 = vpack.c.b16 %v741, %v741
  %v806 = vpack.c.b16 %v742, %v742
  %v807 = vpack.c.b16 %v743, %v743
  %v808 = vpack.c.b16 %v744, %v744
  %v809 = vpack.c.b16 %v745, %v745
  %v810 = vpack.c.b16 %v746, %v746
  %v811 = vpack.c.b16 %v747, %v747
  %v812 = vpack.c.b16 %v748, %v748
  %v813 = vpack.c.b16 %v749, %v749
  %v814 = vpack.c.b16 %v750, %v750
  %v815 = vpack.c.b16 %v751, %v751
  %880 = vst [vmem:[%s2] sm:$0xf] %v752
  %881 = vst [vmem:[%s2 + $0x4] sm:$0xf] %v753
  %882 = vst [vmem:[%s2 + $0x8] sm:$0xf] %v754
  %883 = vst [vmem:[%s2 + $0xc] sm:$0xf] %v755
  %884 = vst [vmem:[%s2 + $0x10] sm:$0xf] %v756
  %885 = vst [vmem:[%s2 + $0x14] sm:$0xf] %v757
  %886 = vst [vmem:[%s2 + $0x18] sm:$0xf] %v758
  %887 = vst [vmem:[%s2 + $0x1c] sm:$0xf] %v759
  %888 = vst [vmem:[%s2 + $0x20] sm:$0xf] %v760
  %889 = vst [vmem:[%s2 + $0x24] sm:$0xf] %v761
  %890 = vst [vmem:[%s2 + $0x28] sm:$0xf] %v762
  %891 = vst [vmem:[%s2 + $0x2c] sm:$0xf] %v763
  %892 = vst [vmem:[%s2 + $0x30] sm:$0xf] %v764
  %893 = vst [vmem:[%s2 + $0x34] sm:$0xf] %v765
  %894 = vst [vmem:[%s2 + $0x38] sm:$0xf] %v766
  %895 = vst [vmem:[%s2 + $0x3c] sm:$0xf] %v767
  %896 = vst [vmem:[%s2 + $0x40] sm:$0xf] %v768
  %897 = vst [vmem:[%s2 + $0x44] sm:$0xf] %v769
  %898 = vst [vmem:[%s2 + $0x48] sm:$0xf] %v770
  %899 = vst [vmem:[%s2 + $0x4c] sm:$0xf] %v771
  %900 = vst [vmem:[%s2 + $0x50] sm:$0xf] %v772
  %901 = vst [vmem:[%s2 + $0x54] sm:$0xf] %v773
  %902 = vst [vmem:[%s2 + $0x58] sm:$0xf] %v774
  %903 = vst [vmem:[%s2 + $0x5c] sm:$0xf] %v775
  %904 = vst [vmem:[%s2 + $0x60] sm:$0xf] %v776
  %905 = vst [vmem:[%s2 + $0x64] sm:$0xf] %v777
  %906 = vst [vmem:[%s2 + $0x68] sm:$0xf] %v778
  %907 = vst [vmem:[%s2 + $0x6c] sm:$0xf] %v779
  %908 = vst [vmem:[%s2 + $0x70] sm:$0xf] %v780
  %909 = vst [vmem:[%s2 + $0x74] sm:$0xf] %v781
  %910 = vst [vmem:[%s2 + $0x78] sm:$0xf] %v782
  %911 = vst [vmem:[%s2 + $0x7c] sm:$0xf] %v783
  %912 = vst [vmem:[%s2 + $0x80] sm:$0xf] %v784
  %913 = vst [vmem:[%s2 + $0x84] sm:$0xf] %v785
  %914 = vst [vmem:[%s2 + $0x88] sm:$0xf] %v786
  %915 = vst [vmem:[%s2 + $0x8c] sm:$0xf] %v787
  %916 = vst [vmem:[%s2 + $0x90] sm:$0xf] %v788
  %917 = vst [vmem:[%s2 + $0x94] sm:$0xf] %v789
  %918 = vst [vmem:[%s2 + $0x98] sm:$0xf] %v790
  %919 = vst [vmem:[%s2 + $0x9c] sm:$0xf] %v791
  %920 = vst [vmem:[%s2 + $0xa0] sm:$0xf] %v792
  %921 = vst [vmem:[%s2 + $0xa4] sm:$0xf] %v793
  %922 = vst [vmem:[%s2 + $0xa8] sm:$0xf] %v794
  %923 = vst [vmem:[%s2 + $0xac] sm:$0xf] %v795
  %924 = vst [vmem:[%s2 + $0xb0] sm:$0xf] %v796
  %925 = vst [vmem:[%s2 + $0xb4] sm:$0xf] %v797
  %926 = vst [vmem:[%s2 + $0xb8] sm:$0xf] %v798
  %927 = vst [vmem:[%s2 + $0xbc] sm:$0xf] %v799
  %928 = vst [vmem:[%s2 + $0xc0] sm:$0xf] %v800
  %929 = vst [vmem:[%s2 + $0xc4] sm:$0xf] %v801
  %930 = vst [vmem:[%s2 + $0xc8] sm:$0xf] %v802
  %931 = vst [vmem:[%s2 + $0xcc] sm:$0xf] %v803
  %932 = vst [vmem:[%s2 + $0xd0] sm:$0xf] %v804
  %933 = vst [vmem:[%s2 + $0xd4] sm:$0xf] %v805
  %934 = vst [vmem:[%s2 + $0xd8] sm:$0xf] %v806
  %935 = vst [vmem:[%s2 + $0xdc] sm:$0xf] %v807
  %936 = vst [vmem:[%s2 + $0xe0] sm:$0xf] %v808
  %937 = vst [vmem:[%s2 + $0xe4] sm:$0xf] %v809
  %938 = vst [vmem:[%s2 + $0xe8] sm:$0xf] %v810
  %939 = vst [vmem:[%s2 + $0xec] sm:$0xf] %v811
  %940 = vst [vmem:[%s2 + $0xf0] sm:$0xf] %v812
  %941 = vst [vmem:[%s2 + $0xf4] sm:$0xf] %v813
  %942 = vst [vmem:[%s2 + $0xf8] sm:$0xf] %v814
  %943 = vst [vmem:[%s2 + $0xfc] sm:$0xf] %v815
  %v944 = vadd.f32 %v370, %v373
  %v945 = vadd.f32 %v944, %v378
  %v946 = vadd.f32 %v945, %v381
  %v947 = vadd.f32 %v946, %v386
  %v948 = vadd.f32 %v947, %v389
  %v949 = vadd.f32 %v948, %v394
  %v950 = vadd.f32 %v949, %v397
  %v951 = vadd.f32 %v950, %v402
  %v952 = vadd.f32 %v951, %v405
  %v953 = vadd.f32 %v952, %v410
  %v954 = vadd.f32 %v953, %v413
  %v955 = vadd.f32 %v954, %v418
  %v956 = vadd.f32 %v955, %v421
  %v957 = vadd.f32 %v956, %v426
  %v958 = vadd.f32 %v957, %v429
  %v959 = vadd.f32 %v958, %v434
  %v960 = vadd.f32 %v959, %v437
  %v961 = vadd.f32 %v960, %v442
  %v962 = vadd.f32 %v961, %v445
  %v963 = vadd.f32 %v962, %v450
  %v964 = vadd.f32 %v963, %v453
  %v965 = vadd.f32 %v964, %v458
  %v966 = vadd.f32 %v965, %v461
  %v967 = vadd.f32 %v966, %v466
  %v968 = vadd.f32 %v967, %v469
  %v969 = vadd.f32 %v968, %v474
  %v970 = vadd.f32 %v969, %v477
  %v971 = vadd.f32 %v970, %v482
  %v972 = vadd.f32 %v971, %v485
  %v973 = vadd.f32 %v972, %v490
  %v974 = vadd.f32 %v973, %v493
  %v975 = vadd.f32 %v974, %v498
  %v976 = vadd.f32 %v975, %v501
  %v977 = vadd.f32 %v976, %v506
  %v978 = vadd.f32 %v977, %v509
  %v979 = vadd.f32 %v978, %v514
  %v980 = vadd.f32 %v979, %v517
  %v981 = vadd.f32 %v980, %v522
  %v982 = vadd.f32 %v981, %v525
  %v983 = vadd.f32 %v982, %v530
  %v984 = vadd.f32 %v983, %v533
  %v985 = vadd.f32 %v984, %v538
  %v986 = vadd.f32 %v985, %v541
  %v987 = vadd.f32 %v986, %v546
  %v988 = vadd.f32 %v987, %v549
  %v989 = vadd.f32 %v988, %v554
  %v990 = vadd.f32 %v989, %v557
  %v991 = vadd.f32 %v990, %v562
  %v992 = vadd.f32 %v991, %v565
  %v993 = vadd.f32 %v992, %v570
  %v994 = vadd.f32 %v993, %v573
  %v995 = vadd.f32 %v994, %v578
  %v996 = vadd.f32 %v995, %v581
  %v997 = vadd.f32 %v996, %v586
  %v998 = vadd.f32 %v997, %v589
  %v999 = vadd.f32 %v998, %v594
  %v1000 = vadd.f32 %v999, %v597
  %v1001 = vadd.f32 %v1000, %v602
  %v1002 = vadd.f32 %v1001, %v605
  %v1003 = vadd.f32 %v1002, %v610
  %v1004 = vadd.f32 %v1003, %v613
  %v1005 = vadd.f32 %v1004, %v618
  %v1006 = vadd.f32 %v1005, %v621
  %v1007 = vrot.slane %v1006, 4
  %v1008 = vadd.f32 %v1006, %v1007
  %v1009 = vrot.slane %v1008, 2
  %v1010 = vadd.f32 %v1008, %v1009
  %v1011 = vrot.slane %v1010, 1
  %v1012 = vadd.f32 %v1010, %v1011
  %1013 = vst [vmem:[%s3] sm:$0x1] %v1012
  %v1014 = vmul.f32 %v370, %v370
  %v1015 = vmul.f32 %v373, %v373
  %v1016 = vmul.f32 %v378, %v378
  %v1017 = vmul.f32 %v381, %v381
  %v1018 = vmul.f32 %v386, %v386
  %v1019 = vmul.f32 %v389, %v389
  %v1020 = vmul.f32 %v394, %v394
  %v1021 = vmul.f32 %v397, %v397
  %v1022 = vmul.f32 %v402, %v402
  %v1023 = vmul.f32 %v405, %v405
  %v1024 = vmul.f32 %v410, %v410
  %v1025 = vmul.f32 %v413, %v413
  %v1026 = vmul.f32 %v418, %v418
  %v1027 = vmul.f32 %v421, %v421
  %v1028 = vmul.f32 %v426, %v426
  %v1029 = vmul.f32 %v429, %v429
  %v1030 = vmul.f32 %v434, %v434
  %v1031 = vmul.f32 %v437, %v437
  %v1032 = vmul.f32 %v442, %v442
  %v1033 = vmul.f32 %v445, %v445
  %v1034 = vmul.f32 %v450, %v450
  %v1035 = vmul.f32 %v453, %v453
  %v1036 = vmul.f32 %v458, %v458
  %v1037 = vmul.f32 %v461, %v461
  %v1038 = vmul.f32 %v466, %v466
  %v1039 = vmul.f32 %v469, %v469
  %v1040 = vmul.f32 %v474, %v474
  %v1041 = vmul.f32 %v477, %v477
  %v1042 = vmul.f32 %v482, %v482
  %v1043 = vmul.f32 %v485, %v485
  %v1044 = vmul.f32 %v490, %v490
  %v1045 = vmul.f32 %v493, %v493
  %v1046 = vmul.f32 %v498, %v498
  %v1047 = vmul.f32 %v501, %v501
  %v1048 = vmul.f32 %v506, %v506
  %v1049 = vmul.f32 %v509, %v509
  %v1050 = vmul.f32 %v514, %v514
  %v1051 = vmul.f32 %v517, %v517
  %v1052 = vmul.f32 %v522, %v522
  %v1053 = vmul.f32 %v525, %v525
  %v1054 = vmul.f32 %v530, %v530
  %v1055 = vmul.f32 %v533, %v533
  %v1056 = vmul.f32 %v538, %v538
  %v1057 = vmul.f32 %v541, %v541
  %v1058 = vmul.f32 %v546, %v546
  %v1059 = vmul.f32 %v549, %v549
  %v1060 = vmul.f32 %v554, %v554
  %v1061 = vmul.f32 %v557, %v557
  %v1062 = vmul.f32 %v562, %v562
  %v1063 = vmul.f32 %v565, %v565
  %v1064 = vmul.f32 %v570, %v570
  %v1065 = vmul.f32 %v573, %v573
  %v1066 = vmul.f32 %v578, %v578
  %v1067 = vmul.f32 %v581, %v581
  %v1068 = vmul.f32 %v586, %v586
  %v1069 = vmul.f32 %v589, %v589
  %v1070 = vmul.f32 %v594, %v594
  %v1071 = vmul.f32 %v597, %v597
  %v1072 = vmul.f32 %v602, %v602
  %v1073 = vmul.f32 %v605, %v605
  %v1074 = vmul.f32 %v610, %v610
  %v1075 = vmul.f32 %v613, %v613
  %v1076 = vmul.f32 %v618, %v618
  %v1077 = vmul.f32 %v621, %v621
  %v1078 = vadd.f32 %v1014, %v1015
  %v1079 = vadd.f32 %v1078, %v1016
  %v1080 = vadd.f32 %v1079, %v1017
  %v1081 = vadd.f32 %v1080, %v1018
  %v1082 = vadd.f32 %v1081, %v1019
  %v1083 = vadd.f32 %v1082, %v1020
  %v1084 = vadd.f32 %v1083, %v1021
  %v1085 = vadd.f32 %v1084, %v1022
  %v1086 = vadd.f32 %v1085, %v1023
  %v1087 = vadd.f32 %v1086, %v1024
  %v1088 = vadd.f32 %v1087, %v1025
  %v1089 = vadd.f32 %v1088, %v1026
  %v1090 = vadd.f32 %v1089, %v1027
  %v1091 = vadd.f32 %v1090, %v1028
  %v1092 = vadd.f32 %v1091, %v1029
  %v1093 = vadd.f32 %v1092, %v1030
  %v1094 = vadd.f32 %v1093, %v1031
  %v1095 = vadd.f32 %v1094, %v1032
  %v1096 = vadd.f32 %v1095, %v1033
  %v1097 = vadd.f32 %v1096, %v1034
  %v1098 = vadd.f32 %v1097, %v1035
  %v1099 = vadd.f32 %v1098, %v1036
  %v1100 = vadd.f32 %v1099, %v1037
  %v1101 = vadd.f32 %v1100, %v1038
  %v1102 = vadd.f32 %v1101, %v1039
  %v1103 = vadd.f32 %v1102, %v1040
  %v1104 = vadd.f32 %v1103, %v1041
  %v1105 = vadd.f32 %v1104, %v1042
  %v1106 = vadd.f32 %v1105, %v1043
  %v1107 = vadd.f32 %v1106, %v1044
  %v1108 = vadd.f32 %v1107, %v1045
  %v1109 = vadd.f32 %v1108, %v1046
  %v1110 = vadd.f32 %v1109, %v1047
  %v1111 = vadd.f32 %v1110, %v1048
  %v1112 = vadd.f32 %v1111, %v1049
  %v1113 = vadd.f32 %v1112, %v1050
  %v1114 = vadd.f32 %v1113, %v1051
  %v1115 = vadd.f32 %v1114, %v1052
  %v1116 = vadd.f32 %v1115, %v1053
  %v1117 = vadd.f32 %v1116, %v1054
  %v1118 = vadd.f32 %v1117, %v1055
  %v1119 = vadd.f32 %v1118, %v1056
  %v1120 = vadd.f32 %v1119, %v1057
  %v1121 = vadd.f32 %v1120, %v1058
  %v1122 = vadd.f32 %v1121, %v1059
  %v1123 = vadd.f32 %v1122, %v1060
  %v1124 = vadd.f32 %v1123, %v1061
  %v1125 = vadd.f32 %v1124, %v1062
  %v1126 = vadd.f32 %v1125, %v1063
  %v1127 = vadd.f32 %v1126, %v1064
  %v1128 = vadd.f32 %v1127, %v1065
  %v1129 = vadd.f32 %v1128, %v1066
  %v1130 = vadd.f32 %v1129, %v1067
  %v1131 = vadd.f32 %v1130, %v1068
  %v1132 = vadd.f32 %v1131, %v1069
  %v1133 = vadd.f32 %v1132, %v1070
  %v1134 = vadd.f32 %v1133, %v1071
  %v1135 = vadd.f32 %v1134, %v1072
  %v1136 = vadd.f32 %v1135, %v1073
  %v1137 = vadd.f32 %v1136, %v1074
  %v1138 = vadd.f32 %v1137, %v1075
  %v1139 = vadd.f32 %v1138, %v1076
  %v1140 = vadd.f32 %v1139, %v1077
  %v1141 = vrot.slane %v1140, 4
  %v1142 = vadd.f32 %v1140, %v1141
  %v1143 = vrot.slane %v1142, 2
  %v1144 = vadd.f32 %v1142, %v1143
  %v1145 = vrot.slane %v1144, 1
  %v1146 = vadd.f32 %v1144, %v1145
  %1147 = vst [vmem:[%s4] sm:$0x1] %v1146
  // Predicated region
  $region10: #{block_forward.5} parent=0 // pred_check
    _
  $region11: #{block_forward.5} parent=0 // pred_check_branch
    %1149 = sbr.rel (0) target = $region13
  $region12: #{block_forward.5} parent=0 // pred_region
    _
  $region13: #{block_forward.5} parent=0 // pred_fallthru
    _
  // Predicated region
  $region14: #{block_forward.5} parent=0 // pred_check
    _
  $region15: #{block_forward.5} parent=0 // pred_check_branch
    %1151 = sbr.rel (0) target = $region17
  $region16: #{block_forward.5} parent=0 // pred_region
    _
  $region17: #{block_forward.5} parent=0 // pred_fallthru
    _
  // Predicated region
  $region18: #{block_forward.5} parent=0 // pred_check
    _
  $region19: #{block_forward.5} parent=0 // pred_check_branch
    %1153 = sbr.rel (0) target = $region21
  $region20: #{block_forward.5} parent=0 // pred_region
    _
  $region21: #{block_forward.5} parent=0 // pred_fallthru
    _
  // Predicated region
  $region22: #{block_forward.5} parent=0 // pred_check
    _
  $region23: #{block_forward.5} parent=0 // pred_check_branch
    %1155 = sbr.rel (0) target = $region25
  $region24: #{block_forward.5} parent=0 // pred_region
    _
  $region25: #{block_forward.5} parent=0 // pred_fallthru
    _
  // Predicated region
  $region26: #{block_forward.5} parent=0 // pred_check
    _
  $region27: #{block_forward.5} parent=0 // pred_check_branch
    %1157 = sbr.rel (0) target = $region29
  $region28: #{block_forward.5} parent=0 // pred_region
    _
  $region29: #{block_forward.5} parent=0 // pred_fallthru
    _
  // Predicated region
  $region30: #{block_forward.5} parent=0 // pred_check
    _
  $region31: #{block_forward.5} parent=0 // pred_check_branch
    %1159 = sbr.rel (0) target = $region33
  $region32: #{block_forward.5} parent=0 // pred_region
    _
  $region33: #{block_forward.5} parent=0 // pred_fallthru
    _

// kernel: block_forward.9
$region0: #{block_forward.9}
  #allocation0 [shape = 'u32[]', space=smem, size = 0x4, offset = 0x4, fixed_abs, tag = 'smem constant byte address 0x4 - core index']
  #allocation1 [shape = 'u32[144,128]{1,0:T(1,128)}', space=vmem, size = 0x12000, scoped, tag = 'internal scratch']
  %s0 = inlined_call_operand.vmem [shape: bf16[128,128], index: 0, kind: input, shape index: {}]
  %s1 = inlined_call_operand.vmem [shape: f32[1,128], index: 1, kind: input, shape index: {}]
  %s2 = inlined_call_operand.vmem [shape: f32[1,128], index: 2, kind: input, shape index: {}]
  %s3 = inlined_call_operand.vmem [shape: bf16[128,128], index: 3, kind: input, shape index: {}]
  %s4 = inlined_call_operand.vmem [shape: f32[1,128], index: 4, kind: input, shape index: {}]
  %s5 = inlined_call_operand.vmem [shape: f32[1,128], index: 5, kind: input, shape index: {}]
  %s6 = inlined_call_operand.hbm [shape: f32[128,128], index: 6, kind: output, shape index: {}]
  %s7 = sld [smem:[#allocation0]]
  $region34: #{block_forward.9} parent=0
    _
  %s9 = ssub.s32 1, %s7
  %s10 = scalar_select 0, %s9, %s7
  $region1: #{block_forward.9} parent=0
    #allocation2 [shape = 'u8[65536]{0}', space=vmem, size = 0x10000, scoped, tag = 'output window, operand 0, single buffered']
    #allocation3 [shape = 's32[1]{0}', space=sflag, size = 0x4, scoped, tag = 'scoped memory for block_forward.9']
    %11 = vsyncpa [#allocation3], 0
    // Predicated region
    $region2: #{block_forward.9} parent=1 // pred_check
      _
    $region3: #{block_forward.9} parent=1 // pred_check_branch
      %13 = sbr.rel (0) target = $region5
    $region4: #{block_forward.9} parent=1 // pred_region
      _
    $region5: #{block_forward.9} parent=1 // pred_fallthru
      _
    // Predicated region
    $region6: #{block_forward.9} parent=1 // pred_check
      _
    $region7: #{block_forward.9} parent=1 // pred_check_branch
      %15 = sbr.rel (0) target = $region9
    $region8: #{block_forward.9} parent=1 // pred_region
      _
    $region9: #{block_forward.9} parent=1 // pred_fallthru
      _
    // Predicated region
    $region10: #{block_forward.9} parent=1 // pred_check
      _
    $region11: #{block_forward.9} parent=1 // pred_check_branch
      %17 = sbr.rel (0) target = $region13
    $region12: #{block_forward.9} parent=1 // pred_region
      _
    $region13: #{block_forward.9} parent=1 // pred_fallthru
      _
    // Predicated region
    $region14: #{block_forward.9} parent=1 // pred_check
      _
    $region15: #{block_forward.9} parent=1 // pred_check_branch
      %19 = sbr.rel (0) target = $region17
    $region16: #{block_forward.9} parent=1 // pred_region
      _
    $region17: #{block_forward.9} parent=1 // pred_fallthru
      _
    // Predicated region
    $region18: #{block_forward.9} parent=1 // pred_check
      _
    $region19: #{block_forward.9} parent=1 // pred_check_branch
      %21 = sbr.rel (0) target = $region21
    $region20: #{block_forward.9} parent=1 // pred_region
      _
    $region21: #{block_forward.9} parent=1 // pred_fallthru
      _
    // Predicated region
    $region22: #{block_forward.9} parent=1 // pred_check
      _
    $region23: #{block_forward.9} parent=1 // pred_check_branch
      %23 = sbr.rel (0) target = $region25
    $region24: #{block_forward.9} parent=1 // pred_region
      _
    $region25: #{block_forward.9} parent=1 // pred_fallthru
      _
    %v24 = vld [vmem:[%s3] sm:$0xf]
    %v25 = vld [vmem:[%s3 + $0x4] sm:$0xf]
    %v26 = vld [vmem:[%s3 + $0x8] sm:$0xf]
    %v27 = vld [vmem:[%s3 + $0xc] sm:$0xf]
    %v28 = vld [vmem:[%s3 + $0x10] sm:$0xf]
    %v29 = vld [vmem:[%s3 + $0x14] sm:$0xf]
    %v30 = vld [vmem:[%s3 + $0x18] sm:$0xf]
    %v31 = vld [vmem:[%s3 + $0x1c] sm:$0xf]
    %v32 = vld [vmem:[%s3 + $0x20] sm:$0xf]
    %v33 = vld [vmem:[%s3 + $0x24] sm:$0xf]
    %v34 = vld [vmem:[%s3 + $0x28] sm:$0xf]
    %v35 = vld [vmem:[%s3 + $0x2c] sm:$0xf]
    %v36 = vld [vmem:[%s3 + $0x30] sm:$0xf]
    %v37 = vld [vmem:[%s3 + $0x34] sm:$0xf]
    %v38 = vld [vmem:[%s3 + $0x38] sm:$0xf]
    %v39 = vld [vmem:[%s3 + $0x3c] sm:$0xf]
    %v40 = vunpack.c.l.bf16 %v24
    %v41 = vunpack.c.l.bf16 %v25
    %v42 = vunpack.c.l.bf16 %v26
    %v43 = vunpack.c.l.bf16 %v27
    %v44 = vunpack.c.l.bf16 %v28
    %v45 = vunpack.c.l.bf16 %v29
    %v46 = vunpack.c.l.bf16 %v30
    %v47 = vunpack.c.l.bf16 %v31
    %v48 = vunpack.c.l.bf16 %v32
    %v49 = vunpack.c.l.bf16 %v33
    %v50 = vunpack.c.l.bf16 %v34
    %v51 = vunpack.c.l.bf16 %v35
    %v52 = vunpack.c.l.bf16 %v36
    %v53 = vunpack.c.l.bf16 %v37
    %v54 = vunpack.c.l.bf16 %v38
    %v55 = vunpack.c.l.bf16 %v39
    %v56 = vld [vmem:[%s4] sm:$0x1]
    %v58 = vlaneseq
    %v59 = vshrl.u32 %v58, 7
    %v60 = vsub.s32 0, %v59
    %v61 = vrot.slane %v56, %v60
    %v63 = vmul.f32 %v40, %v61
    %v64 = vmul.f32 %v41, %v61
    %v65 = vmul.f32 %v42, %v61
    %v66 = vmul.f32 %v43, %v61
    %v67 = vmul.f32 %v44, %v61
    %v68 = vmul.f32 %v45, %v61
    %v69 = vmul.f32 %v46, %v61
    %v70 = vmul.f32 %v47, %v61
    %v71 = vmul.f32 %v48, %v61
    %v72 = vmul.f32 %v49, %v61
    %v73 = vmul.f32 %v50, %v61
    %v74 = vmul.f32 %v51, %v61
    %v75 = vmul.f32 %v52, %v61
    %v76 = vmul.f32 %v53, %v61
    %v77 = vmul.f32 %v54, %v61
    %v78 = vmul.f32 %v55, %v61
    %v79 = vld [vmem:[%s5] sm:$0x1]
    %v81 = vlaneseq
    %v82 = vshrl.u32 %v81, 7
    %v83 = vsub.s32 0, %v82
    %v84 = vrot.slane %v79, %v83
    %v86 = vadd.f32 %v63, %v84
    %v87 = vadd.f32 %v64, %v84
    %v88 = vadd.f32 %v65, %v84
    %v89 = vadd.f32 %v66, %v84
    %v90 = vadd.f32 %v67, %v84
    %v91 = vadd.f32 %v68, %v84
    %v92 = vadd.f32 %v69, %v84
    %v93 = vadd.f32 %v70, %v84
    %v94 = vadd.f32 %v71, %v84
    %v95 = vadd.f32 %v72, %v84
    %v96 = vadd.f32 %v73, %v84
    %v97 = vadd.f32 %v74, %v84
    %v98 = vadd.f32 %v75, %v84
    %v99 = vadd.f32 %v76, %v84
    %v100 = vadd.f32 %v77, %v84
    %v101 = vadd.f32 %v78, %v84
    %v102 = vld [vmem:[%s0] sm:$0xf]
    %v103 = vld [vmem:[%s0 + $0x4] sm:$0xf]
    %v104 = vld [vmem:[%s0 + $0x8] sm:$0xf]
    %v105 = vld [vmem:[%s0 + $0xc] sm:$0xf]
    %v106 = vld [vmem:[%s0 + $0x10] sm:$0xf]
    %v107 = vld [vmem:[%s0 + $0x14] sm:$0xf]
    %v108 = vld [vmem:[%s0 + $0x18] sm:$0xf]
    %v109 = vld [vmem:[%s0 + $0x1c] sm:$0xf]
    %v110 = vld [vmem:[%s0 + $0x20] sm:$0xf]
    %v111 = vld [vmem:[%s0 + $0x24] sm:$0xf]
    %v112 = vld [vmem:[%s0 + $0x28] sm:$0xf]
    %v113 = vld [vmem:[%s0 + $0x2c] sm:$0xf]
    %v114 = vld [vmem:[%s0 + $0x30] sm:$0xf]
    %v115 = vld [vmem:[%s0 + $0x34] sm:$0xf]
    %v116 = vld [vmem:[%s0 + $0x38] sm:$0xf]
    %v117 = vld [vmem:[%s0 + $0x3c] sm:$0xf]
    %v118 = vunpack.c.l.bf16 %v102
    %v119 = vunpack.c.l.bf16 %v103
    %v120 = vunpack.c.l.bf16 %v104
    %v121 = vunpack.c.l.bf16 %v105
    %v122 = vunpack.c.l.bf16 %v106
    %v123 = vunpack.c.l.bf16 %v107
    %v124 = vunpack.c.l.bf16 %v108
    %v125 = vunpack.c.l.bf16 %v109
    %v126 = vunpack.c.l.bf16 %v110
    %v127 = vunpack.c.l.bf16 %v111
    %v128 = vunpack.c.l.bf16 %v112
    %v129 = vunpack.c.l.bf16 %v113
    %v130 = vunpack.c.l.bf16 %v114
    %v131 = vunpack.c.l.bf16 %v115
    %v132 = vunpack.c.l.bf16 %v116
    %v133 = vunpack.c.l.bf16 %v117
    %v134 = vld [vmem:[%s1] sm:$0x1]
    %v136 = vlaneseq
    %v137 = vshrl.u32 %v136, 7
    %v138 = vsub.s32 0, %v137
    %v139 = vrot.slane %v134, %v138
    %v141 = vmul.f32 %v118, %v139
    %v142 = vmul.f32 %v119, %v139
    %v143 = vmul.f32 %v120, %v139
    %v144 = vmul.f32 %v121, %v139
    %v145 = vmul.f32 %v122, %v139
    %v146 = vmul.f32 %v123, %v139
    %v147 = vmul.f32 %v124, %v139
    %v148 = vmul.f32 %v125, %v139
    %v149 = vmul.f32 %v126, %v139
    %v150 = vmul.f32 %v127, %v139
    %v151 = vmul.f32 %v128, %v139
    %v152 = vmul.f32 %v129, %v139
    %v153 = vmul.f32 %v130, %v139
    %v154 = vmul.f32 %v131, %v139
    %v155 = vmul.f32 %v132, %v139
    %v156 = vmul.f32 %v133, %v139
    %v157 = vld [vmem:[%s2] sm:$0x1]
    %v159 = vlaneseq
    %v160 = vshrl.u32 %v159, 7
    %v161 = vsub.s32 0, %v160
    %v162 = vrot.slane %v157, %v161
    %v164 = vadd.f32 %v141, %v162
    %v165 = vadd.f32 %v142, %v162
    %v166 = vadd.f32 %v143, %v162
    %v167 = vadd.f32 %v144, %v162
    %v168 = vadd.f32 %v145, %v162
    %v169 = vadd.f32 %v146, %v162
    %v170 = vadd.f32 %v147, %v162
    %v171 = vadd.f32 %v148, %v162
    %v172 = vadd.f32 %v149, %v162
    %v173 = vadd.f32 %v150, %v162
    %v174 = vadd.f32 %v151, %v162
    %v175 = vadd.f32 %v152, %v162
    %v176 = vadd.f32 %v153, %v162
    %v177 = vadd.f32 %v154, %v162
    %v178 = vadd.f32 %v155, %v162
    %v179 = vadd.f32 %v156, %v162
    %v180 = vadd.f32 %v164, %v86
    %v181 = vadd.f32 %v165, %v87
    %v182 = vadd.f32 %v166, %v88
    %v183 = vadd.f32 %v167, %v89
    %v184 = vadd.f32 %v168, %v90
    %v185 = vadd.f32 %v169, %v91
    %v186 = vadd.f32 %v170, %v92
    %v187 = vadd.f32 %v171, %v93
    %v188 = vadd.f32 %v172, %v94
    %v189 = vadd.f32 %v173, %v95
    %v190 = vadd.f32 %v174, %v96
    %v191 = vadd.f32 %v175, %v97
    %v192 = vadd.f32 %v176, %v98
    %v193 = vadd.f32 %v177, %v99
    %v194 = vadd.f32 %v178, %v100
    %v195 = vadd.f32 %v179, %v101
    %v196 = vmax.f32 %v180, 0.0
    %v197 = vmax.f32 %v181, 0.0
    %v198 = vmax.f32 %v182, 0.0
    %v199 = vmax.f32 %v183, 0.0
    %v200 = vmax.f32 %v184, 0.0
    %v201 = vmax.f32 %v185, 0.0
    %v202 = vmax.f32 %v186, 0.0
    %v203 = vmax.f32 %v187, 0.0
    %v204 = vmax.f32 %v188, 0.0
    %v205 = vmax.f32 %v189, 0.0
    %v206 = vmax.f32 %v190, 0.0
    %v207 = vmax.f32 %v191, 0.0
    %v208 = vmax.f32 %v192, 0.0
    %v209 = vmax.f32 %v193, 0.0
    %v210 = vmax.f32 %v194, 0.0
    %v211 = vmax.f32 %v195, 0.0
    %212 = vst [vmem:[#allocation2] sm:$0xff] %v196
    %213 = vst [vmem:[#allocation2 + $0x8] sm:$0xff] %v197
    %214 = vst [vmem:[#allocation2 + $0x10] sm:$0xff] %v198
    %215 = vst [vmem:[#allocation2 + $0x18] sm:$0xff] %v199
    %216 = vst [vmem:[#allocation2 + $0x20] sm:$0xff] %v200
    %217 = vst [vmem:[#allocation2 + $0x28] sm:$0xff] %v201
    %218 = vst [vmem:[#allocation2 + $0x30] sm:$0xff] %v202
    %219 = vst [vmem:[#allocation2 + $0x38] sm:$0xff] %v203
    %220 = vst [vmem:[#allocation2 + $0x40] sm:$0xff] %v204
    %221 = vst [vmem:[#allocation2 + $0x48] sm:$0xff] %v205
    %222 = vst [vmem:[#allocation2 + $0x50] sm:$0xff] %v206
    %223 = vst [vmem:[#allocation2 + $0x58] sm:$0xff] %v207
    %224 = vst [vmem:[#allocation2 + $0x60] sm:$0xff] %v208
    %225 = vst [vmem:[#allocation2 + $0x68] sm:$0xff] %v209
    %226 = vst [vmem:[#allocation2 + $0x70] sm:$0xff] %v210
    %227 = vst [vmem:[#allocation2 + $0x78] sm:$0xff] %v211
    // Predicated region
    $region26: #{block_forward.9} parent=1 // pred_check
      _
    $region27: #{block_forward.9} parent=1 // pred_check_branch
      %229 = sbr.rel (0) target = $region29
    $region28: #{block_forward.9} parent=1 // pred_region
      %s231 = ssub.s32 2048, 2048
      %232 = vsyncadd [#allocation3], %s231
      %s233 = sshll.u32 [#allocation2], 4
      %s234 = int_to_ptr.vmem [resolvable:$true] %s233
      %239 = dma.vmem_to_hbm [thread:$0]  %s234, 2048, %s6, [#allocation3], 128, 128, 8
    $region29: #{block_forward.9} parent=1 // pred_fallthru
      _
    // Predicated region
    $region30: #{block_forward.9} parent=1 // pred_check
      _
    $region31: #{block_forward.9} parent=1 // pred_check_branch
      %241 = sbr.rel (0) target = $region33
    $region32: #{block_forward.9} parent=1 // pred_region
      %242 = dma.done [#allocation3], 2048
    $region33: #{block_forward.9} parent=1 // pred_fallthru
      _
    %243 = vsyncpa [#allocation3], 1

// kernel: block_forward.8
$region0: #{block_forward.8}
  #allocation0 [shape = 'u32[]', space=smem, size = 0x4, offset = 0x4, fixed_abs, tag = 'smem constant byte address 0x4 - core index']
  #allocation1 [shape = 'u32[144,128]{1,0:T(1,128)}', space=vmem, size = 0x12000, scoped, tag = 'internal scratch']
  %s0 = inlined_call_operand.vmem [shape: bf16[128,128], index: 0, kind: input, shape index: {}]
  %s1 = inlined_call_operand.vmem [shape: bf16[128,128], index: 1, kind: input, shape index: {}]
  %s2 = inlined_call_operand.vmem [shape: bf16[128,128], index: 2, kind: output, shape index: {0}]
  %s3 = inlined_call_operand.vmem [shape: f32[1,1,128], index: 3, kind: output, shape index: {1}]
  %s4 = inlined_call_operand.vmem [shape: f32[1,1,128], index: 4, kind: output, shape index: {2}]
  %5 = xla_tuple %s2, %s3, %s4
  %s6 = sld [smem:[#allocation0]]
  $region34: #{block_forward.8} parent=0
    _
  %s8 = ssub.s32 1, %s6
  %s9 = scalar_select 0, %s8, %s6
  // Predicated region
  $region2: #{block_forward.8} parent=0 // pred_check
    _
  $region3: #{block_forward.8} parent=0 // pred_check_branch
    %11 = sbr.rel (0) target = $region5
  $region4: #{block_forward.8} parent=0 // pred_region
    _
  $region5: #{block_forward.8} parent=0 // pred_fallthru
    _
  // Predicated region
  $region6: #{block_forward.8} parent=0 // pred_check
    _
  $region7: #{block_forward.8} parent=0 // pred_check_branch
    %13 = sbr.rel (0) target = $region9
  $region8: #{block_forward.8} parent=0 // pred_region
    _
  $region9: #{block_forward.8} parent=0 // pred_fallthru
    _
  %v15 = vld [vmem:[%s0] sm:$0xf]
  %v16 = vld [vmem:[%s0 + $0x4] sm:$0xf]
  %v17 = vld [vmem:[%s0 + $0x8] sm:$0xf]
  %v18 = vld [vmem:[%s0 + $0xc] sm:$0xf]
  %v19 = vld [vmem:[%s0 + $0x10] sm:$0xf]
  %v20 = vld [vmem:[%s0 + $0x14] sm:$0xf]
  %v21 = vld [vmem:[%s0 + $0x18] sm:$0xf]
  %v22 = vld [vmem:[%s0 + $0x1c] sm:$0xf]
  %v23 = vld [vmem:[%s0 + $0x20] sm:$0xf]
  %v24 = vld [vmem:[%s0 + $0x24] sm:$0xf]
  %v25 = vld [vmem:[%s0 + $0x28] sm:$0xf]
  %v26 = vld [vmem:[%s0 + $0x2c] sm:$0xf]
  %v27 = vld [vmem:[%s0 + $0x30] sm:$0xf]
  %v28 = vld [vmem:[%s0 + $0x34] sm:$0xf]
  %v29 = vld [vmem:[%s0 + $0x38] sm:$0xf]
  %v30 = vld [vmem:[%s0 + $0x3c] sm:$0xf]
  %v31 = vld [vmem:[%s1] sm:$0xf]
  %v32 = vld [vmem:[%s1 + $0x4] sm:$0xf]
  %v33 = vld [vmem:[%s1 + $0x8] sm:$0xf]
  %v34 = vld [vmem:[%s1 + $0xc] sm:$0xf]
  %v35 = vld [vmem:[%s1 + $0x10] sm:$0xf]
  %v36 = vld [vmem:[%s1 + $0x14] sm:$0xf]
  %v37 = vld [vmem:[%s1 + $0x18] sm:$0xf]
  %v38 = vld [vmem:[%s1 + $0x1c] sm:$0xf]
  %v39 = vld [vmem:[%s1 + $0x20] sm:$0xf]
  %v40 = vld [vmem:[%s1 + $0x24] sm:$0xf]
  %v41 = vld [vmem:[%s1 + $0x28] sm:$0xf]
  %v42 = vld [vmem:[%s1 + $0x2c] sm:$0xf]
  %v43 = vld [vmem:[%s1 + $0x30] sm:$0xf]
  %v44 = vld [vmem:[%s1 + $0x34] sm:$0xf]
  %v45 = vld [vmem:[%s1 + $0x38] sm:$0xf]
  %v46 = vld [vmem:[%s1 + $0x3c] sm:$0xf]
  %v63 = vunpack.c.l.b16 %v15
  %v64 = vunpack.c.l.b16 %v16
  %v65 = vunpack.c.l.b16 %v17
  %v66 = vunpack.c.l.b16 %v18
  %v67 = vunpack.c.l.b16 %v19
  %v68 = vunpack.c.l.b16 %v20
  %v69 = vunpack.c.l.b16 %v21
  %v70 = vunpack.c.l.b16 %v22
  %v71 = vunpack.c.l.b16 %v23
  %v72 = vunpack.c.l.b16 %v24
  %v73 = vunpack.c.l.b16 %v25
  %v74 = vunpack.c.l.b16 %v26
  %v75 = vunpack.c.l.b16 %v27
  %v76 = vunpack.c.l.b16 %v28
  %v77 = vunpack.c.l.b16 %v29
  %v78 = vunpack.c.l.b16 %v30
  %v79 = vpack.c.b16 %v64, %v63
  %v80 = vpack.c.b16 %v66, %v65
  %v81 = vpack.c.b16 %v68, %v67
  %v82 = vpack.c.b16 %v70, %v69
  %v83 = vpack.c.b16 %v72, %v71
  %v84 = vpack.c.b16 %v74, %v73
  %v85 = vpack.c.b16 %v76, %v75
  %v86 = vpack.c.b16 %v78, %v77
  %v111 = vunpack.c.l.b16 %v31
  %v112 = vunpack.c.l.b16 %v32
  %v113 = vunpack.c.l.b16 %v33
  %v114 = vunpack.c.l.b16 %v34
  %v115 = vunpack.c.l.b16 %v35
  %v116 = vunpack.c.l.b16 %v36
  %v117 = vunpack.c.l.b16 %v37
  %v118 = vunpack.c.l.b16 %v38
  %v119 = vunpack.c.l.b16 %v39
  %v120 = vunpack.c.l.b16 %v40
  %v121 = vunpack.c.l.b16 %v41
  %v122 = vunpack.c.l.b16 %v42
  %v123 = vunpack.c.l.b16 %v43
  %v124 = vunpack.c.l.b16 %v44
  %v125 = vunpack.c.l.b16 %v45
  %v126 = vunpack.c.l.b16 %v46
  %v127 = vpack.c.b16 %v112, %v111
  %v128 = vpack.c.b16 %v114, %v113
  %v129 = vpack.c.b16 %v116, %v115
  %v130 = vpack.c.b16 %v118, %v117
  %v131 = vpack.c.b16 %v120, %v119
  %v132 = vpack.c.b16 %v122, %v121
  %v133 = vpack.c.b16 %v124, %v123
  %v134 = vpack.c.b16 %v126, %v125
  %143 = vmatprep.subr.bf16.mxu0 0
  %144 = vmatpush1.bf16.msra.mxu0 %v134
  %145 = vmatprep.subr.bf16.mxu0 0
  %146 = vmatpush1.bf16.msra.mxu0 %v133
  %147 = vmatprep.subr.bf16.mxu0 0
  %148 = vmatpush1.bf16.msra.mxu0 %v132
  %149 = vmatprep.subr.bf16.mxu0 0
  %150 = vmatpush1.bf16.msra.mxu0 %v131
  %151 = vmatprep.subr.bf16.mxu0 0
  %152 = vmatpush1.bf16.msra.mxu0 %v130
  %153 = vmatprep.subr.bf16.mxu0 0
  %154 = vmatpush1.bf16.msra.mxu0 %v129
  %155 = vmatprep.subr.bf16.mxu0 0
  %156 = vmatpush1.bf16.msra.mxu0 %v128
  %157 = vmatprep.subr.bf16.mxu0 0
  %158 = vmatpush1.bf16.msra.mxu0 %v127
  %159 = vmatprep.subr.bf16.mxu0 0
  %160 = vmatpush2.bf16.msra.mxu0 0
  %161 = vmatprep.subr.bf16.mxu0 0
  %162 = vmatpush2.bf16.msra.mxu0 0
  %163 = vmatprep.subr.bf16.mxu0 0
  %164 = vmatpush2.bf16.msra.mxu0 0
  %165 = vmatprep.subr.bf16.mxu0 0
  %166 = vmatpush2.bf16.msra.mxu0 0
  %167 = vmatprep.subr.bf16.mxu0 0
  %168 = vmatpush2.bf16.msra.mxu0 0
  %169 = vmatprep.subr.bf16.mxu0 0
  %170 = vmatpush2.bf16.msra.mxu0 0
  %171 = vmatprep.subr.bf16.mxu0 0
  %172 = vmatpush2.bf16.msra.mxu0 0
  %173 = vmatprep.subr.bf16.mxu0 0
  %174 = vmatpush2.bf16.msra.mxu0 0
  %175 = vmatprep.mubr.bf16.mxu0 0
  %176 = vmatmul.mubr.bf16.gmra.mxu0 %v79
  %v177 = vpop.f32.mrf.mxu0
  %v178 = vadd.f32 0.0, %v177
  %v179 = vpop.f32.mrf.mxu0
  %v180 = vpop.f32.mrf.mxu0
  %v181 = vadd.f32 0.0, %v180
  %v182 = vpop.f32.mrf.mxu0
  %183 = vmatprep.mubr.bf16.mxu0 0
  %184 = vmatmul.mubr.bf16.gmra.mxu0 %v80
  %v185 = vpop.f32.mrf.mxu0
  %v186 = vadd.f32 0.0, %v185
  %v187 = vpop.f32.mrf.mxu0
  %v188 = vpop.f32.mrf.mxu0
  %v189 = vadd.f32 0.0, %v188
  %v190 = vpop.f32.mrf.mxu0
  %191 = vmatprep.mubr.bf16.mxu0 0
  %192 = vmatmul.mubr.bf16.gmra.mxu0 %v81
  %v193 = vpop.f32.mrf.mxu0
  %v194 = vadd.f32 0.0, %v193
  %v195 = vpop.f32.mrf.mxu0
  %v196 = vpop.f32.mrf.mxu0
  %v197 = vadd.f32 0.0, %v196
  %v198 = vpop.f32.mrf.mxu0
  %199 = vmatprep.mubr.bf16.mxu0 0
  %200 = vmatmul.mubr.bf16.gmra.mxu0 %v82
  %v201 = vpop.f32.mrf.mxu0
  %v202 = vadd.f32 0.0, %v201
  %v203 = vpop.f32.mrf.mxu0
  %v204 = vpop.f32.mrf.mxu0
  %v205 = vadd.f32 0.0, %v204
  %v206 = vpop.f32.mrf.mxu0
  %207 = vmatprep.mubr.bf16.mxu0 0
  %208 = vmatmul.mubr.bf16.gmra.mxu0 %v83
  %v209 = vpop.f32.mrf.mxu0
  %v210 = vadd.f32 0.0, %v209
  %v211 = vpop.f32.mrf.mxu0
  %v212 = vpop.f32.mrf.mxu0
  %v213 = vadd.f32 0.0, %v212
  %v214 = vpop.f32.mrf.mxu0
  %215 = vmatprep.mubr.bf16.mxu0 0
  %216 = vmatmul.mubr.bf16.gmra.mxu0 %v84
  %v217 = vpop.f32.mrf.mxu0
  %v218 = vadd.f32 0.0, %v217
  %v219 = vpop.f32.mrf.mxu0
  %v220 = vpop.f32.mrf.mxu0
  %v221 = vadd.f32 0.0, %v220
  %v222 = vpop.f32.mrf.mxu0
  %223 = vmatprep.mubr.bf16.mxu0 0
  %224 = vmatmul.mubr.bf16.gmra.mxu0 %v85
  %v225 = vpop.f32.mrf.mxu0
  %v226 = vadd.f32 0.0, %v225
  %v227 = vpop.f32.mrf.mxu0
  %v228 = vpop.f32.mrf.mxu0
  %v229 = vadd.f32 0.0, %v228
  %v230 = vpop.f32.mrf.mxu0
  %231 = vmatprep.mubr.bf16.mxu0 0
  %232 = vmatmul.mubr.bf16.gmra.mxu0 %v86
  %v233 = vpop.f32.mrf.mxu0
  %v234 = vadd.f32 0.0, %v233
  %v235 = vpop.f32.mrf.mxu0
  %v236 = vpop.f32.mrf.mxu0
  %v237 = vadd.f32 0.0, %v236
  %v238 = vpop.f32.mrf.mxu0
  %239 = vdwg.mxu0
  %v240 = vpack.c.bf16 %v181, %v178
  %v241 = vpack.c.bf16 %v189, %v186
  %v242 = vpack.c.bf16 %v197, %v194
  %v243 = vpack.c.bf16 %v205, %v202
  %v244 = vpack.c.bf16 %v213, %v210
  %v245 = vpack.c.bf16 %v221, %v218
  %v246 = vpack.c.bf16 %v229, %v226
  %v247 = vpack.c.bf16 %v237, %v234
  %v256 = vunpack.c.l.b16 %v240
  %v257 = vunpack.c.h.b16 %v240
  %v258 = vunpack.c.l.b16 %v241
  %v259 = vunpack.c.h.b16 %v241
  %v260 = vunpack.c.l.b16 %v242
  %v261 = vunpack.c.h.b16 %v242
  %v262 = vunpack.c.l.b16 %v243
  %v263 = vunpack.c.h.b16 %v243
  %v264 = vunpack.c.l.b16 %v244
  %v265 = vunpack.c.h.b16 %v244
  %v266 = vunpack.c.l.b16 %v245
  %v267 = vunpack.c.h.b16 %v245
  %v268 = vunpack.c.l.b16 %v246
  %v269 = vunpack.c.h.b16 %v246
  %v270 = vunpack.c.l.b16 %v247
  %v271 = vunpack.c.h.b16 %v247
  %v272 = vpack.c.b16 %v256, %v256
  %v273 = vpack.c.b16 %v257, %v257
  %v274 = vpack.c.b16 %v258, %v258
  %v275 = vpack.c.b16 %v259, %v259
  %v276 = vpack.c.b16 %v260, %v260
  %v277 = vpack.c.b16 %v261, %v261
  %v278 = vpack.c.b16 %v262, %v262
  %v279 = vpack.c.b16 %v263, %v263
  %v280 = vpack.c.b16 %v264, %v264
  %v281 = vpack.c.b16 %v265, %v265
  %v282 = vpack.c.b16 %v266, %v266
  %v283 = vpack.c.b16 %v267, %v267
  %v284 = vpack.c.b16 %v268, %v268
  %v285 = vpack.c.b16 %v269, %v269
  %v286 = vpack.c.b16 %v270, %v270
  %v287 = vpack.c.b16 %v271, %v271
  %304 = vst [vmem:[%s2] sm:$0xf] %v272
  %305 = vst [vmem:[%s2 + $0x4] sm:$0xf] %v273
  %306 = vst [vmem:[%s2 + $0x8] sm:$0xf] %v274
  %307 = vst [vmem:[%s2 + $0xc] sm:$0xf] %v275
  %308 = vst [vmem:[%s2 + $0x10] sm:$0xf] %v276
  %309 = vst [vmem:[%s2 + $0x14] sm:$0xf] %v277
  %310 = vst [vmem:[%s2 + $0x18] sm:$0xf] %v278
  %311 = vst [vmem:[%s2 + $0x1c] sm:$0xf] %v279
  %312 = vst [vmem:[%s2 + $0x20] sm:$0xf] %v280
  %313 = vst [vmem:[%s2 + $0x24] sm:$0xf] %v281
  %314 = vst [vmem:[%s2 + $0x28] sm:$0xf] %v282
  %315 = vst [vmem:[%s2 + $0x2c] sm:$0xf] %v283
  %316 = vst [vmem:[%s2 + $0x30] sm:$0xf] %v284
  %317 = vst [vmem:[%s2 + $0x34] sm:$0xf] %v285
  %318 = vst [vmem:[%s2 + $0x38] sm:$0xf] %v286
  %319 = vst [vmem:[%s2 + $0x3c] sm:$0xf] %v287
  %v320 = vadd.f32 %v178, %v181
  %v321 = vadd.f32 %v320, %v186
  %v322 = vadd.f32 %v321, %v189
  %v323 = vadd.f32 %v322, %v194
  %v324 = vadd.f32 %v323, %v197
  %v325 = vadd.f32 %v324, %v202
  %v326 = vadd.f32 %v325, %v205
  %v327 = vadd.f32 %v326, %v210
  %v328 = vadd.f32 %v327, %v213
  %v329 = vadd.f32 %v328, %v218
  %v330 = vadd.f32 %v329, %v221
  %v331 = vadd.f32 %v330, %v226
  %v332 = vadd.f32 %v331, %v229
  %v333 = vadd.f32 %v332, %v234
  %v334 = vadd.f32 %v333, %v237
  %v335 = vrot.slane %v334, 4
  %v336 = vadd.f32 %v334, %v335
  %v337 = vrot.slane %v336, 2
  %v338 = vadd.f32 %v336, %v337
  %v339 = vrot.slane %v338, 1
  %v340 = vadd.f32 %v338, %v339
  %341 = vst [vmem:[%s3] sm:$0x1] %v340
  %v342 = vmul.f32 %v178, %v178
  %v343 = vmul.f32 %v181, %v181
  %v344 = vmul.f32 %v186, %v186
  %v345 = vmul.f32 %v189, %v189
  %v346 = vmul.f32 %v194, %v194
  %v347 = vmul.f32 %v197, %v197
  %v348 = vmul.f32 %v202, %v202
  %v349 = vmul.f32 %v205, %v205
  %v350 = vmul.f32 %v210, %v210
  %v351 = vmul.f32 %v213, %v213
  %v352 = vmul.f32 %v218, %v218
  %v353 = vmul.f32 %v221, %v221
  %v354 = vmul.f32 %v226, %v226
  %v355 = vmul.f32 %v229, %v229
  %v356 = vmul.f32 %v234, %v234
  %v357 = vmul.f32 %v237, %v237
  %v358 = vadd.f32 %v342, %v343
  %v359 = vadd.f32 %v358, %v344
  %v360 = vadd.f32 %v359, %v345
  %v361 = vadd.f32 %v360, %v346
  %v362 = vadd.f32 %v361, %v347
  %v363 = vadd.f32 %v362, %v348
  %v364 = vadd.f32 %v363, %v349
  %v365 = vadd.f32 %v364, %v350
  %v366 = vadd.f32 %v365, %v351
  %v367 = vadd.f32 %v366, %v352
  %v368 = vadd.f32 %v367, %v353
  %v369 = vadd.f32 %v368, %v354
  %v370 = vadd.f32 %v369, %v355
  %v371 = vadd.f32 %v370, %v356
  %v372 = vadd.f32 %v371, %v357
  %v373 = vrot.slane %v372, 4
  %v374 = vadd.f32 %v372, %v373
  %v375 = vrot.slane %v374, 2
  %v376 = vadd.f32 %v374, %v375
  %v377 = vrot.slane %v376, 1
  %v378 = vadd.f32 %v376, %v377
  %379 = vst [vmem:[%s4] sm:$0x1] %v378
  // Predicated region
  $region10: #{block_forward.8} parent=0 // pred_check
    _
  $region11: #{block_forward.8} parent=0 // pred_check_branch
    %381 = sbr.rel (0) target = $region13
  $region12: #{block_forward.8} parent=0 // pred_region
    _
  $region13: #{block_forward.8} parent=0 // pred_fallthru
    _
  // Predicated region
  $region14: #{block_forward.8} parent=0 // pred_check
    _
  $region15: #{block_forward.8} parent=0 // pred_check_branch
    %383 = sbr.rel (0) target = $region17
  $region16: #{block_forward.8} parent=0 // pred_region
    _
  $region17: #{block_forward.8} parent=0 // pred_fallthru
    _
  // Predicated region
  $region18: #{block_forward.8} parent=0 // pred_check
    _
  $region19: #{block_forward.8} parent=0 // pred_check_branch
    %385 = sbr.rel (0) target = $region21
  $region20: #{block_forward.8} parent=0 // pred_region
    _
  $region21: #{block_forward.8} parent=0 // pred_fallthru
    _
  // Predicated region
  $region22: #{block_forward.8} parent=0 // pred_check
    _
  $region23: #{block_forward.8} parent=0 // pred_check_branch
    %387 = sbr.rel (0) target = $region25
  $region24: #{block_forward.8} parent=0 // pred_region
    _
  $region25: #{block_forward.8} parent=0 // pred_fallthru
    _
  // Predicated region
  $region26: #{block_forward.8} parent=0 // pred_check
    _
  $region27: #{block_forward.8} parent=0 // pred_check_branch
    %389 = sbr.rel (0) target = $region29
  $region28: #{block_forward.8} parent=0 // pred_region
    _
  $region29: #{block_forward.8} parent=0 // pred_fallthru
    _
  // Predicated region
  $region30: #{block_forward.8} parent=0 // pred_check
    _
  $region31: #{block_forward.8} parent=0 // pred_check_branch
    %391 = sbr.rel (0) target = $region33
  $region32: #{block_forward.8} parent=0 // pred_region
    _
  $region33: #{block_forward.8} parent=0 // pred_fallthru
    _

// kernel: block_forward.6
$region0: #{block_forward.6}
  #allocation0 [shape = 'u32[]', space=smem, size = 0x4, offset = 0x4, fixed_abs, tag = 'smem constant byte address 0x4 - core index']
  #allocation1 [shape = 'u32[144,128]{1,0:T(1,128)}', space=vmem, size = 0x12000, scoped, tag = 'internal scratch']
  #allocation2 [shape = 'bf16[36,9,128]{2,1,0:T(8,128)(2,1)}', space=vmem, size = 0x24000, scoped, tag = 'scratch operand']
  #allocation3 [shape = 'f32[64,128]{1,0:T(8,128)}', space=vmem, size = 0x8000, scoped, tag = 'scratch operand']
  %s0 = inlined_call_operand.vmem [shape: bf16[2,36,9,128], index: 0, kind: input, shape index: {}]
  %s1 = inlined_call_operand.vmem [shape: f32[36,9,1], index: 1, kind: input, shape index: {}]
  %s2 = inlined_call_operand.vmem [shape: f32[1,1,128], index: 2, kind: input, shape index: {}]
  %s3 = inlined_call_operand.vmem [shape: f32[1,1,128], index: 3, kind: input, shape index: {}]
  %s4 = inlined_call_operand.vmem [shape: bf16[9,128,128], index: 4, kind: input, shape index: {}]
  %s5 = inlined_call_operand.vmem [shape: bf16[2,64,128], index: 5, kind: output, shape index: {0}]
  %s6 = inlined_call_operand.vmem [shape: f32[2,1,128], index: 6, kind: output, shape index: {1}]
  %s7 = inlined_call_operand.vmem [shape: f32[2,1,128], index: 7, kind: output, shape index: {2}]
  %8 = xla_tuple %s5, %s6, %s7
  %s9 = sld [smem:[#allocation0]]
  $region73: #{block_forward.6} parent=0
    _
  %s11 = ssub.s32 1, %s9
  %s12 = scalar_select 0, %s11, %s9
  loop: start=0, step=1, limit=4
  $region2: #{block_forward.6} parent=0 // loop_pre_header
    _
  $region3: #{block_forward.6} parent=0 // loop_header
    %s14 = sphi 0, %s18
    %p15 = scmp.ge.s32.totalorder %s14, 4
    %s21 = sphi 0, %s33
    %s22 = sphi 0, %s29
    %s23 = sphi 0, %s21
    %s24 = sphi 0, %s22
    %s25 = sphi 0, %s23
    %s26 = sphi 0, %s24
    %s36 = sphi 0, %s38
    %s39 = sphi 0, %s36
    %s40 = sphi 0, %s39
    %s56 = sphi 0, %s40
    %s60 = sphi 0, %s60
    %s62 = sphi 0, %s60
    %s63 = sphi 0, %s62
    %s77 = sphi 0, %s63
    %s81 = sphi 0, %s81
    %s83 = sphi 0, %s81
    %s84 = sphi 0, %s83
    %s98 = sphi 0, %s84
    %s102 = sphi 0, %s102
    %s104 = sphi 0, %s102
    %s105 = sphi 0, %s104
    %s119 = sphi 0, %s105
    %s125 = sphi 0, %s127
    %s128 = sphi 0, %s125
    %s129 = sphi 0, %s128
    %s145 = sphi 0, %s129
    %s153 = sphi 0, %s155
    %s156 = sphi 0, %s153
    %s157 = sphi 0, %s156
    %s173 = sphi 0, %s157
    %s181 = sphi 0, %s183
    %s184 = sphi 0, %s181
    %s185 = sphi 0, %s184
    %s201 = sphi 0, %s185
    %s209 = sphi 0, %s211
    %s212 = sphi 0, %s209
    %s213 = sphi 0, %s212
    %s229 = sphi 0, %s213
  $region4: #{block_forward.6} parent=0 // loop_header_branch
    %17 = sbr.rel (%p15) target = $region8
  $region5: #{block_forward.6} parent=0 // loop_body
    %s19 = ssub.s32 %s14, 1
    %s20 = ssub.s32 %s14, 2
    %s27 = sadd.s32 1, %s22
    %p28 = scmp.ge.s32.totalorder %s27, 1
    %s29 = scalar_select %p28, 0, %s27
    %s30 = sadd.s32 1, %s21
    %s31 = scalar_select %p28, %s30, %s21
    %p32 = scmp.ge.s32.totalorder %s31, 2
    %s33 = scalar_select %p32, 0, %s31
    %s34 = ssub.s32 %s21, %s33
    %p35 = scmp.eq.s32.totalorder %s34, 0
    %s37 = sadd.s32 %s36, 1
    %s38 = scalar_select %p35, %s36, %s37
    %p41 = pneg %p35
    %p42 = scmp.eq.s32.totalorder %s14, 1
    %p43 = por %p41, %p42
    %p44 = scmp.ne.s32.totalorder %s36, %s39
    %p45 = scmp.eq.s32.totalorder %s14, 0
    %p46 = por %p44, %p45
    %p47 = scmp.ne.s32.totalorder %s36, %s39
    %p48 = scmp.eq.s32.totalorder %s19, 1
    %p49 = por %p47, %p48
    %p50 = scmp.ne.s32.totalorder %s39, %s40
    %p51 = scmp.eq.s32.totalorder %s19, 0
    %p52 = por %p50, %p51
    %p53 = scmp.ne.s32.totalorder %s39, %s40
    %p54 = scmp.eq.s32.totalorder %s20, 1
    %p55 = por %p53, %p54
    %p57 = scmp.ne.s32.totalorder %s40, %s56
    %p58 = scmp.eq.s32.totalorder %s20, 0
    %p59 = por %p57, %p58
    %s61 = sadd.s32 %s60, 1
    %p64 = scmp.eq.s32.totalorder %s14, 1
    %p65 = scmp.ne.s32.totalorder %s60, %s62
    %p66 = scmp.eq.s32.totalorder %s14, 0
    %p67 = por %p65, %p66
    %p68 = scmp.ne.s32.totalorder %s60, %s62
    %p69 = scmp.eq.s32.totalorder %s19, 1
    %p70 = por %p68, %p69
    %p71 = scmp.ne.s32.totalorder %s62, %s63
    %p72 = scmp.eq.s32.totalorder %s19, 0
    %p73 = por %p71, %p72
    %p74 = scmp.ne.s32.totalorder %s62, %s63
    %p75 = scmp.eq.s32.totalorder %s20, 1
    %p76 = por %p74, %p75
    %p78 = scmp.ne.s32.totalorder %s63, %s77
    %p79 = scmp.eq.s32.totalorder %s20, 0
    %p80 = por %p78, %p79
    %s82 = sadd.s32 %s81, 1
    %p85 = scmp.eq.s32.totalorder %s14, 1
    %p86 = scmp.ne.s32.totalorder %s81, %s83
    %p87 = scmp.eq.s32.totalorder %s14, 0
    %p88 = por %p86, %p87
    %p89 = scmp.ne.s32.totalorder %s81, %s83
    %p90 = scmp.eq.s32.totalorder %s19, 1
    %p91 = por %p89, %p90
    %p92 = scmp.ne.s32.totalorder %s83, %s84
    %p93 = scmp.eq.s32.totalorder %s19, 0
    %p94 = por %p92, %p93
    %p95 = scmp.ne.s32.totalorder %s83, %s84
    %p96 = scmp.eq.s32.totalorder %s20, 1
    %p97 = por %p95, %p96
    %p99 = scmp.ne.s32.totalorder %s84, %s98
    %p100 = scmp.eq.s32.totalorder %s20, 0
    %p101 = por %p99, %p100
    %s103 = sadd.s32 %s102, 1
    %p106 = scmp.eq.s32.totalorder %s14, 1
    %p107 = scmp.ne.s32.totalorder %s102, %s104
    %p108 = scmp.eq.s32.totalorder %s14, 0
    %p109 = por %p107, %p108
    %p110 = scmp.ne.s32.totalorder %s102, %s104
    %p111 = scmp.eq.s32.totalorder %s19, 1
    %p112 = por %p110, %p111
    %p113 = scmp.ne.s32.totalorder %s104, %s105
    %p114 = scmp.eq.s32.totalorder %s19, 0
    %p115 = por %p113, %p114
    %p116 = scmp.ne.s32.totalorder %s104, %s105
    %p117 = scmp.eq.s32.totalorder %s20, 1
    %p118 = por %p116, %p117
    %p120 = scmp.ne.s32.totalorder %s105, %s119
    %p121 = scmp.eq.s32.totalorder %s20, 0
    %p122 = por %p120, %p121
    %s123 = ssub.s32 %s22, %s29
    %p124 = scmp.eq.s32.totalorder %s123, 0
    %s126 = sadd.s32 %s125, 1
    %s127 = scalar_select %p124, %s125, %s126
    %p130 = pneg %p124
    %p131 = scmp.eq.s32.totalorder %s14, 1
    %p132 = por %p130, %p131
    %p133 = scmp.ne.s32.totalorder %s125, %s128
    %p134 = scmp.eq.s32.totalorder %s14, 0
    %p135 = por %p133, %p134
    %p136 = scmp.ne.s32.totalorder %s125, %s128
    %p137 = scmp.eq.s32.totalorder %s19, 1
    %p138 = por %p136, %p137
    %p139 = scmp.ne.s32.totalorder %s128, %s129
    %p140 = scmp.eq.s32.totalorder %s19, 0
    %p141 = por %p139, %p140
    %p142 = scmp.ne.s32.totalorder %s128, %s129
    %p143 = scmp.eq.s32.totalorder %s20, 1
    %p144 = por %p142, %p143
    %p146 = scmp.ne.s32.totalorder %s129, %s145
    %p147 = scmp.eq.s32.totalorder %s20, 0
    %p148 = por %p146, %p147
    %s149 = ssub.s32 %s21, %s33
    %s150 = ssub.s32 %s22, %s29
    %s151 = sor.u32 %s149, %s150
    %p152 = scmp.eq.s32.totalorder %s151, 0
    %s154 = sadd.s32 %s153, 1
    %s155 = scalar_select %p152, %s153, %s154
    %p158 = pneg %p152
    %p159 = scmp.eq.s32.totalorder %s14, 1
    %p160 = por %p158, %p159
    %p161 = scmp.ne.s32.totalorder %s153, %s156
    %p162 = scmp.eq.s32.totalorder %s14, 0
    %p163 = por %p161, %p162
    %p164 = scmp.ne.s32.totalorder %s153, %s156
    %p165 = scmp.eq.s32.totalorder %s19, 1
    %p166 = por %p164, %p165
    %p167 = scmp.ne.s32.totalorder %s156, %s157
    %p168 = scmp.eq.s32.totalorder %s19, 0
    %p169 = por %p167, %p168
    %p170 = scmp.ne.s32.totalorder %s156, %s157
    %p171 = scmp.eq.s32.totalorder %s20, 1
    %p172 = por %p170, %p171
    %p174 = scmp.ne.s32.totalorder %s157, %s173
    %p175 = scmp.eq.s32.totalorder %s20, 0
    %p176 = por %p174, %p175
    %s177 = ssub.s32 %s21, %s33
    %s178 = ssub.s32 %s22, %s29
    %s179 = sor.u32 %s177, %s178
    %p180 = scmp.eq.s32.totalorder %s179, 0
    %s182 = sadd.s32 %s181, 1
    %s183 = scalar_select %p180, %s181, %s182
    %p186 = pneg %p180
    %p187 = scmp.eq.s32.totalorder %s14, 1
    %p188 = por %p186, %p187
    %p189 = scmp.ne.s32.totalorder %s181, %s184
    %p190 = scmp.eq.s32.totalorder %s14, 0
    %p191 = por %p189, %p190
    %p192 = scmp.ne.s32.totalorder %s181, %s184
    %p193 = scmp.eq.s32.totalorder %s19, 1
    %p194 = por %p192, %p193
    %p195 = scmp.ne.s32.totalorder %s184, %s185
    %p196 = scmp.eq.s32.totalorder %s19, 0
    %p197 = por %p195, %p196
    %p198 = scmp.ne.s32.totalorder %s184, %s185
    %p199 = scmp.eq.s32.totalorder %s20, 1
    %p200 = por %p198, %p199
    %p202 = scmp.ne.s32.totalorder %s185, %s201
    %p203 = scmp.eq.s32.totalorder %s20, 0
    %p204 = por %p202, %p203
    %s205 = ssub.s32 %s21, %s33
    %s206 = ssub.s32 %s22, %s29
    %s207 = sor.u32 %s205, %s206
    %p208 = scmp.eq.s32.totalorder %s207, 0
    %s210 = sadd.s32 %s209, 1
    %s211 = scalar_select %p208, %s209, %s210
    %p214 = pneg %p208
    %p215 = scmp.eq.s32.totalorder %s14, 1
    %p216 = por %p214, %p215
    %p217 = scmp.ne.s32.totalorder %s209, %s212
    %p218 = scmp.eq.s32.totalorder %s14, 0
    %p219 = por %p217, %p218
    %p220 = scmp.ne.s32.totalorder %s209, %s212
    %p221 = scmp.eq.s32.totalorder %s19, 1
    %p222 = por %p220, %p221
    %p223 = scmp.ne.s32.totalorder %s212, %s213
    %p224 = scmp.eq.s32.totalorder %s19, 0
    %p225 = por %p223, %p224
    %p226 = scmp.ne.s32.totalorder %s212, %s213
    %p227 = scmp.eq.s32.totalorder %s20, 1
    %p228 = por %p226, %p227
    %p230 = scmp.ne.s32.totalorder %s213, %s229
    %p231 = scmp.eq.s32.totalorder %s20, 0
    %p232 = por %p230, %p231
    %p233 = scmp.le.s32.totalorder 1, %s14
    %p234 = scmp.lt.s32.totalorder %s14, 3
    %p235 = pnand %p233, %p234
    %p236 = pneg %p235
    // Predicated region
    $region9: #{block_forward.6} parent=5 // pred_check
      _
    $region10: #{block_forward.6} parent=5 // pred_check_branch
      %238 = sbr.rel (%p235) target = $region12
    $region11: #{block_forward.6} parent=5 // pred_region
      %s239 = ssub.s32 %s14, 1
      // Predicated region
      $region13: #{block_forward.6} parent=11 // pred_check
        %p240 = pneg %p73
      $region14: #{block_forward.6} parent=11 // pred_check_branch
        %242 = sbr.rel (%p240) target = $region16
      $region15: #{block_forward.6} parent=11 // pred_region
        _
      $region16: #{block_forward.6} parent=11 // pred_fallthru
        _
      // Predicated region
      $region17: #{block_forward.6} parent=11 // pred_check
        %p243 = pneg %p94
      $region18: #{block_forward.6} parent=11 // pred_check_branch
        %245 = sbr.rel (%p243) target = $region20
      $region19: #{block_forward.6} parent=11 // pred_region
        _
      $region20: #{block_forward.6} parent=11 // pred_fallthru
        _
      // Predicated region
      $region21: #{block_forward.6} parent=11 // pred_check
        %p246 = pneg %p115
      $region22: #{block_forward.6} parent=11 // pred_check_branch
        %248 = sbr.rel (%p246) target = $region24
      $region23: #{block_forward.6} parent=11 // pred_region
        _
      $region24: #{block_forward.6} parent=11 // pred_fallthru
        _
      // Predicated region
      $region25: #{block_forward.6} parent=11 // pred_check
        %p249 = pneg %p141
      $region26: #{block_forward.6} parent=11 // pred_check_branch
        %251 = sbr.rel (%p249) target = $region28
      $region27: #{block_forward.6} parent=11 // pred_region
        %p252 = scmp.lt.s32.totalorder %s24, 0
        %s253 = scalar_select %p252, %s24, 0
        %s254 = smul.addr %s253, 4
        %s255 = scalar_lea.vmem %s4, %s254
      $region28: #{block_forward.6} parent=11 // pred_fallthru
        _
    $region12: #{block_forward.6} parent=5 // pred_fallthru
      _
    %p256 = scmp.lt.s32.totalorder %s14, 2
    // Predicated region
    $region29: #{block_forward.6} parent=5 // pred_check
      %p257 = pneg %p256
    $region30: #{block_forward.6} parent=5 // pred_check_branch
      %259 = sbr.rel (%p257) target = $region32
    $region31: #{block_forward.6} parent=5 // pred_region
      // Predicated region
      $region33: #{block_forward.6} parent=31 // pred_check
        %p260 = pneg %p46
      $region34: #{block_forward.6} parent=31 // pred_check_branch
        %262 = sbr.rel (%p260) target = $region36
      $region35: #{block_forward.6} parent=31 // pred_region
        %p263 = scmp.lt.s32.totalorder %s21, 1
        %s264 = scalar_select %p263, %s21, 1
        %s265 = smul.addr %s264, 72
        %s266 = smul.addr %s265, 4
        %s267 = scalar_lea.vmem %s0, %s266
      $region36: #{block_forward.6} parent=31 // pred_fallthru
        _
    $region32: #{block_forward.6} parent=5 // pred_fallthru
      _
    %p268 = scmp.le.s32.totalorder 1, %s14
    %p269 = scmp.lt.s32.totalorder %s14, 3
    %p270 = pnand %p268, %p269
    %p271 = pneg %p270
    // Predicated region
    $region37: #{block_forward.6} parent=5 // pred_check
      _
    $region38: #{block_forward.6} parent=5 // pred_check_branch
      %273 = sbr.rel (%p270) target = $region40
    $region39: #{block_forward.6} parent=5 // pred_region
      %s274 = ssub.s32 %s14, 1
      %p275 = scmp.lt.s32.totalorder %s23, 1
      %s276 = scalar_select %p275, %s23, 1
      %s277 = smul.addr %s276, 72
      %s278 = smul.addr %s277, 4
      %s279 = scalar_lea.vmem %s0, %s278
      %p280 = pneg %p52
      %p281 = pneg %p49
      %p282 = pneg %p73
      %p283 = pneg %p70
      %p284 = pneg %p94
      %p285 = pneg %p91
      %p286 = pneg %p115
      %p287 = pneg %p112
      %p288 = scmp.lt.s32.totalorder %s24, 0
      %s289 = scalar_select %p288, %s24, 0
      %s290 = smul.addr %s289, 4
      %s291 = scalar_lea.vmem %s4, %s290
      %p292 = pneg %p141
      %p293 = pneg %p138
      %p294 = pneg %p169
      %p295 = pneg %p166
      %p296 = scmp.lt.s32.totalorder %s23, 1
      %s297 = scalar_select %p296, %s23, 1
      %p298 = scmp.lt.s32.totalorder %s24, 0
      %s299 = scalar_select %p298, %s24, 0
      %s300 = smul.addr %s297, 8
      %s301 = sadd.s32 %s299, %s300
      %s302 = smul.addr %s301, 4
      %s303 = scalar_lea.vmem %s5, %s302
      %p304 = pneg %p197
      %p305 = pneg %p194
      %p306 = scmp.lt.s32.totalorder %s23, 1
      %s307 = scalar_select %p306, %s23, 1
      %p308 = scmp.lt.s32.totalorder %s24, 0
      %s309 = scalar_select %p308, %s24, 0
      %s310 = sadd.s32 %s309, %s307
      %s311 = scalar_lea.vmem %s6, %s310
      %p312 = pneg %p225
      %p313 = pneg %p222
      %p314 = scmp.lt.s32.totalorder %s23, 1
      %s315 = scalar_select %p314, %s23, 1
      %p316 = scmp.lt.s32.totalorder %s24, 0
      %s317 = scalar_select %p316, %s24, 0
      %s318 = sadd.s32 %s317, %s315
      %s319 = scalar_lea.vmem %s7, %s318
      %p320 = scmp.lt.s32.totalorder %s23, 1
      %s321 = scalar_select %p320, %s23, 1
      %s322 = smul.addr %s321, 72
      %s323 = smul.addr %s322, 4
      %s324 = scalar_lea.vmem %s0, %s323
      %p325 = scmp.lt.s32.totalorder %s24, 0
      %s326 = scalar_select %p325, %s24, 0
      %s327 = smul.addr %s326, 4
      %s328 = scalar_lea.vmem %s4, %s327
      %p329 = scmp.lt.s32.totalorder %s23, 1
      %s330 = scalar_select %p329, %s23, 1
      %p331 = scmp.lt.s32.totalorder %s24, 0
      %s332 = scalar_select %p331, %s24, 0
      %s333 = smul.addr %s330, 8
      %s334 = sadd.s32 %s332, %s333
      %s335 = smul.addr %s334, 4
      %s336 = scalar_lea.vmem %s5, %s335
      %p337 = scmp.lt.s32.totalorder %s23, 1
      %s338 = scalar_select %p337, %s23, 1
      %p339 = scmp.lt.s32.totalorder %s24, 0
      %s340 = scalar_select %p339, %s24, 0
      %s341 = sadd.s32 %s340, %s338
      %s342 = scalar_lea.vmem %s6, %s341
      %p343 = scmp.lt.s32.totalorder %s23, 1
      %s344 = scalar_select %p343, %s23, 1
      %p345 = scmp.lt.s32.totalorder %s24, 0
      %s346 = scalar_select %p345, %s24, 0
      %s347 = sadd.s32 %s346, %s344
      %s348 = scalar_lea.vmem %s7, %s347
      %p350 = scmp.eq.s32.totalorder %s24, 0
      // Predicated region
      $region41: #{block_forward.6} parent=39 // pred_check
        %p351 = pneg %p350
      $region42: #{block_forward.6} parent=39 // pred_check_branch
        %353 = sbr.rel (%p351) target = $region44
      $region43: #{block_forward.6} parent=39 // pred_region
        %v354 = vld [vmem:[%s324] sm:$0xf]
        %v355 = vld [vmem:[%s324 + $0x4] sm:$0x1]
        %v356 = vld [vmem:[%s324 + $0x8] sm:$0xf]
        %v357 = vld [vmem:[%s324 + $0xc] sm:$0x1]
        %v358 = vld [vmem:[%s324 + $0x10] sm:$0xf]
        %v359 = vld [vmem:[%s324 + $0x14] sm:$0x1]
        %v360 = vld [vmem:[%s324 + $0x18] sm:$0xf]
        %v361 = vld [vmem:[%s324 + $0x1c] sm:$0x1]
        %v362 = vld [vmem:[%s324 + $0x20] sm:$0xf]
        %v363 = vld [vmem:[%s324 + $0x24] sm:$0x1]
        %v364 = vld [vmem:[%s324 + $0x28] sm:$0xf]
        %v365 = vld [vmem:[%s324 + $0x2c] sm:$0x1]
        %v366 = vld [vmem:[%s324 + $0x30] sm:$0xf]
        %v367 = vld [vmem:[%s324 + $0x34] sm:$0x1]
        %v368 = vld [vmem:[%s324 + $0x38] sm:$0xf]
        %v369 = vld [vmem:[%s324 + $0x3c] sm:$0x1]
        %v370 = vld [vmem:[%s324 + $0x40] sm:$0xf]
        %v371 = vld [vmem:[%s324 + $0x44] sm:$0x1]
        %v372 = vld [vmem:[%s324 + $0x48] sm:$0xf]
        %v373 = vld [vmem:[%s324 + $0x4c] sm:$0x1]
        %v374 = vld [vmem:[%s324 + $0x50] sm:$0xf]
        %v375 = vld [vmem:[%s324 + $0x54] sm:$0x1]
        %v376 = vld [vmem:[%s324 + $0x58] sm:$0xf]
        %v377 = vld [vmem:[%s324 + $0x5c] sm:$0x1]
        %v378 = vld [vmem:[%s324 + $0x60] sm:$0xf]
        %v379 = vld [vmem:[%s324 + $0x64] sm:$0x1]
        %v380 = vld [vmem:[%s324 + $0x68] sm:$0xf]
        %v381 = vld [vmem:[%s324 + $0x6c] sm:$0x1]
        %v382 = vld [vmem:[%s324 + $0x70] sm:$0xf]
        %v383 = vld [vmem:[%s324 + $0x74] sm:$0x1]
        %v384 = vld [vmem:[%s324 + $0x78] sm:$0xf]
        %v385 = vld [vmem:[%s324 + $0x7c] sm:$0x1]
        %v386 = vld [vmem:[%s324 + $0x80] sm:$0xf]
        %v387 = vld [vmem:[%s324 + $0x84] sm:$0x1]
        %v388 = vld [vmem:[%s324 + $0x88] sm:$0xf]
        %v389 = vld [vmem:[%s324 + $0x8c] sm:$0x1]
        %v390 = vld [vmem:[%s324 + $0x90] sm:$0xf]
        %v391 = vld [vmem:[%s324 + $0x94] sm:$0x1]
        %v392 = vld [vmem:[%s324 + $0x98] sm:$0xf]
        %v393 = vld [vmem:[%s324 + $0x9c] sm:$0x1]
        %v394 = vld [vmem:[%s324 + $0xa0] sm:$0xf]
        %v395 = vld [vmem:[%s324 + $0xa4] sm:$0x1]
        %v396 = vld [vmem:[%s324 + $0xa8] sm:$0xf]
        %v397 = vld [vmem:[%s324 + $0xac] sm:$0x1]
        %v398 = vld [vmem:[%s324 + $0xb0] sm:$0xf]
        %v399 = vld [vmem:[%s324 + $0xb4] sm:$0x1]
        %v400 = vld [vmem:[%s324 + $0xb8] sm:$0xf]
        %v401 = vld [vmem:[%s324 + $0xbc] sm:$0x1]
        %v402 = vld [vmem:[%s324 + $0xc0] sm:$0xf]
        %v403 = vld [vmem:[%s324 + $0xc4] sm:$0x1]
        %v404 = vld [vmem:[%s324 + $0xc8] sm:$0xf]
        %v405 = vld [vmem:[%s324 + $0xcc] sm:$0x1]
        %v406 = vld [vmem:[%s324 + $0xd0] sm:$0xf]
        %v407 = vld [vmem:[%s324 + $0xd4] sm:$0x1]
        %v408 = vld [vmem:[%s324 + $0xd8] sm:$0xf]
        %v409 = vld [vmem:[%s324 + $0xdc] sm:$0x1]
        %v410 = vld [vmem:[%s324 + $0xe0] sm:$0xf]
        %v411 = vld [vmem:[%s324 + $0xe4] sm:$0x1]
        %v412 = vld [vmem:[%s324 + $0xe8] sm:$0xf]
        %v413 = vld [vmem:[%s324 + $0xec] sm:$0x1]
        %v414 = vld [vmem:[%s324 + $0xf0] sm:$0xf]
        %v415 = vld [vmem:[%s324 + $0xf4] sm:$0x1]
        %v416 = vld [vmem:[%s324 + $0xf8] sm:$0xf]
        %v417 = vld [vmem:[%s324 + $0xfc] sm:$0x1]
        %v418 = vld [vmem:[%s324 + $0x100] sm:$0xf]
        %v419 = vld [vmem:[%s324 + $0x104] sm:$0x1]
        %v420 = vld [vmem:[%s324 + $0x108] sm:$0xf]
        %v421 = vld [vmem:[%s324 + $0x10c] sm:$0x1]
        %v422 = vld [vmem:[%s324 + $0x110] sm:$0xf]
        %v423 = vld [vmem:[%s324 + $0x114] sm:$0x1]
        %v424 = vld [vmem:[%s324 + $0x118] sm:$0xf]
        %v425 = vld [vmem:[%s324 + $0x11c] sm:$0x1]
        %v426 = vunpack.c.l.bf16 %v354
        %v427 = vunpack.c.l.bf16 %v355
        %v428 = vunpack.c.l.bf16 %v356
        %v429 = vunpack.c.l.bf16 %v357
        %v430 = vunpack.c.l.bf16 %v358
        %v431 = vunpack.c.l.bf16 %v359
        %v432 = vunpack.c.l.bf16 %v360
        %v433 = vunpack.c.l.bf16 %v361
        %v434 = vunpack.c.l.bf16 %v362
        %v435 = vunpack.c.l.bf16 %v363
        %v436 = vunpack.c.l.bf16 %v364
        %v437 = vunpack.c.l.bf16 %v365
        %v438 = vunpack.c.l.bf16 %v366
        %v439 = vunpack.c.l.bf16 %v367
        %v440 = vunpack.c.l.bf16 %v368
        %v441 = vunpack.c.l.bf16 %v369
        %v442 = vunpack.c.l.bf16 %v370
        %v443 = vunpack.c.l.bf16 %v371
        %v444 = vunpack.c.l.bf16 %v372
        %v445 = vunpack.c.l.bf16 %v373
        %v446 = vunpack.c.l.bf16 %v374
        %v447 = vunpack.c.l.bf16 %v375
        %v448 = vunpack.c.l.bf16 %v376
        %v449 = vunpack.c.l.bf16 %v377
        %v450 = vunpack.c.l.bf16 %v378
        %v451 = vunpack.c.l.bf16 %v379
        %v452 = vunpack.c.l.bf16 %v380
        %v453 = vunpack.c.l.bf16 %v381
        %v454 = vunpack.c.l.bf16 %v382
        %v455 = vunpack.c.l.bf16 %v383
        %v456 = vunpack.c.l.bf16 %v384
        %v457 = vunpack.c.l.bf16 %v385
        %v458 = vunpack.c.l.bf16 %v386
        %v459 = vunpack.c.l.bf16 %v387
        %v460 = vunpack.c.l.bf16 %v388
        %v461 = vunpack.c.l.bf16 %v389
        %v462 = vunpack.c.l.bf16 %v390
        %v463 = vunpack.c.l.bf16 %v391
        %v464 = vunpack.c.l.bf16 %v392
        %v465 = vunpack.c.l.bf16 %v393
        %v466 = vunpack.c.l.bf16 %v394
        %v467 = vunpack.c.l.bf16 %v395
        %v468 = vunpack.c.l.bf16 %v396
        %v469 = vunpack.c.l.bf16 %v397
        %v470 = vunpack.c.l.bf16 %v398
        %v471 = vunpack.c.l.bf16 %v399
        %v472 = vunpack.c.l.bf16 %v400
        %v473 = vunpack.c.l.bf16 %v401
        %v474 = vunpack.c.l.bf16 %v402
        %v475 = vunpack.c.l.bf16 %v403
        %v476 = vunpack.c.l.bf16 %v404
        %v477 = vunpack.c.l.bf16 %v405
        %v478 = vunpack.c.l.bf16 %v406
        %v479 = vunpack.c.l.bf16 %v407
        %v480 = vunpack.c.l.bf16 %v408
        %v481 = vunpack.c.l.bf16 %v409
        %v482 = vunpack.c.l.bf16 %v410
        %v483 = vunpack.c.l.bf16 %v411
        %v484 = vunpack.c.l.bf16 %v412
        %v485 = vunpack.c.l.bf16 %v413
        %v486 = vunpack.c.l.bf16 %v414
        %v487 = vunpack.c.l.bf16 %v415
        %v488 = vunpack.c.l.bf16 %v416
        %v489 = vunpack.c.l.bf16 %v417
        %v490 = vunpack.c.l.bf16 %v418
        %v491 = vunpack.c.l.bf16 %v419
        %v492 = vunpack.c.l.bf16 %v420
        %v493 = vunpack.c.l.bf16 %v421
        %v494 = vunpack.c.l.bf16 %v422
        %v495 = vunpack.c.l.bf16 %v423
        %v496 = vunpack.c.l.bf16 %v424
        %v497 = vunpack.c.l.bf16 %v425
        %v498 = vld [vmem:[%s2] sm:$0x1]
        %v500 = vlaneseq
        %v501 = vshrl.u32 %v500, 7
        %v502 = vsub.s32 0, %v501
        %v503 = vrot.slane %v498, %v502
        %v505 = vmul.f32 %v426, %v503
        %v506 = vmul.f32 %v427, %v503
        %v507 = vmul.f32 %v428, %v503
        %v508 = vmul.f32 %v429, %v503
        %v509 = vmul.f32 %v430, %v503
        %v510 = vmul.f32 %v431, %v503
        %v511 = vmul.f32 %v432, %v503
        %v512 = vmul.f32 %v433, %v503
        %v513 = vmul.f32 %v434, %v503
        %v514 = vmul.f32 %v435, %v503
        %v515 = vmul.f32 %v436, %v503
        %v516 = vmul.f32 %v437, %v503
        %v517 = vmul.f32 %v438, %v503
        %v518 = vmul.f32 %v439, %v503
        %v519 = vmul.f32 %v440, %v503
        %v520 = vmul.f32 %v441, %v503
        %v521 = vmul.f32 %v442, %v503
        %v522 = vmul.f32 %v443, %v503
        %v523 = vmul.f32 %v444, %v503
        %v524 = vmul.f32 %v445, %v503
        %v525 = vmul.f32 %v446, %v503
        %v526 = vmul.f32 %v447, %v503
        %v527 = vmul.f32 %v448, %v503
        %v528 = vmul.f32 %v449, %v503
        %v529 = vmul.f32 %v450, %v503
        %v530 = vmul.f32 %v451, %v503
        %v531 = vmul.f32 %v452, %v503
        %v532 = vmul.f32 %v453, %v503
        %v533 = vmul.f32 %v454, %v503
        %v534 = vmul.f32 %v455, %v503
        %v535 = vmul.f32 %v456, %v503
        %v536 = vmul.f32 %v457, %v503
        %v537 = vmul.f32 %v458, %v503
        %v538 = vmul.f32 %v459, %v503
        %v539 = vmul.f32 %v460, %v503
        %v540 = vmul.f32 %v461, %v503
        %v541 = vmul.f32 %v462, %v503
        %v542 = vmul.f32 %v463, %v503
        %v543 = vmul.f32 %v464, %v503
        %v544 = vmul.f32 %v465, %v503
        %v545 = vmul.f32 %v466, %v503
        %v546 = vmul.f32 %v467, %v503
        %v547 = vmul.f32 %v468, %v503
        %v548 = vmul.f32 %v469, %v503
        %v549 = vmul.f32 %v470, %v503
        %v550 = vmul.f32 %v471, %v503
        %v551 = vmul.f32 %v472, %v503
        %v552 = vmul.f32 %v473, %v503
        %v553 = vmul.f32 %v474, %v503
        %v554 = vmul.f32 %v475, %v503
        %v555 = vmul.f32 %v476, %v503
        %v556 = vmul.f32 %v477, %v503
        %v557 = vmul.f32 %v478, %v503
        %v558 = vmul.f32 %v479, %v503
        %v559 = vmul.f32 %v480, %v503
        %v560 = vmul.f32 %v481, %v503
        %v561 = vmul.f32 %v482, %v503
        %v562 = vmul.f32 %v483, %v503
        %v563 = vmul.f32 %v484, %v503
        %v564 = vmul.f32 %v485, %v503
        %v565 = vmul.f32 %v486, %v503
        %v566 = vmul.f32 %v487, %v503
        %v567 = vmul.f32 %v488, %v503
        %v568 = vmul.f32 %v489, %v503
        %v569 = vmul.f32 %v490, %v503
        %v570 = vmul.f32 %v491, %v503
        %v571 = vmul.f32 %v492, %v503
        %v572 = vmul.f32 %v493, %v503
        %v573 = vmul.f32 %v494, %v503
        %v574 = vmul.f32 %v495, %v503
        %v575 = vmul.f32 %v496, %v503
        %v576 = vmul.f32 %v497, %v503
        %v577 = vld [vmem:[%s3] sm:$0x1]
        %v579 = vlaneseq
        %v580 = vshrl.u32 %v579, 7
        %v581 = vsub.s32 0, %v580
        %v582 = vrot.slane %v577, %v581
        %v584 = vadd.f32 %v505, %v582
        %v585 = vadd.f32 %v506, %v582
        %v586 = vadd.f32 %v507, %v582
        %v587 = vadd.f32 %v508, %v582
        %v588 = vadd.f32 %v509, %v582
        %v589 = vadd.f32 %v510, %v582
        %v590 = vadd.f32 %v511, %v582
        %v591 = vadd.f32 %v512, %v582
        %v592 = vadd.f32 %v513, %v582
        %v593 = vadd.f32 %v514, %v582
        %v594 = vadd.f32 %v515, %v582
        %v595 = vadd.f32 %v516, %v582
        %v596 = vadd.f32 %v517, %v582
        %v597 = vadd.f32 %v518, %v582
        %v598 = vadd.f32 %v519, %v582
        %v599 = vadd.f32 %v520, %v582
        %v600 = vadd.f32 %v521, %v582
        %v601 = vadd.f32 %v522, %v582
        %v602 = vadd.f32 %v523, %v582
        %v603 = vadd.f32 %v524, %v582
        %v604 = vadd.f32 %v525, %v582
        %v605 = vadd.f32 %v526, %v582
        %v606 = vadd.f32 %v527, %v582
        %v607 = vadd.f32 %v528, %v582
        %v608 = vadd.f32 %v529, %v582
        %v609 = vadd.f32 %v530, %v582
        %v610 = vadd.f32 %v531, %v582
        %v611 = vadd.f32 %v532, %v582
        %v612 = vadd.f32 %v533, %v582
        %v613 = vadd.f32 %v534, %v582
        %v614 = vadd.f32 %v535, %v582
        %v615 = vadd.f32 %v536, %v582
        %v616 = vadd.f32 %v537, %v582
        %v617 = vadd.f32 %v538, %v582
        %v618 = vadd.f32 %v539, %v582
        %v619 = vadd.f32 %v540, %v582
        %v620 = vadd.f32 %v541, %v582
        %v621 = vadd.f32 %v542, %v582
        %v622 = vadd.f32 %v543, %v582
        %v623 = vadd.f32 %v544, %v582
        %v624 = vadd.f32 %v545, %v582
        %v625 = vadd.f32 %v546, %v582
        %v626 = vadd.f32 %v547, %v582
        %v627 = vadd.f32 %v548, %v582
        %v628 = vadd.f32 %v549, %v582
        %v629 = vadd.f32 %v550, %v582
        %v630 = vadd.f32 %v551, %v582
        %v631 = vadd.f32 %v552, %v582
        %v632 = vadd.f32 %v553, %v582
        %v633 = vadd.f32 %v554, %v582
        %v634 = vadd.f32 %v555, %v582
        %v635 = vadd.f32 %v556, %v582
        %v636 = vadd.f32 %v557, %v582
        %v637 = vadd.f32 %v558, %v582
        %v638 = vadd.f32 %v559, %v582
        %v639 = vadd.f32 %v560, %v582
        %v640 = vadd.f32 %v561, %v582
        %v641 = vadd.f32 %v562, %v582
        %v642 = vadd.f32 %v563, %v582
        %v643 = vadd.f32 %v564, %v582
        %v644 = vadd.f32 %v565, %v582
        %v645 = vadd.f32 %v566, %v582
        %v646 = vadd.f32 %v567, %v582
        %v647 = vadd.f32 %v568, %v582
        %v648 = vadd.f32 %v569, %v582
        %v649 = vadd.f32 %v570, %v582
        %v650 = vadd.f32 %v571, %v582
        %v651 = vadd.f32 %v572, %v582
        %v652 = vadd.f32 %v573, %v582
        %v653 = vadd.f32 %v574, %v582
        %v654 = vadd.f32 %v575, %v582
        %v655 = vadd.f32 %v576, %v582
        %v656 = vmax.f32 %v584, 0.0
        %v657 = vmax.f32 %v585, 0.0
        %v658 = vmax.f32 %v586, 0.0
        %v659 = vmax.f32 %v587, 0.0
        %v660 = vmax.f32 %v588, 0.0
        %v661 = vmax.f32 %v589, 0.0
        %v662 = vmax.f32 %v590, 0.0
        %v663 = vmax.f32 %v591, 0.0
        %v664 = vmax.f32 %v592, 0.0
        %v665 = vmax.f32 %v593, 0.0
        %v666 = vmax.f32 %v594, 0.0
        %v667 = vmax.f32 %v595, 0.0
        %v668 = vmax.f32 %v596, 0.0
        %v669 = vmax.f32 %v597, 0.0
        %v670 = vmax.f32 %v598, 0.0
        %v671 = vmax.f32 %v599, 0.0
        %v672 = vmax.f32 %v600, 0.0
        %v673 = vmax.f32 %v601, 0.0
        %v674 = vmax.f32 %v602, 0.0
        %v675 = vmax.f32 %v603, 0.0
        %v676 = vmax.f32 %v604, 0.0
        %v677 = vmax.f32 %v605, 0.0
        %v678 = vmax.f32 %v606, 0.0
        %v679 = vmax.f32 %v607, 0.0
        %v680 = vmax.f32 %v608, 0.0
        %v681 = vmax.f32 %v609, 0.0
        %v682 = vmax.f32 %v610, 0.0
        %v683 = vmax.f32 %v611, 0.0
        %v684 = vmax.f32 %v612, 0.0
        %v685 = vmax.f32 %v613, 0.0
        %v686 = vmax.f32 %v614, 0.0
        %v687 = vmax.f32 %v615, 0.0
        %v688 = vmax.f32 %v616, 0.0
        %v689 = vmax.f32 %v617, 0.0
        %v690 = vmax.f32 %v618, 0.0
        %v691 = vmax.f32 %v619, 0.0
        %v692 = vmax.f32 %v620, 0.0
        %v693 = vmax.f32 %v621, 0.0
        %v694 = vmax.f32 %v622, 0.0
        %v695 = vmax.f32 %v623, 0.0
        %v696 = vmax.f32 %v624, 0.0
        %v697 = vmax.f32 %v625, 0.0
        %v698 = vmax.f32 %v626, 0.0
        %v699 = vmax.f32 %v627, 0.0
        %v700 = vmax.f32 %v628, 0.0
        %v701 = vmax.f32 %v629, 0.0
        %v702 = vmax.f32 %v630, 0.0
        %v703 = vmax.f32 %v631, 0.0
        %v704 = vmax.f32 %v632, 0.0
        %v705 = vmax.f32 %v633, 0.0
        %v706 = vmax.f32 %v634, 0.0
        %v707 = vmax.f32 %v635, 0.0
        %v708 = vmax.f32 %v636, 0.0
        %v709 = vmax.f32 %v637, 0.0
        %v710 = vmax.f32 %v638, 0.0
        %v711 = vmax.f32 %v639, 0.0
        %v712 = vmax.f32 %v640, 0.0
        %v713 = vmax.f32 %v641, 0.0
        %v714 = vmax.f32 %v642, 0.0
        %v715 = vmax.f32 %v643, 0.0
        %v716 = vmax.f32 %v644, 0.0
        %v717 = vmax.f32 %v645, 0.0
        %v718 = vmax.f32 %v646, 0.0
        %v719 = vmax.f32 %v647, 0.0
        %v720 = vmax.f32 %v648, 0.0
        %v721 = vmax.f32 %v649, 0.0
        %v722 = vmax.f32 %v650, 0.0
        %v723 = vmax.f32 %v651, 0.0
        %v724 = vmax.f32 %v652, 0.0
        %v725 = vmax.f32 %v653, 0.0
        %v726 = vmax.f32 %v654, 0.0
        %v727 = vmax.f32 %v655, 0.0
        %v728 = vld [vmem:[%s1] sm:$0xff]
        %v729 = vld [vmem:[%s1 + $0x8] sm:$0x1]
        %v730 = vld [vmem:[%s1 + $0x10] sm:$0xff]
        %v731 = vld [vmem:[%s1 + $0x18] sm:$0x1]
        %v732 = vld [vmem:[%s1 + $0x20] sm:$0xff]
        %v733 = vld [vmem:[%s1 + $0x28] sm:$0x1]
        %v734 = vld [vmem:[%s1 + $0x30] sm:$0xff]
        %v735 = vld [vmem:[%s1 + $0x38] sm:$0x1]
        %v736 = vld [vmem:[%s1 + $0x40] sm:$0xff]
        %v737 = vld [vmem:[%s1 + $0x48] sm:$0x1]
        %v738 = vld [vmem:[%s1 + $0x50] sm:$0xff]
        %v739 = vld [vmem:[%s1 + $0x58] sm:$0x1]
        %v740 = vld [vmem:[%s1 + $0x60] sm:$0xff]
        %v741 = vld [vmem:[%s1 + $0x68] sm:$0x1]
        %v742 = vld [vmem:[%s1 + $0x70] sm:$0xff]
        %v743 = vld [vmem:[%s1 + $0x78] sm:$0x1]
        %v744 = vld [vmem:[%s1 + $0x80] sm:$0xff]
        %v745 = vld [vmem:[%s1 + $0x88] sm:$0x1]
        %v746 = vld [vmem:[%s1 + $0x90] sm:$0xff]
        %v747 = vld [vmem:[%s1 + $0x98] sm:$0x1]
        %v748 = vld [vmem:[%s1 + $0xa0] sm:$0xff]
        %v749 = vld [vmem:[%s1 + $0xa8] sm:$0x1]
        %v750 = vld [vmem:[%s1 + $0xb0] sm:$0xff]
        %v751 = vld [vmem:[%s1 + $0xb8] sm:$0x1]
        %v752 = vld [vmem:[%s1 + $0xc0] sm:$0xff]
        %v753 = vld [vmem:[%s1 + $0xc8] sm:$0x1]
        %v754 = vld [vmem:[%s1 + $0xd0] sm:$0xff]
        %v755 = vld [vmem:[%s1 + $0xd8] sm:$0x1]
        %v756 = vld [vmem:[%s1 + $0xe0] sm:$0xff]
        %v757 = vld [vmem:[%s1 + $0xe8] sm:$0x1]
        %v758 = vld [vmem:[%s1 + $0xf0] sm:$0xff]
        %v759 = vld [vmem:[%s1 + $0xf8] sm:$0x1]
        %v760 = vld [vmem:[%s1 + $0x100] sm:$0xff]
        %v761 = vld [vmem:[%s1 + $0x108] sm:$0x1]
        %v762 = vld [vmem:[%s1 + $0x110] sm:$0xff]
        %v763 = vld [vmem:[%s1 + $0x118] sm:$0x1]
        %v764 = vld [vmem:[%s1 + $0x120] sm:$0xff]
        %v765 = vld [vmem:[%s1 + $0x128] sm:$0x1]
        %v766 = vld [vmem:[%s1 + $0x130] sm:$0xff]
        %v767 = vld [vmem:[%s1 + $0x138] sm:$0x1]
        %v768 = vld [vmem:[%s1 + $0x140] sm:$0xff]
        %v769 = vld [vmem:[%s1 + $0x148] sm:$0x1]
        %v770 = vld [vmem:[%s1 + $0x150] sm:$0xff]
        %v771 = vld [vmem:[%s1 + $0x158] sm:$0x1]
        %v772 = vld [vmem:[%s1 + $0x160] sm:$0xff]
        %v773 = vld [vmem:[%s1 + $0x168] sm:$0x1]
        %v774 = vld [vmem:[%s1 + $0x170] sm:$0xff]
        %v775 = vld [vmem:[%s1 + $0x178] sm:$0x1]
        %v776 = vld [vmem:[%s1 + $0x180] sm:$0xff]
        %v777 = vld [vmem:[%s1 + $0x188] sm:$0x1]
        %v778 = vld [vmem:[%s1 + $0x190] sm:$0xff]
        %v779 = vld [vmem:[%s1 + $0x198] sm:$0x1]
        %v780 = vld [vmem:[%s1 + $0x1a0] sm:$0xff]
        %v781 = vld [vmem:[%s1 + $0x1a8] sm:$0x1]
        %v782 = vld [vmem:[%s1 + $0x1b0] sm:$0xff]
        %v783 = vld [vmem:[%s1 + $0x1b8] sm:$0x1]
        %v784 = vld [vmem:[%s1 + $0x1c0] sm:$0xff]
        %v785 = vld [vmem:[%s1 + $0x1c8] sm:$0x1]
        %v786 = vld [vmem:[%s1 + $0x1d0] sm:$0xff]
        %v787 = vld [vmem:[%s1 + $0x1d8] sm:$0x1]
        %v788 = vld [vmem:[%s1 + $0x1e0] sm:$0xff]
        %v789 = vld [vmem:[%s1 + $0x1e8] sm:$0x1]
        %v790 = vld [vmem:[%s1 + $0x1f0] sm:$0xff]
        %v791 = vld [vmem:[%s1 + $0x1f8] sm:$0x1]
        %v792 = vld [vmem:[%s1 + $0x200] sm:$0xff]
        %v793 = vld [vmem:[%s1 + $0x208] sm:$0x1]
        %v794 = vld [vmem:[%s1 + $0x210] sm:$0xff]
        %v795 = vld [vmem:[%s1 + $0x218] sm:$0x1]
        %v796 = vld [vmem:[%s1 + $0x220] sm:$0xff]
        %v797 = vld [vmem:[%s1 + $0x228] sm:$0x1]
        %v798 = vld [vmem:[%s1 + $0x230] sm:$0xff]
        %v799 = vld [vmem:[%s1 + $0x238] sm:$0x1]
        %801 = vset.pattern.permute.xlu0 0
        %802 = vperm.xlu0 %801, %v728
        %v803 = vpop.permute.xlu0 %802
        %806 = vset.pattern.permute.xlu0 0
        %807 = vperm.xlu0 %806, %v729
        %v808 = vpop.permute.xlu0 %807
        %811 = vset.pattern.permute.xlu0 0
        %812 = vperm.xlu0 %811, %v730
        %v813 = vpop.permute.xlu0 %812
        %816 = vset.pattern.permute.xlu0 0
        %817 = vperm.xlu0 %816, %v731
        %v818 = vpop.permute.xlu0 %817
        %821 = vset.pattern.permute.xlu0 0
        %822 = vperm.xlu0 %821, %v732
        %v823 = vpop.permute.xlu0 %822
        %826 = vset.pattern.permute.xlu0 0
        %827 = vperm.xlu0 %826, %v733
        %v828 = vpop.permute.xlu0 %827
        %831 = vset.pattern.permute.xlu0 0
        %832 = vperm.xlu0 %831, %v734
        %v833 = vpop.permute.xlu0 %832
        %836 = vset.pattern.permute.xlu0 0
        %837 = vperm.xlu0 %836, %v735
        %v838 = vpop.permute.xlu0 %837
        %841 = vset.pattern.permute.xlu0 0
        %842 = vperm.xlu0 %841, %v736
        %v843 = vpop.permute.xlu0 %842
        %846 = vset.pattern.permute.xlu0 0
        %847 = vperm.xlu0 %846, %v737
        %v848 = vpop.permute.xlu0 %847
        %851 = vset.pattern.permute.xlu0 0
        %852 = vperm.xlu0 %851, %v738
        %v853 = vpop.permute.xlu0 %852
        %856 = vset.pattern.permute.xlu0 0
        %857 = vperm.xlu0 %856, %v739
        %v858 = vpop.permute.xlu0 %857
        %861 = vset.pattern.permute.xlu0 0
        %862 = vperm.xlu0 %861, %v740
        %v863 = vpop.permute.xlu0 %862
        %866 = vset.pattern.permute.xlu0 0
        %867 = vperm.xlu0 %866, %v741
        %v868 = vpop.permute.xlu0 %867
        %871 = vset.pattern.permute.xlu0 0
        %872 = vperm.xlu0 %871, %v742
        %v873 = vpop.permute.xlu0 %872
        %876 = vset.pattern.permute.xlu0 0
        %877 = vperm.xlu0 %876, %v743
        %v878 = vpop.permute.xlu0 %877
        %881 = vset.pattern.permute.xlu0 0
        %882 = vperm.xlu0 %881, %v744
        %v883 = vpop.permute.xlu0 %882
        %886 = vset.pattern.permute.xlu0 0
        %887 = vperm.xlu0 %886, %v745
        %v888 = vpop.permute.xlu0 %887
        %891 = vset.pattern.permute.xlu0 0
        %892 = vperm.xlu0 %891, %v746
        %v893 = vpop.permute.xlu0 %892
        %896 = vset.pattern.permute.xlu0 0
        %897 = vperm.xlu0 %896, %v747
        %v898 = vpop.permute.xlu0 %897
        %901 = vset.pattern.permute.xlu0 0
        %902 = vperm.xlu0 %901, %v748
        %v903 = vpop.permute.xlu0 %902
        %906 = vset.pattern.permute.xlu0 0
        %907 = vperm.xlu0 %906, %v749
        %v908 = vpop.permute.xlu0 %907
        %911 = vset.pattern.permute.xlu0 0
        %912 = vperm.xlu0 %911, %v750
        %v913 = vpop.permute.xlu0 %912
        %916 = vset.pattern.permute.xlu0 0
        %917 = vperm.xlu0 %916, %v751
        %v918 = vpop.permute.xlu0 %917
        %921 = vset.pattern.permute.xlu0 0
        %922 = vperm.xlu0 %921, %v752
        %v923 = vpop.permute.xlu0 %922
        %926 = vset.pattern.permute.xlu0 0
        %927 = vperm.xlu0 %926, %v753
        %v928 = vpop.permute.xlu0 %927
        %931 = vset.pattern.permute.xlu0 0
        %932 = vperm.xlu0 %931, %v754
        %v933 = vpop.permute.xlu0 %932
        %936 = vset.pattern.permute.xlu0 0
        %937 = vperm.xlu0 %936, %v755
        %v938 = vpop.permute.xlu0 %937
        %941 = vset.pattern.permute.xlu0 0
        %942 = vperm.xlu0 %941, %v756
        %v943 = vpop.permute.xlu0 %942
        %946 = vset.pattern.permute.xlu0 0
        %947 = vperm.xlu0 %946, %v757
        %v948 = vpop.permute.xlu0 %947
        %951 = vset.pattern.permute.xlu0 0
        %952 = vperm.xlu0 %951, %v758
        %v953 = vpop.permute.xlu0 %952
        %956 = vset.pattern.permute.xlu0 0
        %957 = vperm.xlu0 %956, %v759
        %v958 = vpop.permute.xlu0 %957
        %961 = vset.pattern.permute.xlu0 0
        %962 = vperm.xlu0 %961, %v760
        %v963 = vpop.permute.xlu0 %962
        %966 = vset.pattern.permute.xlu0 0
        %967 = vperm.xlu0 %966, %v761
        %v968 = vpop.permute.xlu0 %967
        %971 = vset.pattern.permute.xlu0 0
        %972 = vperm.xlu0 %971, %v762
        %v973 = vpop.permute.xlu0 %972
        %976 = vset.pattern.permute.xlu0 0
        %977 = vperm.xlu0 %976, %v763
        %v978 = vpop.permute.xlu0 %977
        %981 = vset.pattern.permute.xlu0 0
        %982 = vperm.xlu0 %981, %v764
        %v983 = vpop.permute.xlu0 %982
        %986 = vset.pattern.permute.xlu0 0
        %987 = vperm.xlu0 %986, %v765
        %v988 = vpop.permute.xlu0 %987
        %991 = vset.pattern.permute.xlu0 0
        %992 = vperm.xlu0 %991, %v766
        %v993 = vpop.permute.xlu0 %992
        %996 = vset.pattern.permute.xlu0 0
        %997 = vperm.xlu0 %996, %v767
        %v998 = vpop.permute.xlu0 %997
        %1001 = vset.pattern.permute.xlu0 0
        %1002 = vperm.xlu0 %1001, %v768
        %v1003 = vpop.permute.xlu0 %1002
        %1006 = vset.pattern.permute.xlu0 0
        %1007 = vperm.xlu0 %1006, %v769
        %v1008 = vpop.permute.xlu0 %1007
        %1011 = vset.pattern.permute.xlu0 0
        %1012 = vperm.xlu0 %1011, %v770
        %v1013 = vpop.permute.xlu0 %1012
        %1016 = vset.pattern.permute.xlu0 0
        %1017 = vperm.xlu0 %1016, %v771
        %v1018 = vpop.permute.xlu0 %1017
        %1021 = vset.pattern.permute.xlu0 0
        %1022 = vperm.xlu0 %1021, %v772
        %v1023 = vpop.permute.xlu0 %1022
        %1026 = vset.pattern.permute.xlu0 0
        %1027 = vperm.xlu0 %1026, %v773
        %v1028 = vpop.permute.xlu0 %1027
        %1031 = vset.pattern.permute.xlu0 0
        %1032 = vperm.xlu0 %1031, %v774
        %v1033 = vpop.permute.xlu0 %1032
        %1036 = vset.pattern.permute.xlu0 0
        %1037 = vperm.xlu0 %1036, %v775
        %v1038 = vpop.permute.xlu0 %1037
        %1041 = vset.pattern.permute.xlu0 0
        %1042 = vperm.xlu0 %1041, %v776
        %v1043 = vpop.permute.xlu0 %1042
        %1046 = vset.pattern.permute.xlu0 0
        %1047 = vperm.xlu0 %1046, %v777
        %v1048 = vpop.permute.xlu0 %1047
        %1051 = vset.pattern.permute.xlu0 0
        %1052 = vperm.xlu0 %1051, %v778
        %v1053 = vpop.permute.xlu0 %1052
        %1056 = vset.pattern.permute.xlu0 0
        %1057 = vperm.xlu0 %1056, %v779
        %v1058 = vpop.permute.xlu0 %1057
        %1061 = vset.pattern.permute.xlu0 0
        %1062 = vperm.xlu0 %1061, %v780
        %v1063 = vpop.permute.xlu0 %1062
        %1066 = vset.pattern.permute.xlu0 0
        %1067 = vperm.xlu0 %1066, %v781
        %v1068 = vpop.permute.xlu0 %1067
        %1071 = vset.pattern.permute.xlu0 0
        %1072 = vperm.xlu0 %1071, %v782
        %v1073 = vpop.permute.xlu0 %1072
        %1076 = vset.pattern.permute.xlu0 0
        %1077 = vperm.xlu0 %1076, %v783
        %v1078 = vpop.permute.xlu0 %1077
        %1081 = vset.pattern.permute.xlu0 0
        %1082 = vperm.xlu0 %1081, %v784
        %v1083 = vpop.permute.xlu0 %1082
        %1086 = vset.pattern.permute.xlu0 0
        %1087 = vperm.xlu0 %1086, %v785
        %v1088 = vpop.permute.xlu0 %1087
        %1091 = vset.pattern.permute.xlu0 0
        %1092 = vperm.xlu0 %1091, %v786
        %v1093 = vpop.permute.xlu0 %1092
        %1096 = vset.pattern.permute.xlu0 0
        %1097 = vperm.xlu0 %1096, %v787
        %v1098 = vpop.permute.xlu0 %1097
        %1101 = vset.pattern.permute.xlu0 0
        %1102 = vperm.xlu0 %1101, %v788
        %v1103 = vpop.permute.xlu0 %1102
        %1106 = vset.pattern.permute.xlu0 0
        %1107 = vperm.xlu0 %1106, %v789
        %v1108 = vpop.permute.xlu0 %1107
        %1111 = vset.pattern.permute.xlu0 0
        %1112 = vperm.xlu0 %1111, %v790
        %v1113 = vpop.permute.xlu0 %1112
        %1116 = vset.pattern.permute.xlu0 0
        %1117 = vperm.xlu0 %1116, %v791
        %v1118 = vpop.permute.xlu0 %1117
        %1121 = vset.pattern.permute.xlu0 0
        %1122 = vperm.xlu0 %1121, %v792
        %v1123 = vpop.permute.xlu0 %1122
        %1126 = vset.pattern.permute.xlu0 0
        %1127 = vperm.xlu0 %1126, %v793
        %v1128 = vpop.permute.xlu0 %1127
        %1131 = vset.pattern.permute.xlu0 0
        %1132 = vperm.xlu0 %1131, %v794
        %v1133 = vpop.permute.xlu0 %1132
        %1136 = vset.pattern.permute.xlu0 0
        %1137 = vperm.xlu0 %1136, %v795
        %v1138 = vpop.permute.xlu0 %1137
        %1141 = vset.pattern.permute.xlu0 0
        %1142 = vperm.xlu0 %1141, %v796
        %v1143 = vpop.permute.xlu0 %1142
        %1146 = vset.pattern.permute.xlu0 0
        %1147 = vperm.xlu0 %1146, %v797
        %v1148 = vpop.permute.xlu0 %1147
        %1151 = vset.pattern.permute.xlu0 0
        %1152 = vperm.xlu0 %1151, %v798
        %v1153 = vpop.permute.xlu0 %1152
        %1156 = vset.pattern.permute.xlu0 0
        %1157 = vperm.xlu0 %1156, %v799
        %v1158 = vpop.permute.xlu0 %1157
        %v1160 = vmul.f32 %v656, %v803
        %v1161 = vmul.f32 %v657, %v808
        %v1162 = vmul.f32 %v658, %v813
        %v1163 = vmul.f32 %v659, %v818
        %v1164 = vmul.f32 %v660, %v823
        %v1165 = vmul.f32 %v661, %v828
        %v1166 = vmul.f32 %v662, %v833
        %v1167 = vmul.f32 %v663, %v838
        %v1168 = vmul.f32 %v664, %v843
        %v1169 = vmul.f32 %v665, %v848
        %v1170 = vmul.f32 %v666, %v853
        %v1171 = vmul.f32 %v667, %v858
        %v1172 = vmul.f32 %v668, %v863
        %v1173 = vmul.f32 %v669, %v868
        %v1174 = vmul.f32 %v670, %v873
        %v1175 = vmul.f32 %v671, %v878
        %v1176 = vmul.f32 %v672, %v883
        %v1177 = vmul.f32 %v673, %v888
        %v1178 = vmul.f32 %v674, %v893
        %v1179 = vmul.f32 %v675, %v898
        %v1180 = vmul.f32 %v676, %v903
        %v1181 = vmul.f32 %v677, %v908
        %v1182 = vmul.f32 %v678, %v913
        %v1183 = vmul.f32 %v679, %v918
        %v1184 = vmul.f32 %v680, %v923
        %v1185 = vmul.f32 %v681, %v928
        %v1186 = vmul.f32 %v682, %v933
        %v1187 = vmul.f32 %v683, %v938
        %v1188 = vmul.f32 %v684, %v943
        %v1189 = vmul.f32 %v685, %v948
        %v1190 = vmul.f32 %v686, %v953
        %v1191 = vmul.f32 %v687, %v958
        %v1192 = vmul.f32 %v688, %v963
        %v1193 = vmul.f32 %v689, %v968
        %v1194 = vmul.f32 %v690, %v973
        %v1195 = vmul.f32 %v691, %v978
        %v1196 = vmul.f32 %v692, %v983
        %v1197 = vmul.f32 %v693, %v988
        %v1198 = vmul.f32 %v694, %v993
        %v1199 = vmul.f32 %v695, %v998
        %v1200 = vmul.f32 %v696, %v1003
        %v1201 = vmul.f32 %v697, %v1008
        %v1202 = vmul.f32 %v698, %v1013
        %v1203 = vmul.f32 %v699, %v1018
        %v1204 = vmul.f32 %v700, %v1023
        %v1205 = vmul.f32 %v701, %v1028
        %v1206 = vmul.f32 %v702, %v1033
        %v1207 = vmul.f32 %v703, %v1038
        %v1208 = vmul.f32 %v704, %v1043
        %v1209 = vmul.f32 %v705, %v1048
        %v1210 = vmul.f32 %v706, %v1053
        %v1211 = vmul.f32 %v707, %v1058
        %v1212 = vmul.f32 %v708, %v1063
        %v1213 = vmul.f32 %v709, %v1068
        %v1214 = vmul.f32 %v710, %v1073
        %v1215 = vmul.f32 %v711, %v1078
        %v1216 = vmul.f32 %v712, %v1083
        %v1217 = vmul.f32 %v713, %v1088
        %v1218 = vmul.f32 %v714, %v1093
        %v1219 = vmul.f32 %v715, %v1098
        %v1220 = vmul.f32 %v716, %v1103
        %v1221 = vmul.f32 %v717, %v1108
        %v1222 = vmul.f32 %v718, %v1113
        %v1223 = vmul.f32 %v719, %v1118
        %v1224 = vmul.f32 %v720, %v1123
        %v1225 = vmul.f32 %v721, %v1128
        %v1226 = vmul.f32 %v722, %v1133
        %v1227 = vmul.f32 %v723, %v1138
        %v1228 = vmul.f32 %v724, %v1143
        %v1229 = vmul.f32 %v725, %v1148
        %v1230 = vmul.f32 %v726, %v1153
        %v1231 = vmul.f32 %v727, %v1158
        %v1232 = vpack.c.bf16 %v1161, %v1160
        %v1233 = vpack.c.bf16 %v1163, %v1162
        %v1234 = vpack.c.bf16 %v1165, %v1164
        %v1235 = vpack.c.bf16 %v1167, %v1166
        %v1236 = vpack.c.bf16 %v1169, %v1168
        %v1237 = vpack.c.bf16 %v1171, %v1170
        %v1238 = vpack.c.bf16 %v1173, %v1172
        %v1239 = vpack.c.bf16 %v1175, %v1174
        %v1240 = vpack.c.bf16 %v1177, %v1176
        %v1241 = vpack.c.bf16 %v1179, %v1178
        %v1242 = vpack.c.bf16 %v1181, %v1180
        %v1243 = vpack.c.bf16 %v1183, %v1182
        %v1244 = vpack.c.bf16 %v1185, %v1184
        %v1245 = vpack.c.bf16 %v1187, %v1186
        %v1246 = vpack.c.bf16 %v1189, %v1188
        %v1247 = vpack.c.bf16 %v1191, %v1190
        %v1248 = vpack.c.bf16 %v1193, %v1192
        %v1249 = vpack.c.bf16 %v1195, %v1194
        %v1250 = vpack.c.bf16 %v1197, %v1196
        %v1251 = vpack.c.bf16 %v1199, %v1198
        %v1252 = vpack.c.bf16 %v1201, %v1200
        %v1253 = vpack.c.bf16 %v1203, %v1202
        %v1254 = vpack.c.bf16 %v1205, %v1204
        %v1255 = vpack.c.bf16 %v1207, %v1206
        %v1256 = vpack.c.bf16 %v1209, %v1208
        %v1257 = vpack.c.bf16 %v1211, %v1210
        %v1258 = vpack.c.bf16 %v1213, %v1212
        %v1259 = vpack.c.bf16 %v1215, %v1214
        %v1260 = vpack.c.bf16 %v1217, %v1216
        %v1261 = vpack.c.bf16 %v1219, %v1218
        %v1262 = vpack.c.bf16 %v1221, %v1220
        %v1263 = vpack.c.bf16 %v1223, %v1222
        %v1264 = vpack.c.bf16 %v1225, %v1224
        %v1265 = vpack.c.bf16 %v1227, %v1226
        %v1266 = vpack.c.bf16 %v1229, %v1228
        %v1267 = vpack.c.bf16 %v1231, %v1230
        %v1304 = vunpack.c.l.b16 %v1232
        %v1305 = vunpack.c.h.b16 %v1232
        %v1306 = vunpack.c.l.b16 %v1233
        %v1307 = vunpack.c.h.b16 %v1233
        %v1308 = vunpack.c.l.b16 %v1234
        %v1309 = vunpack.c.h.b16 %v1234
        %v1310 = vunpack.c.l.b16 %v1235
        %v1311 = vunpack.c.h.b16 %v1235
        %v1312 = vunpack.c.l.b16 %v1236
        %v1313 = vunpack.c.h.b16 %v1236
        %v1314 = vunpack.c.l.b16 %v1237
        %v1315 = vunpack.c.h.b16 %v1237
        %v1316 = vunpack.c.l.b16 %v1238
        %v1317 = vunpack.c.h.b16 %v1238
        %v1318 = vunpack.c.l.b16 %v1239
        %v1319 = vunpack.c.h.b16 %v1239
        %v1320 = vunpack.c.l.b16 %v1240
        %v1321 = vunpack.c.h.b16 %v1240
        %v1322 = vunpack.c.l.b16 %v1241
        %v1323 = vunpack.c.h.b16 %v1241
        %v1324 = vunpack.c.l.b16 %v1242
        %v1325 = vunpack.c.h.b16 %v1242
        %v1326 = vunpack.c.l.b16 %v1243
        %v1327 = vunpack.c.h.b16 %v1243
        %v1328 = vunpack.c.l.b16 %v1244
        %v1329 = vunpack.c.h.b16 %v1244
        %v1330 = vunpack.c.l.b16 %v1245
        %v1331 = vunpack.c.h.b16 %v1245
        %v1332 = vunpack.c.l.b16 %v1246
        %v1333 = vunpack.c.h.b16 %v1246
        %v1334 = vunpack.c.l.b16 %v1247
        %v1335 = vunpack.c.h.b16 %v1247
        %v1336 = vunpack.c.l.b16 %v1248
        %v1337 = vunpack.c.h.b16 %v1248
        %v1338 = vunpack.c.l.b16 %v1249
        %v1339 = vunpack.c.h.b16 %v1249
        %v1340 = vunpack.c.l.b16 %v1250
        %v1341 = vunpack.c.h.b16 %v1250
        %v1342 = vunpack.c.l.b16 %v1251
        %v1343 = vunpack.c.h.b16 %v1251
        %v1344 = vunpack.c.l.b16 %v1252
        %v1345 = vunpack.c.h.b16 %v1252
        %v1346 = vunpack.c.l.b16 %v1253
        %v1347 = vunpack.c.h.b16 %v1253
        %v1348 = vunpack.c.l.b16 %v1254
        %v1349 = vunpack.c.h.b16 %v1254
        %v1350 = vunpack.c.l.b16 %v1255
        %v1351 = vunpack.c.h.b16 %v1255
        %v1352 = vunpack.c.l.b16 %v1256
        %v1353 = vunpack.c.h.b16 %v1256
        %v1354 = vunpack.c.l.b16 %v1257
        %v1355 = vunpack.c.h.b16 %v1257
        %v1356 = vunpack.c.l.b16 %v1258
        %v1357 = vunpack.c.h.b16 %v1258
        %v1358 = vunpack.c.l.b16 %v1259
        %v1359 = vunpack.c.h.b16 %v1259
        %v1360 = vunpack.c.l.b16 %v1260
        %v1361 = vunpack.c.h.b16 %v1260
        %v1362 = vunpack.c.l.b16 %v1261
        %v1363 = vunpack.c.h.b16 %v1261
        %v1364 = vunpack.c.l.b16 %v1262
        %v1365 = vunpack.c.h.b16 %v1262
        %v1366 = vunpack.c.l.b16 %v1263
        %v1367 = vunpack.c.h.b16 %v1263
        %v1368 = vunpack.c.l.b16 %v1264
        %v1369 = vunpack.c.h.b16 %v1264
        %v1370 = vunpack.c.l.b16 %v1265
        %v1371 = vunpack.c.h.b16 %v1265
        %v1372 = vunpack.c.l.b16 %v1266
        %v1373 = vunpack.c.h.b16 %v1266
        %v1374 = vunpack.c.l.b16 %v1267
        %v1375 = vunpack.c.h.b16 %v1267
        %v1376 = vpack.c.b16 %v1304, %v1304
        %v1377 = vpack.c.b16 %v1305, %v1305
        %v1378 = vpack.c.b16 %v1306, %v1306
        %v1379 = vpack.c.b16 %v1307, %v1307
        %v1380 = vpack.c.b16 %v1308, %v1308
        %v1381 = vpack.c.b16 %v1309, %v1309
        %v1382 = vpack.c.b16 %v1310, %v1310
        %v1383 = vpack.c.b16 %v1311, %v1311
        %v1384 = vpack.c.b16 %v1312, %v1312
        %v1385 = vpack.c.b16 %v1313, %v1313
        %v1386 = vpack.c.b16 %v1314, %v1314
        %v1387 = vpack.c.b16 %v1315, %v1315
        %v1388 = vpack.c.b16 %v1316, %v1316
        %v1389 = vpack.c.b16 %v1317, %v1317
        %v1390 = vpack.c.b16 %v1318, %v1318
        %v1391 = vpack.c.b16 %v1319, %v1319
        %v1392 = vpack.c.b16 %v1320, %v1320
        %v1393 = vpack.c.b16 %v1321, %v1321
        %v1394 = vpack.c.b16 %v1322, %v1322
        %v1395 = vpack.c.b16 %v1323, %v1323
        %v1396 = vpack.c.b16 %v1324, %v1324
        %v1397 = vpack.c.b16 %v1325, %v1325
        %v1398 = vpack.c.b16 %v1326, %v1326
        %v1399 = vpack.c.b16 %v1327, %v1327
        %v1400 = vpack.c.b16 %v1328, %v1328
        %v1401 = vpack.c.b16 %v1329, %v1329
        %v1402 = vpack.c.b16 %v1330, %v1330
        %v1403 = vpack.c.b16 %v1331, %v1331
        %v1404 = vpack.c.b16 %v1332, %v1332
        %v1405 = vpack.c.b16 %v1333, %v1333
        %v1406 = vpack.c.b16 %v1334, %v1334
        %v1407 = vpack.c.b16 %v1335, %v1335
        %v1408 = vpack.c.b16 %v1336, %v1336
        %v1409 = vpack.c.b16 %v1337, %v1337
        %v1410 = vpack.c.b16 %v1338, %v1338
        %v1411 = vpack.c.b16 %v1339, %v1339
        %v1412 = vpack.c.b16 %v1340, %v1340
        %v1413 = vpack.c.b16 %v1341, %v1341
        %v1414 = vpack.c.b16 %v1342, %v1342
        %v1415 = vpack.c.b16 %v1343, %v1343
        %v1416 = vpack.c.b16 %v1344, %v1344
        %v1417 = vpack.c.b16 %v1345, %v1345
        %v1418 = vpack.c.b16 %v1346, %v1346
        %v1419 = vpack.c.b16 %v1347, %v1347
        %v1420 = vpack.c.b16 %v1348, %v1348
        %v1421 = vpack.c.b16 %v1349, %v1349
        %v1422 = vpack.c.b16 %v1350, %v1350
        %v1423 = vpack.c.b16 %v1351, %v1351
        %v1424 = vpack.c.b16 %v1352, %v1352
        %v1425 = vpack.c.b16 %v1353, %v1353
        %v1426 = vpack.c.b16 %v1354, %v1354
        %v1427 = vpack.c.b16 %v1355, %v1355
        %v1428 = vpack.c.b16 %v1356, %v1356
        %v1429 = vpack.c.b16 %v1357, %v1357
        %v1430 = vpack.c.b16 %v1358, %v1358
        %v1431 = vpack.c.b16 %v1359, %v1359
        %v1432 = vpack.c.b16 %v1360, %v1360
        %v1433 = vpack.c.b16 %v1361, %v1361
        %v1434 = vpack.c.b16 %v1362, %v1362
        %v1435 = vpack.c.b16 %v1363, %v1363
        %v1436 = vpack.c.b16 %v1364, %v1364
        %v1437 = vpack.c.b16 %v1365, %v1365
        %v1438 = vpack.c.b16 %v1366, %v1366
        %v1439 = vpack.c.b16 %v1367, %v1367
        %v1440 = vpack.c.b16 %v1368, %v1368
        %v1441 = vpack.c.b16 %v1369, %v1369
        %v1442 = vpack.c.b16 %v1370, %v1370
        %v1443 = vpack.c.b16 %v1371, %v1371
        %v1444 = vpack.c.b16 %v1372, %v1372
        %v1445 = vpack.c.b16 %v1373, %v1373
        %v1446 = vpack.c.b16 %v1374, %v1374
        %v1447 = vpack.c.b16 %v1375, %v1375
        %1520 = vst [vmem:[#allocation2] sm:$0xf] %v1376
        %vm1521 = vcmask 1040384
        %vm1522 = vsmask.f32 256
        %vm1523 = vmand %vm1521, %vm1522
        %v1524 = vld [vmem:[#allocation2 + $0x4] sm:$0x1]
        %v1525 = vsel %vm1523, %v1377, %v1524
        %1526 = vst [vmem:[#allocation2 + $0x4] sm:$0x1] %v1525
        %1527 = vst [vmem:[#allocation2 + $0x8] sm:$0xf] %v1378
        %v1528 = vld [vmem:[#allocation2 + $0xc] sm:$0x1]
        %v1529 = vsel %vm1523, %v1379, %v1528
        %1530 = vst [vmem:[#allocation2 + $0xc] sm:$0x1] %v1529
        %1531 = vst [vmem:[#allocation2 + $0x10] sm:$0xf] %v1380
        %v1532 = vld [vmem:[#allocation2 + $0x14] sm:$0x1]
        %v1533 = vsel %vm1523, %v1381, %v1532
        %1534 = vst [vmem:[#allocation2 + $0x14] sm:$0x1] %v1533
        %1535 = vst [vmem:[#allocation2 + $0x18] sm:$0xf] %v1382
        %v1536 = vld [vmem:[#allocation2 + $0x1c] sm:$0x1]
        %v1537 = vsel %vm1523, %v1383, %v1536
        %1538 = vst [vmem:[#allocation2 + $0x1c] sm:$0x1] %v1537
        %1539 = vst [vmem:[#allocation2 + $0x20] sm:$0xf] %v1384
        %v1540 = vld [vmem:[#allocation2 + $0x24] sm:$0x1]
        %v1541 = vsel %vm1523, %v1385, %v1540
        %1542 = vst [vmem:[#allocation2 + $0x24] sm:$0x1] %v1541
        %1543 = vst [vmem:[#allocation2 + $0x28] sm:$0xf] %v1386
        %v1544 = vld [vmem:[#allocation2 + $0x2c] sm:$0x1]
        %v1545 = vsel %vm1523, %v1387, %v1544
        %1546 = vst [vmem:[#allocation2 + $0x2c] sm:$0x1] %v1545
        %1547 = vst [vmem:[#allocation2 + $0x30] sm:$0xf] %v1388
        %v1548 = vld [vmem:[#allocation2 + $0x34] sm:$0x1]
        %v1549 = vsel %vm1523, %v1389, %v1548
        %1550 = vst [vmem:[#allocation2 + $0x34] sm:$0x1] %v1549
        %1551 = vst [vmem:[#allocation2 + $0x38] sm:$0xf] %v1390
        %v1552 = vld [vmem:[#allocation2 + $0x3c] sm:$0x1]
        %v1553 = vsel %vm1523, %v1391, %v1552
        %1554 = vst [vmem:[#allocation2 + $0x3c] sm:$0x1] %v1553
        %1555 = vst [vmem:[#allocation2 + $0x40] sm:$0xf] %v1392
        %v1556 = vld [vmem:[#allocation2 + $0x44] sm:$0x1]
        %v1557 = vsel %vm1523, %v1393, %v1556
        %1558 = vst [vmem:[#allocation2 + $0x44] sm:$0x1] %v1557
        %1559 = vst [vmem:[#allocation2 + $0x48] sm:$0xf] %v1394
        %v1560 = vld [vmem:[#allocation2 + $0x4c] sm:$0x1]
        %v1561 = vsel %vm1523, %v1395, %v1560
        %1562 = vst [vmem:[#allocation2 + $0x4c] sm:$0x1] %v1561
        %1563 = vst [vmem:[#allocation2 + $0x50] sm:$0xf] %v1396
        %v1564 = vld [vmem:[#allocation2 + $0x54] sm:$0x1]
        %v1565 = vsel %vm1523, %v1397, %v1564
        %1566 = vst [vmem:[#allocation2 + $0x54] sm:$0x1] %v1565
        %1567 = vst [vmem:[#allocation2 + $0x58] sm:$0xf] %v1398
        %v1568 = vld [vmem:[#allocation2 + $0x5c] sm:$0x1]
        %v1569 = vsel %vm1523, %v1399, %v1568
        %1570 = vst [vmem:[#allocation2 + $0x5c] sm:$0x1] %v1569
        %1571 = vst [vmem:[#allocation2 + $0x60] sm:$0xf] %v1400
        %v1572 = vld [vmem:[#allocation2 + $0x64] sm:$0x1]
        %v1573 = vsel %vm1523, %v1401, %v1572
        %1574 = vst [vmem:[#allocation2 + $0x64] sm:$0x1] %v1573
        %1575 = vst [vmem:[#allocation2 + $0x68] sm:$0xf] %v1402
        %v1576 = vld [vmem:[#allocation2 + $0x6c] sm:$0x1]
        %v1577 = vsel %vm1523, %v1403, %v1576
        %1578 = vst [vmem:[#allocation2 + $0x6c] sm:$0x1] %v1577
        %1579 = vst [vmem:[#allocation2 + $0x70] sm:$0xf] %v1404
        %v1580 = vld [vmem:[#allocation2 + $0x74] sm:$0x1]
        %v1581 = vsel %vm1523, %v1405, %v1580
        %1582 = vst [vmem:[#allocation2 + $0x74] sm:$0x1] %v1581
        %1583 = vst [vmem:[#allocation2 + $0x78] sm:$0xf] %v1406
        %v1584 = vld [vmem:[#allocation2 + $0x7c] sm:$0x1]
        %v1585 = vsel %vm1523, %v1407, %v1584
        %1586 = vst [vmem:[#allocation2 + $0x7c] sm:$0x1] %v1585
        %1587 = vst [vmem:[#allocation2 + $0x80] sm:$0xf] %v1408
        %v1588 = vld [vmem:[#allocation2 + $0x84] sm:$0x1]
        %v1589 = vsel %vm1523, %v1409, %v1588
        %1590 = vst [vmem:[#allocation2 + $0x84] sm:$0x1] %v1589
        %1591 = vst [vmem:[#allocation2 + $0x88] sm:$0xf] %v1410
        %v1592 = vld [vmem:[#allocation2 + $0x8c] sm:$0x1]
        %v1593 = vsel %vm1523, %v1411, %v1592
        %1594 = vst [vmem:[#allocation2 + $0x8c] sm:$0x1] %v1593
        %1595 = vst [vmem:[#allocation2 + $0x90] sm:$0xf] %v1412
        %v1596 = vld [vmem:[#allocation2 + $0x94] sm:$0x1]
        %v1597 = vsel %vm1523, %v1413, %v1596
        %1598 = vst [vmem:[#allocation2 + $0x94] sm:$0x1] %v1597
        %1599 = vst [vmem:[#allocation2 + $0x98] sm:$0xf] %v1414
        %v1600 = vld [vmem:[#allocation2 + $0x9c] sm:$0x1]
        %v1601 = vsel %vm1523, %v1415, %v1600
        %1602 = vst [vmem:[#allocation2 + $0x9c] sm:$0x1] %v1601
        %1603 = vst [vmem:[#allocation2 + $0xa0] sm:$0xf] %v1416
        %v1604 = vld [vmem:[#allocation2 + $0xa4] sm:$0x1]
        %v1605 = vsel %vm1523, %v1417, %v1604
        %1606 = vst [vmem:[#allocation2 + $0xa4] sm:$0x1] %v1605
        %1607 = vst [vmem:[#allocation2 + $0xa8] sm:$0xf] %v1418
        %v1608 = vld [vmem:[#allocation2 + $0xac] sm:$0x1]
        %v1609 = vsel %vm1523, %v1419, %v1608
        %1610 = vst [vmem:[#allocation2 + $0xac] sm:$0x1] %v1609
        %1611 = vst [vmem:[#allocation2 + $0xb0] sm:$0xf] %v1420
        %v1612 = vld [vmem:[#allocation2 + $0xb4] sm:$0x1]
        %v1613 = vsel %vm1523, %v1421, %v1612
        %1614 = vst [vmem:[#allocation2 + $0xb4] sm:$0x1] %v1613
        %1615 = vst [vmem:[#allocation2 + $0xb8] sm:$0xf] %v1422
        %v1616 = vld [vmem:[#allocation2 + $0xbc] sm:$0x1]
        %v1617 = vsel %vm1523, %v1423, %v1616
        %1618 = vst [vmem:[#allocation2 + $0xbc] sm:$0x1] %v1617
        %1619 = vst [vmem:[#allocation2 + $0xc0] sm:$0xf] %v1424
        %v1620 = vld [vmem:[#allocation2 + $0xc4] sm:$0x1]
        %v1621 = vsel %vm1523, %v1425, %v1620
        %1622 = vst [vmem:[#allocation2 + $0xc4] sm:$0x1] %v1621
        %1623 = vst [vmem:[#allocation2 + $0xc8] sm:$0xf] %v1426
        %v1624 = vld [vmem:[#allocation2 + $0xcc] sm:$0x1]
        %v1625 = vsel %vm1523, %v1427, %v1624
        %1626 = vst [vmem:[#allocation2 + $0xcc] sm:$0x1] %v1625
        %1627 = vst [vmem:[#allocation2 + $0xd0] sm:$0xf] %v1428
        %v1628 = vld [vmem:[#allocation2 + $0xd4] sm:$0x1]
        %v1629 = vsel %vm1523, %v1429, %v1628
        %1630 = vst [vmem:[#allocation2 + $0xd4] sm:$0x1] %v1629
        %1631 = vst [vmem:[#allocation2 + $0xd8] sm:$0xf] %v1430
        %v1632 = vld [vmem:[#allocation2 + $0xdc] sm:$0x1]
        %v1633 = vsel %vm1523, %v1431, %v1632
        %1634 = vst [vmem:[#allocation2 + $0xdc] sm:$0x1] %v1633
        %1635 = vst [vmem:[#allocation2 + $0xe0] sm:$0xf] %v1432
        %v1636 = vld [vmem:[#allocation2 + $0xe4] sm:$0x1]
        %v1637 = vsel %vm1523, %v1433, %v1636
        %1638 = vst [vmem:[#allocation2 + $0xe4] sm:$0x1] %v1637
        %1639 = vst [vmem:[#allocation2 + $0xe8] sm:$0xf] %v1434
        %v1640 = vld [vmem:[#allocation2 + $0xec] sm:$0x1]
        %v1641 = vsel %vm1523, %v1435, %v1640
        %1642 = vst [vmem:[#allocation2 + $0xec] sm:$0x1] %v1641
        %1643 = vst [vmem:[#allocation2 + $0xf0] sm:$0xf] %v1436
        %v1644 = vld [vmem:[#allocation2 + $0xf4] sm:$0x1]
        %v1645 = vsel %vm1523, %v1437, %v1644
        %1646 = vst [vmem:[#allocation2 + $0xf4] sm:$0x1] %v1645
        %1647 = vst [vmem:[#allocation2 + $0xf8] sm:$0xf] %v1438
        %v1648 = vld [vmem:[#allocation2 + $0xfc] sm:$0x1]
        %v1649 = vsel %vm1523, %v1439, %v1648
        %1650 = vst [vmem:[#allocation2 + $0xfc] sm:$0x1] %v1649
        %1651 = vst [vmem:[#allocation2 + $0x100] sm:$0xf] %v1440
        %v1652 = vld [vmem:[#allocation2 + $0x104] sm:$0x1]
        %v1653 = vsel %vm1523, %v1441, %v1652
        %1654 = vst [vmem:[#allocation2 + $0x104] sm:$0x1] %v1653
        %1655 = vst [vmem:[#allocation2 + $0x108] sm:$0xf] %v1442
        %v1656 = vld [vmem:[#allocation2 + $0x10c] sm:$0x1]
        %v1657 = vsel %vm1523, %v1443, %v1656
        %1658 = vst [vmem:[#allocation2 + $0x10c] sm:$0x1] %v1657
        %1659 = vst [vmem:[#allocation2 + $0x110] sm:$0xf] %v1444
        %v1660 = vld [vmem:[#allocation2 + $0x114] sm:$0x1]
        %v1661 = vsel %vm1523, %v1445, %v1660
        %1662 = vst [vmem:[#allocation2 + $0x114] sm:$0x1] %v1661
        %1663 = vst [vmem:[#allocation2 + $0x118] sm:$0xf] %v1446
        %v1664 = vld [vmem:[#allocation2 + $0x11c] sm:$0x1]
        %v1665 = vsel %vm1523, %v1447, %v1664
        %1666 = vst [vmem:[#allocation2 + $0x11c] sm:$0x1] %v1665
      $region44: #{block_forward.6} parent=39 // pred_fallthru
        _
      %v1667 = vld [vmem:[#allocation2] sm:$0xf]
      %v1668 = vld [vmem:[#allocation2 + $0x8] sm:$0xf]
      %v1669 = vld [vmem:[#allocation2 + $0x10] sm:$0xf]
      %v1670 = vld [vmem:[#allocation2 + $0x18] sm:$0xf]
      %v1671 = vld [vmem:[#allocation2 + $0x20] sm:$0xf]
      %v1672 = vld [vmem:[#allocation2 + $0x28] sm:$0xf]
      %v1673 = vld [vmem:[#allocation2 + $0x30] sm:$0xf]
      %v1674 = vld [vmem:[#allocation2 + $0x38] sm:$0xf]
      %v1675 = vld [vmem:[%s328] sm:$0xf]
      %v1676 = vld [vmem:[%s328 + $0x4] sm:$0xf]
      %v1677 = vld [vmem:[%s328 + $0x8] sm:$0xf]
      %v1678 = vld [vmem:[%s328 + $0xc] sm:$0xf]
      %v1679 = vld [vmem:[%s328 + $0x10] sm:$0xf]
      %v1680 = vld [vmem:[%s328 + $0x14] sm:$0xf]
      %v1681 = vld [vmem:[%s328 + $0x18] sm:$0xf]
      %v1682 = vld [vmem:[%s328 + $0x1c] sm:$0xf]
      %v1683 = vld [vmem:[%s328 + $0x20] sm:$0xf]
      %v1684 = vld [vmem:[%s328 + $0x24] sm:$0xf]
      %v1685 = vld [vmem:[%s328 + $0x28] sm:$0xf]
      %v1686 = vld [vmem:[%s328 + $0x2c] sm:$0xf]
      %v1687 = vld [vmem:[%s328 + $0x30] sm:$0xf]
      %v1688 = vld [vmem:[%s328 + $0x34] sm:$0xf]
      %v1689 = vld [vmem:[%s328 + $0x38] sm:$0xf]
      %v1690 = vld [vmem:[%s328 + $0x3c] sm:$0xf]
      %v1699 = vunpack.c.l.b16 %v1667
      %v1700 = vunpack.c.l.b16 %v1668
      %v1701 = vunpack.c.l.b16 %v1669
      %v1702 = vunpack.c.l.b16 %v1670
      %v1703 = vunpack.c.l.b16 %v1671
      %v1704 = vunpack.c.l.b16 %v1672
      %v1705 = vunpack.c.l.b16 %v1673
      %v1706 = vunpack.c.l.b16 %v1674
      %v1707 = vpack.c.b16 %v1700, %v1699
      %v1708 = vpack.c.b16 %v1702, %v1701
      %v1709 = vpack.c.b16 %v1704, %v1703
      %v1710 = vpack.c.b16 %v1706, %v1705
      %v1731 = vunpack.c.l.b16 %v1675
      %v1732 = vunpack.c.l.b16 %v1676
      %v1733 = vunpack.c.l.b16 %v1677
      %v1734 = vunpack.c.l.b16 %v1678
      %v1735 = vunpack.c.l.b16 %v1679
      %v1736 = vunpack.c.l.b16 %v1680
      %v1737 = vunpack.c.l.b16 %v1681
      %v1738 = vunpack.c.l.b16 %v1682
      %v1739 = vunpack.c.l.b16 %v1683
      %v1740 = vunpack.c.l.b16 %v1684
      %v1741 = vunpack.c.l.b16 %v1685
      %v1742 = vunpack.c.l.b16 %v1686
      %v1743 = vunpack.c.l.b16 %v1687
      %v1744 = vunpack.c.l.b16 %v1688
      %v1745 = vunpack.c.l.b16 %v1689
      %v1746 = vunpack.c.l.b16 %v1690
      %v1747 = vpack.c.b16 %v1732, %v1731
      %v1748 = vpack.c.b16 %v1734, %v1733
      %v1749 = vpack.c.b16 %v1736, %v1735
      %v1750 = vpack.c.b16 %v1738, %v1737
      %v1751 = vpack.c.b16 %v1740, %v1739
      %v1752 = vpack.c.b16 %v1742, %v1741
      %v1753 = vpack.c.b16 %v1744, %v1743
      %v1754 = vpack.c.b16 %v1746, %v1745
      %1763 = vmatprep.subr.bf16.mxu0 0
      %1764 = vmatpush1.bf16.msra.mxu0 %v1754
      %1765 = vmatprep.subr.bf16.mxu0 0
      %1766 = vmatpush1.bf16.msra.mxu0 %v1753
      %1767 = vmatprep.subr.bf16.mxu0 0
      %1768 = vmatpush1.bf16.msra.mxu0 %v1752
      %1769 = vmatprep.subr.bf16.mxu0 0
      %1770 = vmatpush1.bf16.msra.mxu0 %v1751
      %1771 = vmatprep.subr.bf16.mxu0 0
      %1772 = vmatpush1.bf16.msra.mxu0 %v1750
      %1773 = vmatprep.subr.bf16.mxu0 0
      %1774 = vmatpush1.bf16.msra.mxu0 %v1749
      %1775 = vmatprep.subr.bf16.mxu0 0
      %1776 = vmatpush1.bf16.msra.mxu0 %v1748
      %1777 = vmatprep.subr.bf16.mxu0 0
      %1778 = vmatpush1.bf16.msra.mxu0 %v1747
      %1779 = vmatprep.subr.bf16.mxu0 0
      %1780 = vmatpush2.bf16.msra.mxu0 0
      %1781 = vmatprep.subr.bf16.mxu0 0
      %1782 = vmatpush2.bf16.msra.mxu0 0
      %1783 = vmatprep.subr.bf16.mxu0 0
      %1784 = vmatpush2.bf16.msra.mxu0 0
      %1785 = vmatprep.subr.bf16.mxu0 0
      %1786 = vmatpush2.bf16.msra.mxu0 0
      %1787 = vmatprep.subr.bf16.mxu0 0
      %1788 = vmatpush2.bf16.msra.mxu0 0
      %1789 = vmatprep.subr.bf16.mxu0 0
      %1790 = vmatpush2.bf16.msra.mxu0 0
      %1791 = vmatprep.subr.bf16.mxu0 0
      %1792 = vmatpush2.bf16.msra.mxu0 0
      %1793 = vmatprep.subr.bf16.mxu0 0
      %1794 = vmatpush2.bf16.msra.mxu0 0
      %1795 = vmatprep.mubr.bf16.mxu0 0
      %1796 = vmatmul.mubr.bf16.gmra.mxu0 %v1707
      %v1797 = vpop.f32.mrf.mxu0
      %v1798 = vadd.f32 0.0, %v1797
      %v1799 = vpop.f32.mrf.mxu0
      %v1800 = vpop.f32.mrf.mxu0
      %v1801 = vadd.f32 0.0, %v1800
      %v1802 = vpop.f32.mrf.mxu0
      %1803 = vmatprep.mubr.bf16.mxu0 0
      %1804 = vmatmul.mubr.bf16.gmra.mxu0 %v1708
      %v1805 = vpop.f32.mrf.mxu0
      %v1806 = vadd.f32 0.0, %v1805
      %v1807 = vpop.f32.mrf.mxu0
      %v1808 = vpop.f32.mrf.mxu0
      %v1809 = vadd.f32 0.0, %v1808
      %v1810 = vpop.f32.mrf.mxu0
      %1811 = vmatprep.mubr.bf16.mxu0 0
      %1812 = vmatmul.mubr.bf16.gmra.mxu0 %v1709
      %v1813 = vpop.f32.mrf.mxu0
      %v1814 = vadd.f32 0.0, %v1813
      %v1815 = vpop.f32.mrf.mxu0
      %v1816 = vpop.f32.mrf.mxu0
      %v1817 = vadd.f32 0.0, %v1816
      %v1818 = vpop.f32.mrf.mxu0
      %1819 = vmatprep.mubr.bf16.mxu0 0
      %1820 = vmatmul.mubr.bf16.gmra.mxu0 %v1710
      %v1821 = vpop.f32.mrf.mxu0
      %v1822 = vadd.f32 0.0, %v1821
      %v1823 = vpop.f32.mrf.mxu0
      %v1824 = vpop.f32.mrf.mxu0
      %v1825 = vadd.f32 0.0, %v1824
      %v1826 = vpop.f32.mrf.mxu0
      %1827 = vdwg.mxu0
      %1828 = vst [vmem:[#allocation3] sm:$0xff] %v1798
      %1829 = vst [vmem:[#allocation3 + $0x8] sm:$0xff] %v1801
      %1830 = vst [vmem:[#allocation3 + $0x10] sm:$0xff] %v1806
      %1831 = vst [vmem:[#allocation3 + $0x18] sm:$0xff] %v1809
      %1832 = vst [vmem:[#allocation3 + $0x20] sm:$0xff] %v1814
      %1833 = vst [vmem:[#allocation3 + $0x28] sm:$0xff] %v1817
      %1834 = vst [vmem:[#allocation3 + $0x30] sm:$0xff] %v1822
      %1835 = vst [vmem:[#allocation3 + $0x38] sm:$0xff] %v1825
      %s1836 = scalar_lea.vmem [#allocation2], 72
      %v1837 = vld [vmem:[%s1836] sm:$0xf]
      %v1838 = vld [vmem:[%s1836 + $0x8] sm:$0xf]
      %v1839 = vld [vmem:[%s1836 + $0x10] sm:$0xf]
      %v1840 = vld [vmem:[%s1836 + $0x18] sm:$0xf]
      %v1841 = vld [vmem:[%s1836 + $0x20] sm:$0xf]
      %v1842 = vld [vmem:[%s1836 + $0x28] sm:$0xf]
      %v1843 = vld [vmem:[%s1836 + $0x30] sm:$0xf]
      %v1844 = vld [vmem:[%s1836 + $0x38] sm:$0xf]
      %s1845 = scalar_lea.vmem %s328, 64
      %v1846 = vld [vmem:[%s1845] sm:$0xf]
      %v1847 = vld [vmem:[%s1845 + $0x4] sm:$0xf]
      %v1848 = vld [vmem:[%s1845 + $0x8] sm:$0xf]
      %v1849 = vld [vmem:[%s1845 + $0xc] sm:$0xf]
      %v1850 = vld [vmem:[%s1845 + $0x10] sm:$0xf]
      %v1851 = vld [vmem:[%s1845 + $0x14] sm:$0xf]
      %v1852 = vld [vmem:[%s1845 + $0x18] sm:$0xf]
      %v1853 = vld [vmem:[%s1845 + $0x1c] sm:$0xf]
      %v1854 = vld [vmem:[%s1845 + $0x20] sm:$0xf]
      %v1855 = vld [vmem:[%s1845 + $0x24] sm:$0xf]
      %v1856 = vld [vmem:[%s1845 + $0x28] sm:$0xf]
      %v1857 = vld [vmem:[%s1845 + $0x2c] sm:$0xf]
      %v1858 = vld [vmem:[%s1845 + $0x30] sm:$0xf]
      %v1859 = vld [vmem:[%s1845 + $0x34] sm:$0xf]
      %v1860 = vld [vmem:[%s1845 + $0x38] sm:$0xf]
      %v1861 = vld [vmem:[%s1845 + $0x3c] sm:$0xf]
      %v1870 = vunpack.c.l.b16 %v1837
      %v1871 = vunpack.c.l.b16 %v1838
      %v1872 = vunpack.c.l.b16 %v1839
      %v1873 = vunpack.c.l.b16 %v1840
      %v1874 = vunpack.c.l.b16 %v1841
      %v1875 = vunpack.c.l.b16 %v1842
      %v1876 = vunpack.c.l.b16 %v1843
      %v1877 = vunpack.c.l.b16 %v1844
      %v1878 = vpack.c.b16 %v1871, %v1870
      %v1879 = vpack.c.b16 %v1873, %v1872
      %v1880 = vpack.c.b16 %v1875, %v1874
      %v1881 = vpack.c.b16 %v1877, %v1876
      %v1902 = vunpack.c.l.b16 %v1846
      %v1903 = vunpack.c.l.b16 %v1847
      %v1904 = vunpack.c.l.b16 %v1848
      %v1905 = vunpack.c.l.b16 %v1849
      %v1906 = vunpack.c.l.b16 %v1850
      %v1907 = vunpack.c.l.b16 %v1851
      %v1908 = vunpack.c.l.b16 %v1852
      %v1909 = vunpack.c.l.b16 %v1853
      %v1910 = vunpack.c.l.b16 %v1854
      %v1911 = vunpack.c.l.b16 %v1855
      %v1912 = vunpack.c.l.b16 %v1856
      %v1913 = vunpack.c.l.b16 %v1857
      %v1914 = vunpack.c.l.b16 %v1858
      %v1915 = vunpack.c.l.b16 %v1859
      %v1916 = vunpack.c.l.b16 %v1860
      %v1917 = vunpack.c.l.b16 %v1861
      %v1918 = vpack.c.b16 %v1903, %v1902
      %v1919 = vpack.c.b16 %v1905, %v1904
      %v1920 = vpack.c.b16 %v1907, %v1906
      %v1921 = vpack.c.b16 %v1909, %v1908
      %v1922 = vpack.c.b16 %v1911, %v1910
      %v1923 = vpack.c.b16 %v1913, %v1912
      %v1924 = vpack.c.b16 %v1915, %v1914
      %v1925 = vpack.c.b16 %v1917, %v1916
      %1934 = vmatprep.subr.bf16.mxu0 0
      %1935 = vmatpush1.bf16.msra.mxu0 %v1925
      %1936 = vmatprep.subr.bf16.mxu0 0
      %1937 = vmatpush1.bf16.msra.mxu0 %v1924
      %1938 = vmatprep.subr.bf16.mxu0 0
      %1939 = vmatpush1.bf16.msra.mxu0 %v1923
      %1940 = vmatprep.subr.bf16.mxu0 0
      %1941 = vmatpush1.bf16.msra.mxu0 %v1922
      %1942 = vmatprep.subr.bf16.mxu0 0
      %1943 = vmatpush1.bf16.msra.mxu0 %v1921
      %1944 = vmatprep.subr.bf16.mxu0 0
      %1945 = vmatpush1.bf16.msra.mxu0 %v1920
      %1946 = vmatprep.subr.bf16.mxu0 0
      %1947 = vmatpush1.bf16.msra.mxu0 %v1919
      %1948 = vmatprep.subr.bf16.mxu0 0
      %1949 = vmatpush1.bf16.msra.mxu0 %v1918
      %1950 = vmatprep.subr.bf16.mxu0 0
      %1951 = vmatpush2.bf16.msra.mxu0 0
      %1952 = vmatprep.subr.bf16.mxu0 0
      %1953 = vmatpush2.bf16.msra.mxu0 0
      %1954 = vmatprep.subr.bf16.mxu0 0
      %1955 = vmatpush2.bf16.msra.mxu0 0
      %1956 = vmatprep.subr.bf16.mxu0 0
      %1957 = vmatpush2.bf16.msra.mxu0 0
      %1958 = vmatprep.subr.bf16.mxu0 0
      %1959 = vmatpush2.bf16.msra.mxu0 0
      %1960 = vmatprep.subr.bf16.mxu0 0
      %1961 = vmatpush2.bf16.msra.mxu0 0
      %1962 = vmatprep.subr.bf16.mxu0 0
      %1963 = vmatpush2.bf16.msra.mxu0 0
      %1964 = vmatprep.subr.bf16.mxu0 0
      %1965 = vmatpush2.bf16.msra.mxu0 0
      %1966 = vmatprep.mubr.bf16.mxu0 0
      %1967 = vmatmul.mubr.bf16.gmra.mxu0 %v1878
      %v1968 = vpop.f32.mrf.mxu0
      %v1969 = vadd.f32 0.0, %v1968
      %v1970 = vpop.f32.mrf.mxu0
      %v1971 = vpop.f32.mrf.mxu0
      %v1972 = vadd.f32 0.0, %v1971
      %v1973 = vpop.f32.mrf.mxu0
      %1974 = vmatprep.mubr.bf16.mxu0 0
      %1975 = vmatmul.mubr.bf16.gmra.mxu0 %v1879
      %v1976 = vpop.f32.mrf.mxu0
      %v1977 = vadd.f32 0.0, %v1976
      %v1978 = vpop.f32.mrf.mxu0
      %v1979 = vpop.f32.mrf.mxu0
      %v1980 = vadd.f32 0.0, %v1979
      %v1981 = vpop.f32.mrf.mxu0
      %1982 = vmatprep.mubr.bf16.mxu0 0
      %1983 = vmatmul.mubr.bf16.gmra.mxu0 %v1880
      %v1984 = vpop.f32.mrf.mxu0
      %v1985 = vadd.f32 0.0, %v1984
      %v1986 = vpop.f32.mrf.mxu0
      %v1987 = vpop.f32.mrf.mxu0
      %v1988 = vadd.f32 0.0, %v1987
      %v1989 = vpop.f32.mrf.mxu0
      %1990 = vmatprep.mubr.bf16.mxu0 0
      %1991 = vmatmul.mubr.bf16.gmra.mxu0 %v1881
      %v1992 = vpop.f32.mrf.mxu0
      %v1993 = vadd.f32 0.0, %v1992
      %v1994 = vpop.f32.mrf.mxu0
      %v1995 = vpop.f32.mrf.mxu0
      %v1996 = vadd.f32 0.0, %v1995
      %v1997 = vpop.f32.mrf.mxu0
      %1998 = vdwg.mxu0
      %v1999 = vld [vmem:[#allocation3] sm:$0xff]
      %v2000 = vld [vmem:[#allocation3 + $0x8] sm:$0xff]
      %v2001 = vld [vmem:[#allocation3 + $0x10] sm:$0xff]
      %v2002 = vld [vmem:[#allocation3 + $0x18] sm:$0xff]
      %v2003 = vld [vmem:[#allocation3 + $0x20] sm:$0xff]
      %v2004 = vld [vmem:[#allocation3 + $0x28] sm:$0xff]
      %v2005 = vld [vmem:[#allocation3 + $0x30] sm:$0xff]
      %v2006 = vld [vmem:[#allocation3 + $0x38] sm:$0xff]
      %v2007 = vadd.f32 %v1999, %v1969
      %v2008 = vadd.f32 %v2000, %v1972
      %v2009 = vadd.f32 %v2001, %v1977
      %v2010 = vadd.f32 %v2002, %v1980
      %v2011 = vadd.f32 %v2003, %v1985
      %v2012 = vadd.f32 %v2004, %v1988
      %v2013 = vadd.f32 %v2005, %v1993
      %v2014 = vadd.f32 %v2006, %v1996
      %2015 = vst [vmem:[#allocation3] sm:$0xff] %v2007
      %2016 = vst [vmem:[#allocation3 + $0x8] sm:$0xff] %v2008
      %2017 = vst [vmem:[#allocation3 + $0x10] sm:$0xff] %v2009
      %2018 = vst [vmem:[#allocation3 + $0x18] sm:$0xff] %v2010
      %2019 = vst [vmem:[#allocation3 + $0x20] sm:$0xff] %v2011
      %2020 = vst [vmem:[#allocation3 + $0x28] sm:$0xff] %v2012
      %2021 = vst [vmem:[#allocation3 + $0x30] sm:$0xff] %v2013
      %2022 = vst [vmem:[#allocation3 + $0x38] sm:$0xff] %v2014
      %v2023 = vld [vmem:[#allocation2] sm:$0xf]
      %v2024 = vld [vmem:[#allocation2 + $0x4] sm:$0x1]
      %v2025 = vld [vmem:[#allocation2 + $0x8] sm:$0xf]
      %v2026 = vld [vmem:[#allocation2 + $0xc] sm:$0x1]
      %v2027 = vld [vmem:[#allocation2 + $0x10] sm:$0xf]
      %v2028 = vld [vmem:[#allocation2 + $0x14] sm:$0x1]
      %v2029 = vld [vmem:[#allocation2 + $0x18] sm:$0xf]
      %v2030 = vld [vmem:[#allocation2 + $0x1c] sm:$0x1]
      %v2031 = vld [vmem:[#allocation2 + $0x20] sm:$0xf]
      %v2032 = vld [vmem:[#allocation2 + $0x24] sm:$0x1]
      %v2033 = vld [vmem:[#allocation2 + $0x28] sm:$0xf]
      %v2034 = vld [vmem:[#allocation2 + $0x2c] sm:$0x1]
      %v2035 = vld [vmem:[#allocation2 + $0x30] sm:$0xf]
      %v2036 = vld [vmem:[#allocation2 + $0x34] sm:$0x1]
      %v2037 = vld [vmem:[#allocation2 + $0x38] sm:$0xf]
      %v2038 = vld [vmem:[#allocation2 + $0x3c] sm:$0x1]
      %vm2039 = vsmask.f32 3328
      %vm2040 = vsmask.f32 7440
      %vm2041 = vmor %vm2039, %vm2040
      %v2043 = vshrl.u32 %v2023, 16
      %v2045 = vrot.slane %v2043, 4
      %v2046 = vshll.u32 %v2023, 16
      %v2048 = vrot.slane %v2046, 5
      %v2049 = vor.u32 %v2045, %v2048
      %v2050 = vrot.slane %v2049, 4
      %v2052 = vshll.u32 %v2024, 16
      %v2054 = vrot.slane %v2052, 5
      %v2055 = vsel %vm2041, %v2050, %v2054
      %v2057 = vshrl.u32 %v2025, 16
      %v2059 = vrot.slane %v2057, 4
      %v2060 = vshll.u32 %v2025, 16
      %v2062 = vrot.slane %v2060, 5
      %v2063 = vor.u32 %v2059, %v2062
      %v2064 = vrot.slane %v2063, 4
      %v2066 = vshll.u32 %v2026, 16
      %v2068 = vrot.slane %v2066, 5
      %v2069 = vsel %vm2041, %v2064, %v2068
      %v2071 = vshrl.u32 %v2027, 16
      %v2073 = vrot.slane %v2071, 4
      %v2074 = vshll.u32 %v2027, 16
      %v2076 = vrot.slane %v2074, 5
      %v2077 = vor.u32 %v2073, %v2076
      %v2078 = vrot.slane %v2077, 4
      %v2080 = vshll.u32 %v2028, 16
      %v2082 = vrot.slane %v2080, 5
      %v2083 = vsel %vm2041, %v2078, %v2082
      %v2085 = vshrl.u32 %v2029, 16
      %v2087 = vrot.slane %v2085, 4
      %v2088 = vshll.u32 %v2029, 16
      %v2090 = vrot.slane %v2088, 5
      %v2091 = vor.u32 %v2087, %v2090
      %v2092 = vrot.slane %v2091, 4
      %v2094 = vshll.u32 %v2030, 16
      %v2096 = vrot.slane %v2094, 5
      %v2097 = vsel %vm2041, %v2092, %v2096
      %v2099 = vshrl.u32 %v2031, 16
      %v2101 = vrot.slane %v2099, 4
      %v2102 = vshll.u32 %v2031, 16
      %v2104 = vrot.slane %v2102, 5
      %v2105 = vor.u32 %v2101, %v2104
      %v2106 = vrot.slane %v2105, 4
      %v2108 = vshll.u32 %v2032, 16
      %v2110 = vrot.slane %v2108, 5
      %v2111 = vsel %vm2041, %v2106, %v2110
      %v2113 = vshrl.u32 %v2033, 16
      %v2115 = vrot.slane %v2113, 4
      %v2116 = vshll.u32 %v2033, 16
      %v2118 = vrot.slane %v2116, 5
      %v2119 = vor.u32 %v2115, %v2118
      %v2120 = vrot.slane %v2119, 4
      %v2122 = vshll.u32 %v2034, 16
      %v2124 = vrot.slane %v2122, 5
      %v2125 = vsel %vm2041, %v2120, %v2124
      %v2127 = vshrl.u32 %v2035, 16
      %v2129 = vrot.slane %v2127, 4
      %v2130 = vshll.u32 %v2035, 16
      %v2132 = vrot.slane %v2130, 5
      %v2133 = vor.u32 %v2129, %v2132
      %v2134 = vrot.slane %v2133, 4
      %v2136 = vshll.u32 %v2036, 16
      %v2138 = vrot.slane %v2136, 5
      %v2139 = vsel %vm2041, %v2134, %v2138
      %v2141 = vshrl.u32 %v2037, 16
      %v2143 = vrot.slane %v2141, 4
      %v2144 = vshll.u32 %v2037, 16
      %v2146 = vrot.slane %v2144, 5
      %v2147 = vor.u32 %v2143, %v2146
      %v2148 = vrot.slane %v2147, 4
      %v2150 = vshll.u32 %v2038, 16
      %v2152 = vrot.slane %v2150, 5
      %v2153 = vsel %vm2041, %v2148, %v2152
      %s2154 = scalar_lea.vmem %s328, 128
      %v2155 = vld [vmem:[%s2154] sm:$0xf]
      %v2156 = vld [vmem:[%s2154 + $0x4] sm:$0xf]
      %v2157 = vld [vmem:[%s2154 + $0x8] sm:$0xf]
      %v2158 = vld [vmem:[%s2154 + $0xc] sm:$0xf]
      %v2159 = vld [vmem:[%s2154 + $0x10] sm:$0xf]
      %v2160 = vld [vmem:[%s2154 + $0x14] sm:$0xf]
      %v2161 = vld [vmem:[%s2154 + $0x18] sm:$0xf]
      %v2162 = vld [vmem:[%s2154 + $0x1c] sm:$0xf]
      %v2163 = vld [vmem:[%s2154 + $0x20] sm:$0xf]
      %v2164 = vld [vmem:[%s2154 + $0x24] sm:$0xf]
      %v2165 = vld [vmem:[%s2154 + $0x28] sm:$0xf]
      %v2166 = vld [vmem:[%s2154 + $0x2c] sm:$0xf]
      %v2167 = vld [vmem:[%s2154 + $0x30] sm:$0xf]
      %v2168 = vld [vmem:[%s2154 + $0x34] sm:$0xf]
      %v2169 = vld [vmem:[%s2154 + $0x38] sm:$0xf]
      %v2170 = vld [vmem:[%s2154 + $0x3c] sm:$0xf]
      %v2171 = vunpack.c.l.b16 %v2055
      %v2172 = vunpack.c.l.b16 %v2069
      %v2173 = vunpack.c.l.b16 %v2083
      %v2174 = vunpack.c.l.b16 %v2097
      %v2175 = vunpack.c.l.b16 %v2111
      %v2176 = vunpack.c.l.b16 %v2125
      %v2177 = vunpack.c.l.b16 %v2139
      %v2178 = vunpack.c.l.b16 %v2153
      %v2179 = vpack.c.b16 %v2172, %v2171
      %v2180 = vpack.c.b16 %v2174, %v2173
      %v2181 = vpack.c.b16 %v2176, %v2175
      %v2182 = vpack.c.b16 %v2178, %v2177
      %v2203 = vunpack.c.l.b16 %v2155
      %v2204 = vunpack.c.l.b16 %v2156
      %v2205 = vunpack.c.l.b16 %v2157
      %v2206 = vunpack.c.l.b16 %v2158
      %v2207 = vunpack.c.l.b16 %v2159
      %v2208 = vunpack.c.l.b16 %v2160
      %v2209 = vunpack.c.l.b16 %v2161
      %v2210 = vunpack.c.l.b16 %v2162
      %v2211 = vunpack.c.l.b16 %v2163
      %v2212 = vunpack.c.l.b16 %v2164
      %v2213 = vunpack.c.l.b16 %v2165
      %v2214 = vunpack.c.l.b16 %v2166
      %v2215 = vunpack.c.l.b16 %v2167
      %v2216 = vunpack.c.l.b16 %v2168
      %v2217 = vunpack.c.l.b16 %v2169
      %v2218 = vunpack.c.l.b16 %v2170
      %v2219 = vpack.c.b16 %v2204, %v2203
      %v2220 = vpack.c.b16 %v2206, %v2205
      %v2221 = vpack.c.b16 %v2208, %v2207
      %v2222 = vpack.c.b16 %v2210, %v2209
      %v2223 = vpack.c.b16 %v2212, %v2211
      %v2224 = vpack.c.b16 %v2214, %v2213
      %v2225 = vpack.c.b16 %v2216, %v2215
      %v2226 = vpack.c.b16 %v2218, %v2217
      %2235 = vmatprep.subr.bf16.mxu0 0
      %2236 = vmatpush1.bf16.msra.mxu0 %v2226
      %2237 = vmatprep.subr.bf16.mxu0 0
      %2238 = vmatpush1.bf16.msra.mxu0 %v2225
      %2239 = vmatprep.subr.bf16.mxu0 0
      %2240 = vmatpush1.bf16.msra.mxu0 %v2224
      %2241 = vmatprep.subr.bf16.mxu0 0
      %2242 = vmatpush1.bf16.msra.mxu0 %v2223
      %2243 = vmatprep.subr.bf16.mxu0 0
      %2244 = vmatpush1.bf16.msra.mxu0 %v2222
      %2245 = vmatprep.subr.bf16.mxu0 0
      %2246 = vmatpush1.bf16.msra.mxu0 %v2221
      %2247 = vmatprep.subr.bf16.mxu0 0
      %2248 = vmatpush1.bf16.msra.mxu0 %v2220
      %2249 = vmatprep.subr.bf16.mxu0 0
      %2250 = vmatpush1.bf16.msra.mxu0 %v2219
      %2251 = vmatprep.subr.bf16.mxu0 0
      %2252 = vmatpush2.bf16.msra.mxu0 0
      %2253 = vmatprep.subr.bf16.mxu0 0
      %2254 = vmatpush2.bf16.msra.mxu0 0
      %2255 = vmatprep.subr.bf16.mxu0 0
      %2256 = vmatpush2.bf16.msra.mxu0 0
      %2257 = vmatprep.subr.bf16.mxu0 0
      %2258 = vmatpush2.bf16.msra.mxu0 0
      %2259 = vmatprep.subr.bf16.mxu0 0
      %2260 = vmatpush2.bf16.msra.mxu0 0
      %2261 = vmatprep.subr.bf16.mxu0 0
      %2262 = vmatpush2.bf16.msra.mxu0 0
      %2263 = vmatprep.subr.bf16.mxu0 0
      %2264 = vmatpush2.bf16.msra.mxu0 0
      %2265 = vmatprep.subr.bf16.mxu0 0
      %2266 = vmatpush2.bf16.msra.mxu0 0
      %2267 = vmatprep.mubr.bf16.mxu0 0
      %2268 = vmatmul.mubr.bf16.gmra.mxu0 %v2179
      %v2269 = vpop.f32.mrf.mxu0
      %v2270 = vadd.f32 0.0, %v2269
      %v2271 = vpop.f32.mrf.mxu0
      %v2272 = vpop.f32.mrf.mxu0
      %v2273 = vadd.f32 0.0, %v2272
      %v2274 = vpop.f32.mrf.mxu0
      %2275 = vmatprep.mubr.bf16.mxu0 0
      %2276 = vmatmul.mubr.bf16.gmra.mxu0 %v2180
      %v2277 = vpop.f32.mrf.mxu0
      %v2278 = vadd.f32 0.0, %v2277
      %v2279 = vpop.f32.mrf.mxu0
      %v2280 = vpop.f32.mrf.mxu0
      %v2281 = vadd.f32 0.0, %v2280
      %v2282 = vpop.f32.mrf.mxu0
      %2283 = vmatprep.mubr.bf16.mxu0 0
      %2284 = vmatmul.mubr.bf16.gmra.mxu0 %v2181
      %v2285 = vpop.f32.mrf.mxu0
      %v2286 = vadd.f32 0.0, %v2285
      %v2287 = vpop.f32.mrf.mxu0
      %v2288 = vpop.f32.mrf.mxu0
      %v2289 = vadd.f32 0.0, %v2288
      %v2290 = vpop.f32.mrf.mxu0
      %2291 = vmatprep.mubr.bf16.mxu0 0
      %2292 = vmatmul.mubr.bf16.gmra.mxu0 %v2182
      %v2293 = vpop.f32.mrf.mxu0
      %v2294 = vadd.f32 0.0, %v2293
      %v2295 = vpop.f32.mrf.mxu0
      %v2296 = vpop.f32.mrf.mxu0
      %v2297 = vadd.f32 0.0, %v2296
      %v2298 = vpop.f32.mrf.mxu0
      %2299 = vdwg.mxu0
      %v2300 = vld [vmem:[#allocation3] sm:$0xff]
      %v2301 = vld [vmem:[#allocation3 + $0x8] sm:$0xff]
      %v2302 = vld [vmem:[#allocation3 + $0x10] sm:$0xff]
      %v2303 = vld [vmem:[#allocation3 + $0x18] sm:$0xff]
      %v2304 = vld [vmem:[#allocation3 + $0x20] sm:$0xff]
      %v2305 = vld [vmem:[#allocation3 + $0x28] sm:$0xff]
      %v2306 = vld [vmem:[#allocation3 + $0x30] sm:$0xff]
      %v2307 = vld [vmem:[#allocation3 + $0x38] sm:$0xff]
      %v2308 = vadd.f32 %v2300, %v2270
      %v2309 = vadd.f32 %v2301, %v2273
      %v2310 = vadd.f32 %v2302, %v2278
      %v2311 = vadd.f32 %v2303, %v2281
      %v2312 = vadd.f32 %v2304, %v2286
      %v2313 = vadd.f32 %v2305, %v2289
      %v2314 = vadd.f32 %v2306, %v2294
      %v2315 = vadd.f32 %v2307, %v2297
      %2316 = vst [vmem:[#allocation3] sm:$0xff] %v2308
      %2317 = vst [vmem:[#allocation3 + $0x8] sm:$0xff] %v2309
      %2318 = vst [vmem:[#allocation3 + $0x10] sm:$0xff] %v2310
      %2319 = vst [vmem:[#allocation3 + $0x18] sm:$0xff] %v2311
      %2320 = vst [vmem:[#allocation3 + $0x20] sm:$0xff] %v2312
      %2321 = vst [vmem:[#allocation3 + $0x28] sm:$0xff] %v2313
      %2322 = vst [vmem:[#allocation3 + $0x30] sm:$0xff] %v2314
      %2323 = vst [vmem:[#allocation3 + $0x38] sm:$0xff] %v2315
      %s2324 = scalar_lea.vmem [#allocation2], 144
      %v2325 = vld [vmem:[%s2324] sm:$0xf]
      %v2326 = vld [vmem:[%s2324 + $0x8] sm:$0xf]
      %v2327 = vld [vmem:[%s2324 + $0x10] sm:$0xf]
      %v2328 = vld [vmem:[%s2324 + $0x18] sm:$0xf]
      %v2329 = vld [vmem:[%s2324 + $0x20] sm:$0xf]
      %v2330 = vld [vmem:[%s2324 + $0x28] sm:$0xf]
      %v2331 = vld [vmem:[%s2324 + $0x30] sm:$0xf]
      %v2332 = vld [vmem:[%s2324 + $0x38] sm:$0xf]
      %s2333 = scalar_lea.vmem %s328, 192
      %v2334 = vld [vmem:[%s2333] sm:$0xf]
      %v2335 = vld [vmem:[%s2333 + $0x4] sm:$0xf]
      %v2336 = vld [vmem:[%s2333 + $0x8] sm:$0xf]
      %v2337 = vld [vmem:[%s2333 + $0xc] sm:$0xf]
      %v2338 = vld [vmem:[%s2333 + $0x10] sm:$0xf]
      %v2339 = vld [vmem:[%s2333 + $0x14] sm:$0xf]
      %v2340 = vld [vmem:[%s2333 + $0x18] sm:$0xf]
      %v2341 = vld [vmem:[%s2333 + $0x1c] sm:$0xf]
      %v2342 = vld [vmem:[%s2333 + $0x20] sm:$0xf]
      %v2343 = vld [vmem:[%s2333 + $0x24] sm:$0xf]
      %v2344 = vld [vmem:[%s2333 + $0x28] sm:$0xf]
      %v2345 = vld [vmem:[%s2333 + $0x2c] sm:$0xf]
      %v2346 = vld [vmem:[%s2333 + $0x30] sm:$0xf]
      %v2347 = vld [vmem:[%s2333 + $0x34] sm:$0xf]
      %v2348 = vld [vmem:[%s2333 + $0x38] sm:$0xf]
      %v2349 = vld [vmem:[%s2333 + $0x3c] sm:$0xf]
      %v2358 = vunpack.c.l.b16 %v2325
      %v2359 = vunpack.c.l.b16 %v2326
      %v2360 = vunpack.c.l.b16 %v2327
      %v2361 = vunpack.c.l.b16 %v2328
      %v2362 = vunpack.c.l.b16 %v2329
      %v2363 = vunpack.c.l.b16 %v2330
      %v2364 = vunpack.c.l.b16 %v2331
      %v2365 = vunpack.c.l.b16 %v2332
      %v2366 = vpack.c.b16 %v2359, %v2358
      %v2367 = vpack.c.b16 %v2361, %v2360
      %v2368 = vpack.c.b16 %v2363, %v2362
      %v2369 = vpack.c.b16 %v2365, %v2364
      %v2390 = vunpack.c.l.b16 %v2334
      %v2391 = vunpack.c.l.b16 %v2335
      %v2392 = vunpack.c.l.b16 %v2336
      %v2393 = vunpack.c.l.b16 %v2337
      %v2394 = vunpack.c.l.b16 %v2338
      %v2395 = vunpack.c.l.b16 %v2339
      %v2396 = vunpack.c.l.b16 %v2340
      %v2397 = vunpack.c.l.b16 %v2341
      %v2398 = vunpack.c.l.b16 %v2342
      %v2399 = vunpack.c.l.b16 %v2343
      %v2400 = vunpack.c.l.b16 %v2344
      %v2401 = vunpack.c.l.b16 %v2345
      %v2402 = vunpack.c.l.b16 %v2346
      %v2403 = vunpack.c.l.b16 %v2347
      %v2404 = vunpack.c.l.b16 %v2348
      %v2405 = vunpack.c.l.b16 %v2349
      %v2406 = vpack.c.b16 %v2391, %v2390
      %v2407 = vpack.c.b16 %v2393, %v2392
      %v2408 = vpack.c.b16 %v2395, %v2394
      %v2409 = vpack.c.b16 %v2397, %v2396
      %v2410 = vpack.c.b16 %v2399, %v2398
      %v2411 = vpack.c.b16 %v2401, %v2400
      %v2412 = vpack.c.b16 %v2403, %v2402
      %v2413 = vpack.c.b16 %v2405, %v2404
      %2422 = vmatprep.subr.bf16.mxu0 0
      %2423 = vmatpush1.bf16.msra.mxu0 %v2413
      %2424 = vmatprep.subr.bf16.mxu0 0
      %2425 = vmatpush1.bf16.msra.mxu0 %v2412
      %2426 = vmatprep.subr.bf16.mxu0 0
      %2427 = vmatpush1.bf16.msra.mxu0 %v2411
      %2428 = vmatprep.subr.bf16.mxu0 0
      %2429 = vmatpush1.bf16.msra.mxu0 %v2410
      %2430 = vmatprep.subr.bf16.mxu0 0
      %2431 = vmatpush1.bf16.msra.mxu0 %v2409
      %2432 = vmatprep.subr.bf16.mxu0 0
      %2433 = vmatpush1.bf16.msra.mxu0 %v2408
      %2434 = vmatprep.subr.bf16.mxu0 0
      %2435 = vmatpush1.bf16.msra.mxu0 %v2407
      %2436 = vmatprep.subr.bf16.mxu0 0
      %2437 = vmatpush1.bf16.msra.mxu0 %v2406
      %2438 = vmatprep.subr.bf16.mxu0 0
      %2439 = vmatpush2.bf16.msra.mxu0 0
      %2440 = vmatprep.subr.bf16.mxu0 0
      %2441 = vmatpush2.bf16.msra.mxu0 0
      %2442 = vmatprep.subr.bf16.mxu0 0
      %2443 = vmatpush2.bf16.msra.mxu0 0
      %2444 = vmatprep.subr.bf16.mxu0 0
      %2445 = vmatpush2.bf16.msra.mxu0 0
      %2446 = vmatprep.subr.bf16.mxu0 0
      %2447 = vmatpush2.bf16.msra.mxu0 0
      %2448 = vmatprep.subr.bf16.mxu0 0
      %2449 = vmatpush2.bf16.msra.mxu0 0
      %2450 = vmatprep.subr.bf16.mxu0 0
      %2451 = vmatpush2.bf16.msra.mxu0 0
      %2452 = vmatprep.subr.bf16.mxu0 0
      %2453 = vmatpush2.bf16.msra.mxu0 0
      %2454 = vmatprep.mubr.bf16.mxu0 0
      %2455 = vmatmul.mubr.bf16.gmra.mxu0 %v2366
      %v2456 = vpop.f32.mrf.mxu0
      %v2457 = vadd.f32 0.0, %v2456
      %v2458 = vpop.f32.mrf.mxu0
      %v2459 = vpop.f32.mrf.mxu0
      %v2460 = vadd.f32 0.0, %v2459
      %v2461 = vpop.f32.mrf.mxu0
      %2462 = vmatprep.mubr.bf16.mxu0 0
      %2463 = vmatmul.mubr.bf16.gmra.mxu0 %v2367
      %v2464 = vpop.f32.mrf.mxu0
      %v2465 = vadd.f32 0.0, %v2464
      %v2466 = vpop.f32.mrf.mxu0
      %v2467 = vpop.f32.mrf.mxu0
      %v2468 = vadd.f32 0.0, %v2467
      %v2469 = vpop.f32.mrf.mxu0
      %2470 = vmatprep.mubr.bf16.mxu0 0
      %2471 = vmatmul.mubr.bf16.gmra.mxu0 %v2368
      %v2472 = vpop.f32.mrf.mxu0
      %v2473 = vadd.f32 0.0, %v2472
      %v2474 = vpop.f32.mrf.mxu0
      %v2475 = vpop.f32.mrf.mxu0
      %v2476 = vadd.f32 0.0, %v2475
      %v2477 = vpop.f32.mrf.mxu0
      %2478 = vmatprep.mubr.bf16.mxu0 0
      %2479 = vmatmul.mubr.bf16.gmra.mxu0 %v2369
      %v2480 = vpop.f32.mrf.mxu0
      %v2481 = vadd.f32 0.0, %v2480
      %v2482 = vpop.f32.mrf.mxu0
      %v2483 = vpop.f32.mrf.mxu0
      %v2484 = vadd.f32 0.0, %v2483
      %v2485 = vpop.f32.mrf.mxu0
      %2486 = vdwg.mxu0
      %v2487 = vld [vmem:[#allocation3] sm:$0xff]
      %v2488 = vld [vmem:[#allocation3 + $0x8] sm:$0xff]
      %v2489 = vld [vmem:[#allocation3 + $0x10] sm:$0xff]
      %v2490 = vld [vmem:[#allocation3 + $0x18] sm:$0xff]
      %v2491 = vld [vmem:[#allocation3 + $0x20] sm:$0xff]
      %v2492 = vld [vmem:[#allocation3 + $0x28] sm:$0xff]
      %v2493 = vld [vmem:[#allocation3 + $0x30] sm:$0xff]
      %v2494 = vld [vmem:[#allocation3 + $0x38] sm:$0xff]
      %v2495 = vadd.f32 %v2487, %v2457
      %v2496 = vadd.f32 %v2488, %v2460
      %v2497 = vadd.f32 %v2489, %v2465
      %v2498 = vadd.f32 %v2490, %v2468
      %v2499 = vadd.f32 %v2491, %v2473
      %v2500 = vadd.f32 %v2492, %v2476
      %v2501 = vadd.f32 %v2493, %v2481
      %v2502 = vadd.f32 %v2494, %v2484
      %2503 = vst [vmem:[#allocation3] sm:$0xff] %v2495
      %2504 = vst [vmem:[#allocation3 + $0x8] sm:$0xff] %v2496
      %2505 = vst [vmem:[#allocation3 + $0x10] sm:$0xff] %v2497
      %2506 = vst [vmem:[#allocation3 + $0x18] sm:$0xff] %v2498
      %2507 = vst [vmem:[#allocation3 + $0x20] sm:$0xff] %v2499
      %2508 = vst [vmem:[#allocation3 + $0x28] sm:$0xff] %v2500
      %2509 = vst [vmem:[#allocation3 + $0x30] sm:$0xff] %v2501
      %2510 = vst [vmem:[#allocation3 + $0x38] sm:$0xff] %v2502
      %s2511 = scalar_lea.vmem [#allocation2], 216
      %v2512 = vld [vmem:[%s2511] sm:$0xf]
      %v2513 = vld [vmem:[%s2511 + $0x8] sm:$0xf]
      %v2514 = vld [vmem:[%s2511 + $0x10] sm:$0xf]
      %v2515 = vld [vmem:[%s2511 + $0x18] sm:$0xf]
      %v2516 = vld [vmem:[%s2511 + $0x20] sm:$0xf]
      %v2517 = vld [vmem:[%s2511 + $0x28] sm:$0xf]
      %v2518 = vld [vmem:[%s2511 + $0x30] sm:$0xf]
      %v2519 = vld [vmem:[%s2511 + $0x38] sm:$0xf]
      %s2520 = scalar_lea.vmem %s328, 256
      %v2521 = vld [vmem:[%s2520] sm:$0xf]
      %v2522 = vld [vmem:[%s2520 + $0x4] sm:$0xf]
      %v2523 = vld [vmem:[%s2520 + $0x8] sm:$0xf]
      %v2524 = vld [vmem:[%s2520 + $0xc] sm:$0xf]
      %v2525 = vld [vmem:[%s2520 + $0x10] sm:$0xf]
      %v2526 = vld [vmem:[%s2520 + $0x14] sm:$0xf]
      %v2527 = vld [vmem:[%s2520 + $0x18] sm:$0xf]
      %v2528 = vld [vmem:[%s2520 + $0x1c] sm:$0xf]
      %v2529 = vld [vmem:[%s2520 + $0x20] sm:$0xf]
      %v2530 = vld [vmem:[%s2520 + $0x24] sm:$0xf]
      %v2531 = vld [vmem:[%s2520 + $0x28] sm:$0xf]
      %v2532 = vld [vmem:[%s2520 + $0x2c] sm:$0xf]
      %v2533 = vld [vmem:[%s2520 + $0x30] sm:$0xf]
      %v2534 = vld [vmem:[%s2520 + $0x34] sm:$0xf]
      %v2535 = vld [vmem:[%s2520 + $0x38] sm:$0xf]
      %v2536 = vld [vmem:[%s2520 + $0x3c] sm:$0xf]
      %v2545 = vunpack.c.l.b16 %v2512
      %v2546 = vunpack.c.l.b16 %v2513
      %v2547 = vunpack.c.l.b16 %v2514
      %v2548 = vunpack.c.l.b16 %v2515
      %v2549 = vunpack.c.l.b16 %v2516
      %v2550 = vunpack.c.l.b16 %v2517
      %v2551 = vunpack.c.l.b16 %v2518
      %v2552 = vunpack.c.l.b16 %v2519
      %v2553 = vpack.c.b16 %v2546, %v2545
      %v2554 = vpack.c.b16 %v2548, %v2547
      %v2555 = vpack.c.b16 %v2550, %v2549
      %v2556 = vpack.c.b16 %v2552, %v2551
      %v2577 = vunpack.c.l.b16 %v2521
      %v2578 = vunpack.c.l.b16 %v2522
      %v2579 = vunpack.c.l.b16 %v2523
      %v2580 = vunpack.c.l.b16 %v2524
      %v2581 = vunpack.c.l.b16 %v2525
      %v2582 = vunpack.c.l.b16 %v2526
      %v2583 = vunpack.c.l.b16 %v2527
      %v2584 = vunpack.c.l.b16 %v2528
      %v2585 = vunpack.c.l.b16 %v2529
      %v2586 = vunpack.c.l.b16 %v2530
      %v2587 = vunpack.c.l.b16 %v2531
      %v2588 = vunpack.c.l.b16 %v2532
      %v2589 = vunpack.c.l.b16 %v2533
      %v2590 = vunpack.c.l.b16 %v2534
      %v2591 = vunpack.c.l.b16 %v2535
      %v2592 = vunpack.c.l.b16 %v2536
      %v2593 = vpack.c.b16 %v2578, %v2577
      %v2594 = vpack.c.b16 %v2580, %v2579
      %v2595 = vpack.c.b16 %v2582, %v2581
      %v2596 = vpack.c.b16 %v2584, %v2583
      %v2597 = vpack.c.b16 %v2586, %v2585
      %v2598 = vpack.c.b16 %v2588, %v2587
      %v2599 = vpack.c.b16 %v2590, %v2589
      %v2600 = vpack.c.b16 %v2592, %v2591
      %2609 = vmatprep.subr.bf16.mxu0 0
      %2610 = vmatpush1.bf16.msra.mxu0 %v2600
      %2611 = vmatprep.subr.bf16.mxu0 0
      %2612 = vmatpush1.bf16.msra.mxu0 %v2599
      %2613 = vmatprep.subr.bf16.mxu0 0
      %2614 = vmatpush1.bf16.msra.mxu0 %v2598
      %2615 = vmatprep.subr.bf16.mxu0 0
      %2616 = vmatpush1.bf16.msra.mxu0 %v2597
      %2617 = vmatprep.subr.bf16.mxu0 0
      %2618 = vmatpush1.bf16.msra.mxu0 %v2596
      %2619 = vmatprep.subr.bf16.mxu0 0
      %2620 = vmatpush1.bf16.msra.mxu0 %v2595
      %2621 = vmatprep.subr.bf16.mxu0 0
      %2622 = vmatpush1.bf16.msra.mxu0 %v2594
      %2623 = vmatprep.subr.bf16.mxu0 0
      %2624 = vmatpush1.bf16.msra.mxu0 %v2593
      %2625 = vmatprep.subr.bf16.mxu0 0
      %2626 = vmatpush2.bf16.msra.mxu0 0
      %2627 = vmatprep.subr.bf16.mxu0 0
      %2628 = vmatpush2.bf16.msra.mxu0 0
      %2629 = vmatprep.subr.bf16.mxu0 0
      %2630 = vmatpush2.bf16.msra.mxu0 0
      %2631 = vmatprep.subr.bf16.mxu0 0
      %2632 = vmatpush2.bf16.msra.mxu0 0
      %2633 = vmatprep.subr.bf16.mxu0 0
      %2634 = vmatpush2.bf16.msra.mxu0 0
      %2635 = vmatprep.subr.bf16.mxu0 0
      %2636 = vmatpush2.bf16.msra.mxu0 0
      %2637 = vmatprep.subr.bf16.mxu0 0
      %2638 = vmatpush2.bf16.msra.mxu0 0
      %2639 = vmatprep.subr.bf16.mxu0 0
      %2640 = vmatpush2.bf16.msra.mxu0 0
      %2641 = vmatprep.mubr.bf16.mxu0 0
      %2642 = vmatmul.mubr.bf16.gmra.mxu0 %v2553
      %v2643 = vpop.f32.mrf.mxu0
      %v2644 = vadd.f32 0.0, %v2643
      %v2645 = vpop.f32.mrf.mxu0
      %v2646 = vpop.f32.mrf.mxu0
      %v2647 = vadd.f32 0.0, %v2646
      %v2648 = vpop.f32.mrf.mxu0
      %2649 = vmatprep.mubr.bf16.mxu0 0
      %2650 = vmatmul.mubr.bf16.gmra.mxu0 %v2554
      %v2651 = vpop.f32.mrf.mxu0
      %v2652 = vadd.f32 0.0, %v2651
      %v2653 = vpop.f32.mrf.mxu0
      %v2654 = vpop.f32.mrf.mxu0
      %v2655 = vadd.f32 0.0, %v2654
      %v2656 = vpop.f32.mrf.mxu0
      %2657 = vmatprep.mubr.bf16.mxu0 0
      %2658 = vmatmul.mubr.bf16.gmra.mxu0 %v2555
      %v2659 = vpop.f32.mrf.mxu0
      %v2660 = vadd.f32 0.0, %v2659
      %v2661 = vpop.f32.mrf.mxu0
      %v2662 = vpop.f32.mrf.mxu0
      %v2663 = vadd.f32 0.0, %v2662
      %v2664 = vpop.f32.mrf.mxu0
      %2665 = vmatprep.mubr.bf16.mxu0 0
      %2666 = vmatmul.mubr.bf16.gmra.mxu0 %v2556
      %v2667 = vpop.f32.mrf.mxu0
      %v2668 = vadd.f32 0.0, %v2667
      %v2669 = vpop.f32.mrf.mxu0
      %v2670 = vpop.f32.mrf.mxu0
      %v2671 = vadd.f32 0.0, %v2670
      %v2672 = vpop.f32.mrf.mxu0
      %2673 = vdwg.mxu0
      %v2674 = vld [vmem:[#allocation3] sm:$0xff]
      %v2675 = vld [vmem:[#allocation3 + $0x8] sm:$0xff]
      %v2676 = vld [vmem:[#allocation3 + $0x10] sm:$0xff]
      %v2677 = vld [vmem:[#allocation3 + $0x18] sm:$0xff]
      %v2678 = vld [vmem:[#allocation3 + $0x20] sm:$0xff]
      %v2679 = vld [vmem:[#allocation3 + $0x28] sm:$0xff]
      %v2680 = vld [vmem:[#allocation3 + $0x30] sm:$0xff]
      %v2681 = vld [vmem:[#allocation3 + $0x38] sm:$0xff]
      %v2682 = vadd.f32 %v2674, %v2644
      %v2683 = vadd.f32 %v2675, %v2647
      %v2684 = vadd.f32 %v2676, %v2652
      %v2685 = vadd.f32 %v2677, %v2655
      %v2686 = vadd.f32 %v2678, %v2660
      %v2687 = vadd.f32 %v2679, %v2663
      %v2688 = vadd.f32 %v2680, %v2668
      %v2689 = vadd.f32 %v2681, %v2671
      %2690 = vst [vmem:[#allocation3] sm:$0xff] %v2682
      %2691 = vst [vmem:[#allocation3 + $0x8] sm:$0xff] %v2683
      %2692 = vst [vmem:[#allocation3 + $0x10] sm:$0xff] %v2684
      %2693 = vst [vmem:[#allocation3 + $0x18] sm:$0xff] %v2685
      %2694 = vst [vmem:[#allocation3 + $0x20] sm:$0xff] %v2686
      %2695 = vst [vmem:[#allocation3 + $0x28] sm:$0xff] %v2687
      %2696 = vst [vmem:[#allocation3 + $0x30] sm:$0xff] %v2688
      %2697 = vst [vmem:[#allocation3 + $0x38] sm:$0xff] %v2689
      %v2698 = vld [vmem:[%s2324] sm:$0xf]
      %v2699 = vld [vmem:[%s2324 + $0x4] sm:$0x1]
      %v2700 = vld [vmem:[%s2324 + $0x8] sm:$0xf]
      %v2701 = vld [vmem:[%s2324 + $0xc] sm:$0x1]
      %v2702 = vld [vmem:[%s2324 + $0x10] sm:$0xf]
      %v2703 = vld [vmem:[%s2324 + $0x14] sm:$0x1]
      %v2704 = vld [vmem:[%s2324 + $0x18] sm:$0xf]
      %v2705 = vld [vmem:[%s2324 + $0x1c] sm:$0x1]
      %v2706 = vld [vmem:[%s2324 + $0x20] sm:$0xf]
      %v2707 = vld [vmem:[%s2324 + $0x24] sm:$0x1]
      %v2708 = vld [vmem:[%s2324 + $0x28] sm:$0xf]
      %v2709 = vld [vmem:[%s2324 + $0x2c] sm:$0x1]
      %v2710 = vld [vmem:[%s2324 + $0x30] sm:$0xf]
      %v2711 = vld [vmem:[%s2324 + $0x34] sm:$0x1]
      %v2712 = vld [vmem:[%s2324 + $0x38] sm:$0xf]
      %v2713 = vld [vmem:[%s2324 + $0x3c] sm:$0x1]
      %v2715 = vshrl.u32 %v2698, 16
      %v2717 = vrot.slane %v2715, 4
      %v2718 = vshll.u32 %v2698, 16
      %v2720 = vrot.slane %v2718, 5
      %v2721 = vor.u32 %v2717, %v2720
      %v2722 = vrot.slane %v2721, 4
      %v2724 = vshll.u32 %v2699, 16
      %v2726 = vrot.slane %v2724, 5
      %v2727 = vsel %vm2041, %v2722, %v2726
      %v2729 = vshrl.u32 %v2700, 16
      %v2731 = vrot.slane %v2729, 4
      %v2732 = vshll.u32 %v2700, 16
      %v2734 = vrot.slane %v2732, 5
      %v2735 = vor.u32 %v2731, %v2734
      %v2736 = vrot.slane %v2735, 4
      %v2738 = vshll.u32 %v2701, 16
      %v2740 = vrot.slane %v2738, 5
      %v2741 = vsel %vm2041, %v2736, %v2740
      %v2743 = vshrl.u32 %v2702, 16
      %v2745 = vrot.slane %v2743, 4
      %v2746 = vshll.u32 %v2702, 16
      %v2748 = vrot.slane %v2746, 5
      %v2749 = vor.u32 %v2745, %v2748
      %v2750 = vrot.slane %v2749, 4
      %v2752 = vshll.u32 %v2703, 16
      %v2754 = vrot.slane %v2752, 5
      %v2755 = vsel %vm2041, %v2750, %v2754
      %v2757 = vshrl.u32 %v2704, 16
      %v2759 = vrot.slane %v2757, 4
      %v2760 = vshll.u32 %v2704, 16
      %v2762 = vrot.slane %v2760, 5
      %v2763 = vor.u32 %v2759, %v2762
      %v2764 = vrot.slane %v2763, 4
      %v2766 = vshll.u32 %v2705, 16
      %v2768 = vrot.slane %v2766, 5
      %v2769 = vsel %vm2041, %v2764, %v2768
      %v2771 = vshrl.u32 %v2706, 16
      %v2773 = vrot.slane %v2771, 4
      %v2774 = vshll.u32 %v2706, 16
      %v2776 = vrot.slane %v2774, 5
      %v2777 = vor.u32 %v2773, %v2776
      %v2778 = vrot.slane %v2777, 4
      %v2780 = vshll.u32 %v2707, 16
      %v2782 = vrot.slane %v2780, 5
      %v2783 = vsel %vm2041, %v2778, %v2782
      %v2785 = vshrl.u32 %v2708, 16
      %v2787 = vrot.slane %v2785, 4
      %v2788 = vshll.u32 %v2708, 16
      %v2790 = vrot.slane %v2788, 5
      %v2791 = vor.u32 %v2787, %v2790
      %v2792 = vrot.slane %v2791, 4
      %v2794 = vshll.u32 %v2709, 16
      %v2796 = vrot.slane %v2794, 5
      %v2797 = vsel %vm2041, %v2792, %v2796
      %v2799 = vshrl.u32 %v2710, 16
      %v2801 = vrot.slane %v2799, 4
      %v2802 = vshll.u32 %v2710, 16
      %v2804 = vrot.slane %v2802, 5
      %v2805 = vor.u32 %v2801, %v2804
      %v2806 = vrot.slane %v2805, 4
      %v2808 = vshll.u32 %v2711, 16
      %v2810 = vrot.slane %v2808, 5
      %v2811 = vsel %vm2041, %v2806, %v2810
      %v2813 = vshrl.u32 %v2712, 16
      %v2815 = vrot.slane %v2813, 4
      %v2816 = vshll.u32 %v2712, 16
      %v2818 = vrot.slane %v2816, 5
      %v2819 = vor.u32 %v2815, %v2818
      %v2820 = vrot.slane %v2819, 4
      %v2822 = vshll.u32 %v2713, 16
      %v2824 = vrot.slane %v2822, 5
      %v2825 = vsel %vm2041, %v2820, %v2824
      %s2826 = scalar_lea.vmem %s328, 320
      %v2827 = vld [vmem:[%s2826] sm:$0xf]
      %v2828 = vld [vmem:[%s2826 + $0x4] sm:$0xf]
      %v2829 = vld [vmem:[%s2826 + $0x8] sm:$0xf]
      %v2830 = vld [vmem:[%s2826 + $0xc] sm:$0xf]
      %v2831 = vld [vmem:[%s2826 + $0x10] sm:$0xf]
      %v2832 = vld [vmem:[%s2826 + $0x14] sm:$0xf]
      %v2833 = vld [vmem:[%s2826 + $0x18] sm:$0xf]
      %v2834 = vld [vmem:[%s2826 + $0x1c] sm:$0xf]
      %v2835 = vld [vmem:[%s2826 + $0x20] sm:$0xf]
      %v2836 = vld [vmem:[%s2826 + $0x24] sm:$0xf]
      %v2837 = vld [vmem:[%s2826 + $0x28] sm:$0xf]
      %v2838 = vld [vmem:[%s2826 + $0x2c] sm:$0xf]
      %v2839 = vld [vmem:[%s2826 + $0x30] sm:$0xf]
      %v2840 = vld [vmem:[%s2826 + $0x34] sm:$0xf]
      %v2841 = vld [vmem:[%s2826 + $0x38] sm:$0xf]
      %v2842 = vld [vmem:[%s2826 + $0x3c] sm:$0xf]
      %v2843 = vunpack.c.l.b16 %v2727
      %v2844 = vunpack.c.l.b16 %v2741
      %v2845 = vunpack.c.l.b16 %v2755
      %v2846 = vunpack.c.l.b16 %v2769
      %v2847 = vunpack.c.l.b16 %v2783
      %v2848 = vunpack.c.l.b16 %v2797
      %v2849 = vunpack.c.l.b16 %v2811
      %v2850 = vunpack.c.l.b16 %v2825
      %v2851 = vpack.c.b16 %v2844, %v2843
      %v2852 = vpack.c.b16 %v2846, %v2845
      %v2853 = vpack.c.b16 %v2848, %v2847
      %v2854 = vpack.c.b16 %v2850, %v2849
      %v2875 = vunpack.c.l.b16 %v2827
      %v2876 = vunpack.c.l.b16 %v2828
      %v2877 = vunpack.c.l.b16 %v2829
      %v2878 = vunpack.c.l.b16 %v2830
      %v2879 = vunpack.c.l.b16 %v2831
      %v2880 = vunpack.c.l.b16 %v2832
      %v2881 = vunpack.c.l.b16 %v2833
      %v2882 = vunpack.c.l.b16 %v2834
      %v2883 = vunpack.c.l.b16 %v2835
      %v2884 = vunpack.c.l.b16 %v2836
      %v2885 = vunpack.c.l.b16 %v2837
      %v2886 = vunpack.c.l.b16 %v2838
      %v2887 = vunpack.c.l.b16 %v2839
      %v2888 = vunpack.c.l.b16 %v2840
      %v2889 = vunpack.c.l.b16 %v2841
      %v2890 = vunpack.c.l.b16 %v2842
      %v2891 = vpack.c.b16 %v2876, %v2875
      %v2892 = vpack.c.b16 %v2878, %v2877
      %v2893 = vpack.c.b16 %v2880, %v2879
      %v2894 = vpack.c.b16 %v2882, %v2881
      %v2895 = vpack.c.b16 %v2884, %v2883
      %v2896 = vpack.c.b16 %v2886, %v2885
      %v2897 = vpack.c.b16 %v2888, %v2887
      %v2898 = vpack.c.b16 %v2890, %v2889
      %2907 = vmatprep.subr.bf16.mxu0 0
      %2908 = vmatpush1.bf16.msra.mxu0 %v2898
      %2909 = vmatprep.subr.bf16.mxu0 0
      %2910 = vmatpush1.bf16.msra.mxu0 %v2897
      %2911 = vmatprep.subr.bf16.mxu0 0
      %2912 = vmatpush1.bf16.msra.mxu0 %v2896
      %2913 = vmatprep.subr.bf16.mxu0 0
      %2914 = vmatpush1.bf16.msra.mxu0 %v2895
      %2915 = vmatprep.subr.bf16.mxu0 0
      %2916 = vmatpush1.bf16.msra.mxu0 %v2894
      %2917 = vmatprep.subr.bf16.mxu0 0
      %2918 = vmatpush1.bf16.msra.mxu0 %v2893
      %2919 = vmatprep.subr.bf16.mxu0 0
      %2920 = vmatpush1.bf16.msra.mxu0 %v2892
      %2921 = vmatprep.subr.bf16.mxu0 0
      %2922 = vmatpush1.bf16.msra.mxu0 %v2891
      %2923 = vmatprep.subr.bf16.mxu0 0
      %2924 = vmatpush2.bf16.msra.mxu0 0
      %2925 = vmatprep.subr.bf16.mxu0 0
      %2926 = vmatpush2.bf16.msra.mxu0 0
      %2927 = vmatprep.subr.bf16.mxu0 0
      %2928 = vmatpush2.bf16.msra.mxu0 0
      %2929 = vmatprep.subr.bf16.mxu0 0
      %2930 = vmatpush2.bf16.msra.mxu0 0
      %2931 = vmatprep.subr.bf16.mxu0 0
      %2932 = vmatpush2.bf16.msra.mxu0 0
      %2933 = vmatprep.subr.bf16.mxu0 0
      %2934 = vmatpush2.bf16.msra.mxu0 0
      %2935 = vmatprep.subr.bf16.mxu0 0
      %2936 = vmatpush2.bf16.msra.mxu0 0
      %2937 = vmatprep.subr.bf16.mxu0 0
      %2938 = vmatpush2.bf16.msra.mxu0 0
      %2939 = vmatprep.mubr.bf16.mxu0 0
      %2940 = vmatmul.mubr.bf16.gmra.mxu0 %v2851
      %v2941 = vpop.f32.mrf.mxu0
      %v2942 = vadd.f32 0.0, %v2941
      %v2943 = vpop.f32.mrf.mxu0
      %v2944 = vpop.f32.mrf.mxu0
      %v2945 = vadd.f32 0.0, %v2944
      %v2946 = vpop.f32.mrf.mxu0
      %2947 = vmatprep.mubr.bf16.mxu0 0
      %2948 = vmatmul.mubr.bf16.gmra.mxu0 %v2852
      %v2949 = vpop.f32.mrf.mxu0
      %v2950 = vadd.f32 0.0, %v2949
      %v2951 = vpop.f32.mrf.mxu0
      %v2952 = vpop.f32.mrf.mxu0
      %v2953 = vadd.f32 0.0, %v2952
      %v2954 = vpop.f32.mrf.mxu0
      %2955 = vmatprep.mubr.bf16.mxu0 0
      %2956 = vmatmul.mubr.bf16.gmra.mxu0 %v2853
      %v2957 = vpop.f32.mrf.mxu0
      %v2958 = vadd.f32 0.0, %v2957
      %v2959 = vpop.f32.mrf.mxu0
      %v2960 = vpop.f32.mrf.mxu0
      %v2961 = vadd.f32 0.0, %v2960
      %v2962 = vpop.f32.mrf.mxu0
      %2963 = vmatprep.mubr.bf16.mxu0 0
      %2964 = vmatmul.mubr.bf16.gmra.mxu0 %v2854
      %v2965 = vpop.f32.mrf.mxu0
      %v2966 = vadd.f32 0.0, %v2965
      %v2967 = vpop.f32.mrf.mxu0
      %v2968 = vpop.f32.mrf.mxu0
      %v2969 = vadd.f32 0.0, %v2968
      %v2970 = vpop.f32.mrf.mxu0
      %2971 = vdwg.mxu0
      %v2972 = vld [vmem:[#allocation3] sm:$0xff]
      %v2973 = vld [vmem:[#allocation3 + $0x8] sm:$0xff]
      %v2974 = vld [vmem:[#allocation3 + $0x10] sm:$0xff]
      %v2975 = vld [vmem:[#allocation3 + $0x18] sm:$0xff]
      %v2976 = vld [vmem:[#allocation3 + $0x20] sm:$0xff]
      %v2977 = vld [vmem:[#allocation3 + $0x28] sm:$0xff]
      %v2978 = vld [vmem:[#allocation3 + $0x30] sm:$0xff]
      %v2979 = vld [vmem:[#allocation3 + $0x38] sm:$0xff]
      %v2980 = vadd.f32 %v2972, %v2942
      %v2981 = vadd.f32 %v2973, %v2945
      %v2982 = vadd.f32 %v2974, %v2950
      %v2983 = vadd.f32 %v2975, %v2953
      %v2984 = vadd.f32 %v2976, %v2958
      %v2985 = vadd.f32 %v2977, %v2961
      %v2986 = vadd.f32 %v2978, %v2966
      %v2987 = vadd.f32 %v2979, %v2969
      %2988 = vst [vmem:[#allocation3] sm:$0xff] %v2980
      %2989 = vst [vmem:[#allocation3 + $0x8] sm:$0xff] %v2981
      %2990 = vst [vmem:[#allocation3 + $0x10] sm:$0xff] %v2982
      %2991 = vst [vmem:[#allocation3 + $0x18] sm:$0xff] %v2983
      %2992 = vst [vmem:[#allocation3 + $0x20] sm:$0xff] %v2984
      %2993 = vst [vmem:[#allocation3 + $0x28] sm:$0xff] %v2985
      %2994 = vst [vmem:[#allocation3 + $0x30] sm:$0xff] %v2986
      %2995 = vst [vmem:[#allocation3 + $0x38] sm:$0xff] %v2987
      %s2996 = scalar_lea.vmem [#allocation2], 8
      %v2997 = vld [vmem:[%s2996] sm:$0xf]
      %v2998 = vld [vmem:[%s2996 + $0x8] sm:$0xf]
      %v2999 = vld [vmem:[%s2996 + $0x10] sm:$0xf]
      %v3000 = vld [vmem:[%s2996 + $0x18] sm:$0xf]
      %v3001 = vld [vmem:[%s2996 + $0x20] sm:$0xf]
      %v3002 = vld [vmem:[%s2996 + $0x28] sm:$0xf]
      %v3003 = vld [vmem:[%s2996 + $0x30] sm:$0xf]
      %v3004 = vld [vmem:[%s2996 + $0x38] sm:$0xf]
      %s3005 = scalar_lea.vmem %s328, 384
      %v3006 = vld [vmem:[%s3005] sm:$0xf]
      %v3007 = vld [vmem:[%s3005 + $0x4] sm:$0xf]
      %v3008 = vld [vmem:[%s3005 + $0x8] sm:$0xf]
      %v3009 = vld [vmem:[%s3005 + $0xc] sm:$0xf]
      %v3010 = vld [vmem:[%s3005 + $0x10] sm:$0xf]
      %v3011 = vld [vmem:[%s3005 + $0x14] sm:$0xf]
      %v3012 = vld [vmem:[%s3005 + $0x18] sm:$0xf]
      %v3013 = vld [vmem:[%s3005 + $0x1c] sm:$0xf]
      %v3014 = vld [vmem:[%s3005 + $0x20] sm:$0xf]
      %v3015 = vld [vmem:[%s3005 + $0x24] sm:$0xf]
      %v3016 = vld [vmem:[%s3005 + $0x28] sm:$0xf]
      %v3017 = vld [vmem:[%s3005 + $0x2c] sm:$0xf]
      %v3018 = vld [vmem:[%s3005 + $0x30] sm:$0xf]
      %v3019 = vld [vmem:[%s3005 + $0x34] sm:$0xf]
      %v3020 = vld [vmem:[%s3005 + $0x38] sm:$0xf]
      %v3021 = vld [vmem:[%s3005 + $0x3c] sm:$0xf]
      %v3030 = vunpack.c.l.b16 %v2997
      %v3031 = vunpack.c.l.b16 %v2998
      %v3032 = vunpack.c.l.b16 %v2999
      %v3033 = vunpack.c.l.b16 %v3000
      %v3034 = vunpack.c.l.b16 %v3001
      %v3035 = vunpack.c.l.b16 %v3002
      %v3036 = vunpack.c.l.b16 %v3003
      %v3037 = vunpack.c.l.b16 %v3004
      %v3038 = vpack.c.b16 %v3031, %v3030
      %v3039 = vpack.c.b16 %v3033, %v3032
      %v3040 = vpack.c.b16 %v3035, %v3034
      %v3041 = vpack.c.b16 %v3037, %v3036
      %v3062 = vunpack.c.l.b16 %v3006
      %v3063 = vunpack.c.l.b16 %v3007
      %v3064 = vunpack.c.l.b16 %v3008
      %v3065 = vunpack.c.l.b16 %v3009
      %v3066 = vunpack.c.l.b16 %v3010
      %v3067 = vunpack.c.l.b16 %v3011
      %v3068 = vunpack.c.l.b16 %v3012
      %v3069 = vunpack.c.l.b16 %v3013
      %v3070 = vunpack.c.l.b16 %v3014
      %v3071 = vunpack.c.l.b16 %v3015
      %v3072 = vunpack.c.l.b16 %v3016
      %v3073 = vunpack.c.l.b16 %v3017
      %v3074 = vunpack.c.l.b16 %v3018
      %v3075 = vunpack.c.l.b16 %v3019
      %v3076 = vunpack.c.l.b16 %v3020
      %v3077 = vunpack.c.l.b16 %v3021
      %v3078 = vpack.c.b16 %v3063, %v3062
      %v3079 = vpack.c.b16 %v3065, %v3064
      %v3080 = vpack.c.b16 %v3067, %v3066
      %v3081 = vpack.c.b16 %v3069, %v3068
      %v3082 = vpack.c.b16 %v3071, %v3070
      %v3083 = vpack.c.b16 %v3073, %v3072
      %v3084 = vpack.c.b16 %v3075, %v3074
      %v3085 = vpack.c.b16 %v3077, %v3076
      %3094 = vmatprep.subr.bf16.mxu0 0
      %3095 = vmatpush1.bf16.msra.mxu0 %v3085
      %3096 = vmatprep.subr.bf16.mxu0 0
      %3097 = vmatpush1.bf16.msra.mxu0 %v3084
      %3098 = vmatprep.subr.bf16.mxu0 0
      %3099 = vmatpush1.bf16.msra.mxu0 %v3083
      %3100 = vmatprep.subr.bf16.mxu0 0
      %3101 = vmatpush1.bf16.msra.mxu0 %v3082
      %3102 = vmatprep.subr.bf16.mxu0 0
      %3103 = vmatpush1.bf16.msra.mxu0 %v3081
      %3104 = vmatprep.subr.bf16.mxu0 0
      %3105 = vmatpush1.bf16.msra.mxu0 %v3080
      %3106 = vmatprep.subr.bf16.mxu0 0
      %3107 = vmatpush1.bf16.msra.mxu0 %v3079
      %3108 = vmatprep.subr.bf16.mxu0 0
      %3109 = vmatpush1.bf16.msra.mxu0 %v3078
      %3110 = vmatprep.subr.bf16.mxu0 0
      %3111 = vmatpush2.bf16.msra.mxu0 0
      %3112 = vmatprep.subr.bf16.mxu0 0
      %3113 = vmatpush2.bf16.msra.mxu0 0
      %3114 = vmatprep.subr.bf16.mxu0 0
      %3115 = vmatpush2.bf16.msra.mxu0 0
      %3116 = vmatprep.subr.bf16.mxu0 0
      %3117 = vmatpush2.bf16.msra.mxu0 0
      %3118 = vmatprep.subr.bf16.mxu0 0
      %3119 = vmatpush2.bf16.msra.mxu0 0
      %3120 = vmatprep.subr.bf16.mxu0 0
      %3121 = vmatpush2.bf16.msra.mxu0 0
      %3122 = vmatprep.subr.bf16.mxu0 0
      %3123 = vmatpush2.bf16.msra.mxu0 0
      %3124 = vmatprep.subr.bf16.mxu0 0
      %3125 = vmatpush2.bf16.msra.mxu0 0
      %3126 = vmatprep.mubr.bf16.mxu0 0
      %3127 = vmatmul.mubr.bf16.gmra.mxu0 %v3038
      %v3128 = vpop.f32.mrf.mxu0
      %v3129 = vadd.f32 0.0, %v3128
      %v3130 = vpop.f32.mrf.mxu0
      %v3131 = vpop.f32.mrf.mxu0
      %v3132 = vadd.f32 0.0, %v3131
      %v3133 = vpop.f32.mrf.mxu0
      %3134 = vmatprep.mubr.bf16.mxu0 0
      %3135 = vmatmul.mubr.bf16.gmra.mxu0 %v3039
      %v3136 = vpop.f32.mrf.mxu0
      %v3137 = vadd.f32 0.0, %v3136
      %v3138 = vpop.f32.mrf.mxu0
      %v3139 = vpop.f32.mrf.mxu0
      %v3140 = vadd.f32 0.0, %v3139
      %v3141 = vpop.f32.mrf.mxu0
      %3142 = vmatprep.mubr.bf16.mxu0 0
      %3143 = vmatmul.mubr.bf16.gmra.mxu0 %v3040
      %v3144 = vpop.f32.mrf.mxu0
      %v3145 = vadd.f32 0.0, %v3144
      %v3146 = vpop.f32.mrf.mxu0
      %v3147 = vpop.f32.mrf.mxu0
      %v3148 = vadd.f32 0.0, %v3147
      %v3149 = vpop.f32.mrf.mxu0
      %3150 = vmatprep.mubr.bf16.mxu0 0
      %3151 = vmatmul.mubr.bf16.gmra.mxu0 %v3041
      %v3152 = vpop.f32.mrf.mxu0
      %v3153 = vadd.f32 0.0, %v3152
      %v3154 = vpop.f32.mrf.mxu0
      %v3155 = vpop.f32.mrf.mxu0
      %v3156 = vadd.f32 0.0, %v3155
      %v3157 = vpop.f32.mrf.mxu0
      %3158 = vdwg.mxu0
      %v3159 = vld [vmem:[#allocation3] sm:$0xff]
      %v3160 = vld [vmem:[#allocation3 + $0x8] sm:$0xff]
      %v3161 = vld [vmem:[#allocation3 + $0x10] sm:$0xff]
      %v3162 = vld [vmem:[#allocation3 + $0x18] sm:$0xff]
      %v3163 = vld [vmem:[#allocation3 + $0x20] sm:$0xff]
      %v3164 = vld [vmem:[#allocation3 + $0x28] sm:$0xff]
      %v3165 = vld [vmem:[#allocation3 + $0x30] sm:$0xff]
      %v3166 = vld [vmem:[#allocation3 + $0x38] sm:$0xff]
      %v3167 = vadd.f32 %v3159, %v3129
      %v3168 = vadd.f32 %v3160, %v3132
      %v3169 = vadd.f32 %v3161, %v3137
      %v3170 = vadd.f32 %v3162, %v3140
      %v3171 = vadd.f32 %v3163, %v3145
      %v3172 = vadd.f32 %v3164, %v3148
      %v3173 = vadd.f32 %v3165, %v3153
      %v3174 = vadd.f32 %v3166, %v3156
      %3175 = vst [vmem:[#allocation3] sm:$0xff] %v3167
      %3176 = vst [vmem:[#allocation3 + $0x8] sm:$0xff] %v3168
      %3177 = vst [vmem:[#allocation3 + $0x10] sm:$0xff] %v3169
      %3178 = vst [vmem:[#allocation3 + $0x18] sm:$0xff] %v3170
      %3179 = vst [vmem:[#allocation3 + $0x20] sm:$0xff] %v3171
      %3180 = vst [vmem:[#allocation3 + $0x28] sm:$0xff] %v3172
      %3181 = vst [vmem:[#allocation3 + $0x30] sm:$0xff] %v3173
      %3182 = vst [vmem:[#allocation3 + $0x38] sm:$0xff] %v3174
      %s3183 = scalar_lea.vmem [#allocation2], 80
      %v3184 = vld [vmem:[%s3183] sm:$0xf]
      %v3185 = vld [vmem:[%s3183 + $0x8] sm:$0xf]
      %v3186 = vld [vmem:[%s3183 + $0x10] sm:$0xf]
      %v3187 = vld [vmem:[%s3183 + $0x18] sm:$0xf]
      %v3188 = vld [vmem:[%s3183 + $0x20] sm:$0xf]
      %v3189 = vld [vmem:[%s3183 + $0x28] sm:$0xf]
      %v3190 = vld [vmem:[%s3183 + $0x30] sm:$0xf]
      %v3191 = vld [vmem:[%s3183 + $0x38] sm:$0xf]
      %s3192 = scalar_lea.vmem %s328, 448
      %v3193 = vld [vmem:[%s3192] sm:$0xf]
      %v3194 = vld [vmem:[%s3192 + $0x4] sm:$0xf]
      %v3195 = vld [vmem:[%s3192 + $0x8] sm:$0xf]
      %v3196 = vld [vmem:[%s3192 + $0xc] sm:$0xf]
      %v3197 = vld [vmem:[%s3192 + $0x10] sm:$0xf]
      %v3198 = vld [vmem:[%s3192 + $0x14] sm:$0xf]
      %v3199 = vld [vmem:[%s3192 + $0x18] sm:$0xf]
      %v3200 = vld [vmem:[%s3192 + $0x1c] sm:$0xf]
      %v3201 = vld [vmem:[%s3192 + $0x20] sm:$0xf]
      %v3202 = vld [vmem:[%s3192 + $0x24] sm:$0xf]
      %v3203 = vld [vmem:[%s3192 + $0x28] sm:$0xf]
      %v3204 = vld [vmem:[%s3192 + $0x2c] sm:$0xf]
      %v3205 = vld [vmem:[%s3192 + $0x30] sm:$0xf]
      %v3206 = vld [vmem:[%s3192 + $0x34] sm:$0xf]
      %v3207 = vld [vmem:[%s3192 + $0x38] sm:$0xf]
      %v3208 = vld [vmem:[%s3192 + $0x3c] sm:$0xf]
      %v3217 = vunpack.c.l.b16 %v3184
      %v3218 = vunpack.c.l.b16 %v3185
      %v3219 = vunpack.c.l.b16 %v3186
      %v3220 = vunpack.c.l.b16 %v3187
      %v3221 = vunpack.c.l.b16 %v3188
      %v3222 = vunpack.c.l.b16 %v3189
      %v3223 = vunpack.c.l.b16 %v3190
      %v3224 = vunpack.c.l.b16 %v3191
      %v3225 = vpack.c.b16 %v3218, %v3217
      %v3226 = vpack.c.b16 %v3220, %v3219
      %v3227 = vpack.c.b16 %v3222, %v3221
      %v3228 = vpack.c.b16 %v3224, %v3223
      %v3249 = vunpack.c.l.b16 %v3193
      %v3250 = vunpack.c.l.b16 %v3194
      %v3251 = vunpack.c.l.b16 %v3195
      %v3252 = vunpack.c.l.b16 %v3196
      %v3253 = vunpack.c.l.b16 %v3197
      %v3254 = vunpack.c.l.b16 %v3198
      %v3255 = vunpack.c.l.b16 %v3199
      %v3256 = vunpack.c.l.b16 %v3200
      %v3257 = vunpack.c.l.b16 %v3201
      %v3258 = vunpack.c.l.b16 %v3202
      %v3259 = vunpack.c.l.b16 %v3203
      %v3260 = vunpack.c.l.b16 %v3204
      %v3261 = vunpack.c.l.b16 %v3205
      %v3262 = vunpack.c.l.b16 %v3206
      %v3263 = vunpack.c.l.b16 %v3207
      %v3264 = vunpack.c.l.b16 %v3208
      %v3265 = vpack.c.b16 %v3250, %v3249
      %v3266 = vpack.c.b16 %v3252, %v3251
      %v3267 = vpack.c.b16 %v3254, %v3253
      %v3268 = vpack.c.b16 %v3256, %v3255
      %v3269 = vpack.c.b16 %v3258, %v3257
      %v3270 = vpack.c.b16 %v3260, %v3259
      %v3271 = vpack.c.b16 %v3262, %v3261
      %v3272 = vpack.c.b16 %v3264, %v3263
      %3281 = vmatprep.subr.bf16.mxu0 0
      %3282 = vmatpush1.bf16.msra.mxu0 %v3272
      %3283 = vmatprep.subr.bf16.mxu0 0
      %3284 = vmatpush1.bf16.msra.mxu0 %v3271
      %3285 = vmatprep.subr.bf16.mxu0 0
      %3286 = vmatpush1.bf16.msra.mxu0 %v3270
      %3287 = vmatprep.subr.bf16.mxu0 0
      %3288 = vmatpush1.bf16.msra.mxu0 %v3269
      %3289 = vmatprep.subr.bf16.mxu0 0
      %3290 = vmatpush1.bf16.msra.mxu0 %v3268
      %3291 = vmatprep.subr.bf16.mxu0 0
      %3292 = vmatpush1.bf16.msra.mxu0 %v3267
      %3293 = vmatprep.subr.bf16.mxu0 0
      %3294 = vmatpush1.bf16.msra.mxu0 %v3266
      %3295 = vmatprep.subr.bf16.mxu0 0
      %3296 = vmatpush1.bf16.msra.mxu0 %v3265
      %3297 = vmatprep.subr.bf16.mxu0 0
      %3298 = vmatpush2.bf16.msra.mxu0 0
      %3299 = vmatprep.subr.bf16.mxu0 0
      %3300 = vmatpush2.bf16.msra.mxu0 0
      %3301 = vmatprep.subr.bf16.mxu0 0
      %3302 = vmatpush2.bf16.msra.mxu0 0
      %3303 = vmatprep.subr.bf16.mxu0 0
      %3304 = vmatpush2.bf16.msra.mxu0 0
      %3305 = vmatprep.subr.bf16.mxu0 0
      %3306 = vmatpush2.bf16.msra.mxu0 0
      %3307 = vmatprep.subr.bf16.mxu0 0
      %3308 = vmatpush2.bf16.msra.mxu0 0
      %3309 = vmatprep.subr.bf16.mxu0 0
      %3310 = vmatpush2.bf16.msra.mxu0 0
      %3311 = vmatprep.subr.bf16.mxu0 0
      %3312 = vmatpush2.bf16.msra.mxu0 0
      %3313 = vmatprep.mubr.bf16.mxu0 0
      %3314 = vmatmul.mubr.bf16.gmra.mxu0 %v3225
      %v3315 = vpop.f32.mrf.mxu0
      %v3316 = vadd.f32 0.0, %v3315
      %v3317 = vpop.f32.mrf.mxu0
      %v3318 = vpop.f32.mrf.mxu0
      %v3319 = vadd.f32 0.0, %v3318
      %v3320 = vpop.f32.mrf.mxu0
      %3321 = vmatprep.mubr.bf16.mxu0 0
      %3322 = vmatmul.mubr.bf16.gmra.mxu0 %v3226
      %v3323 = vpop.f32.mrf.mxu0
      %v3324 = vadd.f32 0.0, %v3323
      %v3325 = vpop.f32.mrf.mxu0
      %v3326 = vpop.f32.mrf.mxu0
      %v3327 = vadd.f32 0.0, %v3326
      %v3328 = vpop.f32.mrf.mxu0
      %3329 = vmatprep.mubr.bf16.mxu0 0
      %3330 = vmatmul.mubr.bf16.gmra.mxu0 %v3227
      %v3331 = vpop.f32.mrf.mxu0
      %v3332 = vadd.f32 0.0, %v3331
      %v3333 = vpop.f32.mrf.mxu0
      %v3334 = vpop.f32.mrf.mxu0
      %v3335 = vadd.f32 0.0, %v3334
      %v3336 = vpop.f32.mrf.mxu0
      %3337 = vmatprep.mubr.bf16.mxu0 0
      %3338 = vmatmul.mubr.bf16.gmra.mxu0 %v3228
      %v3339 = vpop.f32.mrf.mxu0
      %v3340 = vadd.f32 0.0, %v3339
      %v3341 = vpop.f32.mrf.mxu0
      %v3342 = vpop.f32.mrf.mxu0
      %v3343 = vadd.f32 0.0, %v3342
      %v3344 = vpop.f32.mrf.mxu0
      %3345 = vdwg.mxu0
      %v3346 = vld [vmem:[#allocation3] sm:$0xff]
      %v3347 = vld [vmem:[#allocation3 + $0x8] sm:$0xff]
      %v3348 = vld [vmem:[#allocation3 + $0x10] sm:$0xff]
      %v3349 = vld [vmem:[#allocation3 + $0x18] sm:$0xff]
      %v3350 = vld [vmem:[#allocation3 + $0x20] sm:$0xff]
      %v3351 = vld [vmem:[#allocation3 + $0x28] sm:$0xff]
      %v3352 = vld [vmem:[#allocation3 + $0x30] sm:$0xff]
      %v3353 = vld [vmem:[#allocation3 + $0x38] sm:$0xff]
      %v3354 = vadd.f32 %v3346, %v3316
      %v3355 = vadd.f32 %v3347, %v3319
      %v3356 = vadd.f32 %v3348, %v3324
      %v3357 = vadd.f32 %v3349, %v3327
      %v3358 = vadd.f32 %v3350, %v3332
      %v3359 = vadd.f32 %v3351, %v3335
      %v3360 = vadd.f32 %v3352, %v3340
      %v3361 = vadd.f32 %v3353, %v3343
      %3362 = vst [vmem:[#allocation3] sm:$0xff] %v3354
      %3363 = vst [vmem:[#allocation3 + $0x8] sm:$0xff] %v3355
      %3364 = vst [vmem:[#allocation3 + $0x10] sm:$0xff] %v3356
      %3365 = vst [vmem:[#allocation3 + $0x18] sm:$0xff] %v3357
      %3366 = vst [vmem:[#allocation3 + $0x20] sm:$0xff] %v3358
      %3367 = vst [vmem:[#allocation3 + $0x28] sm:$0xff] %v3359
      %3368 = vst [vmem:[#allocation3 + $0x30] sm:$0xff] %v3360
      %3369 = vst [vmem:[#allocation3 + $0x38] sm:$0xff] %v3361
      %v3370 = vld [vmem:[%s2996] sm:$0xf]
      %v3371 = vld [vmem:[%s2996 + $0x4] sm:$0x1]
      %v3372 = vld [vmem:[%s2996 + $0x8] sm:$0xf]
      %v3373 = vld [vmem:[%s2996 + $0xc] sm:$0x1]
      %v3374 = vld [vmem:[%s2996 + $0x10] sm:$0xf]
      %v3375 = vld [vmem:[%s2996 + $0x14] sm:$0x1]
      %v3376 = vld [vmem:[%s2996 + $0x18] sm:$0xf]
      %v3377 = vld [vmem:[%s2996 + $0x1c] sm:$0x1]
      %v3378 = vld [vmem:[%s2996 + $0x20] sm:$0xf]
      %v3379 = vld [vmem:[%s2996 + $0x24] sm:$0x1]
      %v3380 = vld [vmem:[%s2996 + $0x28] sm:$0xf]
      %v3381 = vld [vmem:[%s2996 + $0x2c] sm:$0x1]
      %v3382 = vld [vmem:[%s2996 + $0x30] sm:$0xf]
      %v3383 = vld [vmem:[%s2996 + $0x34] sm:$0x1]
      %v3384 = vld [vmem:[%s2996 + $0x38] sm:$0xf]
      %v3385 = vld [vmem:[%s2996 + $0x3c] sm:$0x1]
      %v3387 = vshrl.u32 %v3370, 16
      %v3389 = vrot.slane %v3387, 4
      %v3390 = vshll.u32 %v3370, 16
      %v3392 = vrot.slane %v3390, 5
      %v3393 = vor.u32 %v3389, %v3392
      %v3394 = vrot.slane %v3393, 4
      %v3396 = vshll.u32 %v3371, 16
      %v3398 = vrot.slane %v3396, 5
      %v3399 = vsel %vm2041, %v3394, %v3398
      %v3401 = vshrl.u32 %v3372, 16
      %v3403 = vrot.slane %v3401, 4
      %v3404 = vshll.u32 %v3372, 16
      %v3406 = vrot.slane %v3404, 5
      %v3407 = vor.u32 %v3403, %v3406
      %v3408 = vrot.slane %v3407, 4
      %v3410 = vshll.u32 %v3373, 16
      %v3412 = vrot.slane %v3410, 5
      %v3413 = vsel %vm2041, %v3408, %v3412
      %v3415 = vshrl.u32 %v3374, 16
      %v3417 = vrot.slane %v3415, 4
      %v3418 = vshll.u32 %v3374, 16
      %v3420 = vrot.slane %v3418, 5
      %v3421 = vor.u32 %v3417, %v3420
      %v3422 = vrot.slane %v3421, 4
      %v3424 = vshll.u32 %v3375, 16
      %v3426 = vrot.slane %v3424, 5
      %v3427 = vsel %vm2041, %v3422, %v3426
      %v3429 = vshrl.u32 %v3376, 16
      %v3431 = vrot.slane %v3429, 4
      %v3432 = vshll.u32 %v3376, 16
      %v3434 = vrot.slane %v3432, 5
      %v3435 = vor.u32 %v3431, %v3434
      %v3436 = vrot.slane %v3435, 4
      %v3438 = vshll.u32 %v3377, 16
      %v3440 = vrot.slane %v3438, 5
      %v3441 = vsel %vm2041, %v3436, %v3440
      %v3443 = vshrl.u32 %v3378, 16
      %v3445 = vrot.slane %v3443, 4
      %v3446 = vshll.u32 %v3378, 16
      %v3448 = vrot.slane %v3446, 5
      %v3449 = vor.u32 %v3445, %v3448
      %v3450 = vrot.slane %v3449, 4
      %v3452 = vshll.u32 %v3379, 16
      %v3454 = vrot.slane %v3452, 5
      %v3455 = vsel %vm2041, %v3450, %v3454
      %v3457 = vshrl.u32 %v3380, 16
      %v3459 = vrot.slane %v3457, 4
      %v3460 = vshll.u32 %v3380, 16
      %v3462 = vrot.slane %v3460, 5
      %v3463 = vor.u32 %v3459, %v3462
      %v3464 = vrot.slane %v3463, 4
      %v3466 = vshll.u32 %v3381, 16
      %v3468 = vrot.slane %v3466, 5
      %v3469 = vsel %vm2041, %v3464, %v3468
      %v3471 = vshrl.u32 %v3382, 16
      %v3473 = vrot.slane %v3471, 4
      %v3474 = vshll.u32 %v3382, 16
      %v3476 = vrot.slane %v3474, 5
      %v3477 = vor.u32 %v3473, %v3476
      %v3478 = vrot.slane %v3477, 4
      %v3480 = vshll.u32 %v3383, 16
      %v3482 = vrot.slane %v3480, 5
      %v3483 = vsel %vm2041, %v3478, %v3482
      %v3485 = vshrl.u32 %v3384, 16
      %v3487 = vrot.slane %v3485, 4
      %v3488 = vshll.u32 %v3384, 16
      %v3490 = vrot.slane %v3488, 5
      %v3491 = vor.u32 %v3487, %v3490
      %v3492 = vrot.slane %v3491, 4
      %v3494 = vshll.u32 %v3385, 16
      %v3496 = vrot.slane %v3494, 5
      %v3497 = vsel %vm2041, %v3492, %v3496
      %s3498 = scalar_lea.vmem %s328, 512
      %v3499 = vld [vmem:[%s3498] sm:$0xf]
      %v3500 = vld [vmem:[%s3498 + $0x4] sm:$0xf]
      %v3501 = vld [vmem:[%s3498 + $0x8] sm:$0xf]
      %v3502 = vld [vmem:[%s3498 + $0xc] sm:$0xf]
      %v3503 = vld [vmem:[%s3498 + $0x10] sm:$0xf]
      %v3504 = vld [vmem:[%s3498 + $0x14] sm:$0xf]
      %v3505 = vld [vmem:[%s3498 + $0x18] sm:$0xf]
      %v3506 = vld [vmem:[%s3498 + $0x1c] sm:$0xf]
      %v3507 = vld [vmem:[%s3498 + $0x20] sm:$0xf]
      %v3508 = vld [vmem:[%s3498 + $0x24] sm:$0xf]
      %v3509 = vld [vmem:[%s3498 + $0x28] sm:$0xf]
      %v3510 = vld [vmem:[%s3498 + $0x2c] sm:$0xf]
      %v3511 = vld [vmem:[%s3498 + $0x30] sm:$0xf]
      %v3512 = vld [vmem:[%s3498 + $0x34] sm:$0xf]
      %v3513 = vld [vmem:[%s3498 + $0x38] sm:$0xf]
      %v3514 = vld [vmem:[%s3498 + $0x3c] sm:$0xf]
      %v3515 = vunpack.c.l.b16 %v3399
      %v3516 = vunpack.c.l.b16 %v3413
      %v3517 = vunpack.c.l.b16 %v3427
      %v3518 = vunpack.c.l.b16 %v3441
      %v3519 = vunpack.c.l.b16 %v3455
      %v3520 = vunpack.c.l.b16 %v3469
      %v3521 = vunpack.c.l.b16 %v3483
      %v3522 = vunpack.c.l.b16 %v3497
      %v3523 = vpack.c.b16 %v3516, %v3515
      %v3524 = vpack.c.b16 %v3518, %v3517
      %v3525 = vpack.c.b16 %v3520, %v3519
      %v3526 = vpack.c.b16 %v3522, %v3521
      %v3547 = vunpack.c.l.b16 %v3499
      %v3548 = vunpack.c.l.b16 %v3500
      %v3549 = vunpack.c.l.b16 %v3501
      %v3550 = vunpack.c.l.b16 %v3502
      %v3551 = vunpack.c.l.b16 %v3503
      %v3552 = vunpack.c.l.b16 %v3504
      %v3553 = vunpack.c.l.b16 %v3505
      %v3554 = vunpack.c.l.b16 %v3506
      %v3555 = vunpack.c.l.b16 %v3507
      %v3556 = vunpack.c.l.b16 %v3508
      %v3557 = vunpack.c.l.b16 %v3509
      %v3558 = vunpack.c.l.b16 %v3510
      %v3559 = vunpack.c.l.b16 %v3511
      %v3560 = vunpack.c.l.b16 %v3512
      %v3561 = vunpack.c.l.b16 %v3513
      %v3562 = vunpack.c.l.b16 %v3514
      %v3563 = vpack.c.b16 %v3548, %v3547
      %v3564 = vpack.c.b16 %v3550, %v3549
      %v3565 = vpack.c.b16 %v3552, %v3551
      %v3566 = vpack.c.b16 %v3554, %v3553
      %v3567 = vpack.c.b16 %v3556, %v3555
      %v3568 = vpack.c.b16 %v3558, %v3557
      %v3569 = vpack.c.b16 %v3560, %v3559
      %v3570 = vpack.c.b16 %v3562, %v3561
      %3579 = vmatprep.subr.bf16.mxu0 0
      %3580 = vmatpush1.bf16.msra.mxu0 %v3570
      %3581 = vmatprep.subr.bf16.mxu0 0
      %3582 = vmatpush1.bf16.msra.mxu0 %v3569
      %3583 = vmatprep.subr.bf16.mxu0 0
      %3584 = vmatpush1.bf16.msra.mxu0 %v3568
      %3585 = vmatprep.subr.bf16.mxu0 0
      %3586 = vmatpush1.bf16.msra.mxu0 %v3567
      %3587 = vmatprep.subr.bf16.mxu0 0
      %3588 = vmatpush1.bf16.msra.mxu0 %v3566
      %3589 = vmatprep.subr.bf16.mxu0 0
      %3590 = vmatpush1.bf16.msra.mxu0 %v3565
      %3591 = vmatprep.subr.bf16.mxu0 0
      %3592 = vmatpush1.bf16.msra.mxu0 %v3564
      %3593 = vmatprep.subr.bf16.mxu0 0
      %3594 = vmatpush1.bf16.msra.mxu0 %v3563
      %3595 = vmatprep.subr.bf16.mxu0 0
      %3596 = vmatpush2.bf16.msra.mxu0 0
      %3597 = vmatprep.subr.bf16.mxu0 0
      %3598 = vmatpush2.bf16.msra.mxu0 0
      %3599 = vmatprep.subr.bf16.mxu0 0
      %3600 = vmatpush2.bf16.msra.mxu0 0
      %3601 = vmatprep.subr.bf16.mxu0 0
      %3602 = vmatpush2.bf16.msra.mxu0 0
      %3603 = vmatprep.subr.bf16.mxu0 0
      %3604 = vmatpush2.bf16.msra.mxu0 0
      %3605 = vmatprep.subr.bf16.mxu0 0
      %3606 = vmatpush2.bf16.msra.mxu0 0
      %3607 = vmatprep.subr.bf16.mxu0 0
      %3608 = vmatpush2.bf16.msra.mxu0 0
      %3609 = vmatprep.subr.bf16.mxu0 0
      %3610 = vmatpush2.bf16.msra.mxu0 0
      %3611 = vmatprep.mubr.bf16.mxu0 0
      %3612 = vmatmul.mubr.bf16.gmra.mxu0 %v3523
      %v3613 = vpop.f32.mrf.mxu0
      %v3614 = vadd.f32 0.0, %v3613
      %v3615 = vpop.f32.mrf.mxu0
      %v3616 = vpop.f32.mrf.mxu0
      %v3617 = vadd.f32 0.0, %v3616
      %v3618 = vpop.f32.mrf.mxu0
      %3619 = vmatprep.mubr.bf16.mxu0 0
      %3620 = vmatmul.mubr.bf16.gmra.mxu0 %v3524
      %v3621 = vpop.f32.mrf.mxu0
      %v3622 = vadd.f32 0.0, %v3621
      %v3623 = vpop.f32.mrf.mxu0
      %v3624 = vpop.f32.mrf.mxu0
      %v3625 = vadd.f32 0.0, %v3624
      %v3626 = vpop.f32.mrf.mxu0
      %3627 = vmatprep.mubr.bf16.mxu0 0
      %3628 = vmatmul.mubr.bf16.gmra.mxu0 %v3525
      %v3629 = vpop.f32.mrf.mxu0
      %v3630 = vadd.f32 0.0, %v3629
      %v3631 = vpop.f32.mrf.mxu0
      %v3632 = vpop.f32.mrf.mxu0
      %v3633 = vadd.f32 0.0, %v3632
      %v3634 = vpop.f32.mrf.mxu0
      %3635 = vmatprep.mubr.bf16.mxu0 0
      %3636 = vmatmul.mubr.bf16.gmra.mxu0 %v3526
      %v3637 = vpop.f32.mrf.mxu0
      %v3638 = vadd.f32 0.0, %v3637
      %v3639 = vpop.f32.mrf.mxu0
      %v3640 = vpop.f32.mrf.mxu0
      %v3641 = vadd.f32 0.0, %v3640
      %v3642 = vpop.f32.mrf.mxu0
      %3643 = vdwg.mxu0
      %v3644 = vld [vmem:[#allocation3] sm:$0xff]
      %v3645 = vld [vmem:[#allocation3 + $0x8] sm:$0xff]
      %v3646 = vld [vmem:[#allocation3 + $0x10] sm:$0xff]
      %v3647 = vld [vmem:[#allocation3 + $0x18] sm:$0xff]
      %v3648 = vld [vmem:[#allocation3 + $0x20] sm:$0xff]
      %v3649 = vld [vmem:[#allocation3 + $0x28] sm:$0xff]
      %v3650 = vld [vmem:[#allocation3 + $0x30] sm:$0xff]
      %v3651 = vld [vmem:[#allocation3 + $0x38] sm:$0xff]
      %v3652 = vadd.f32 %v3644, %v3614
      %v3653 = vadd.f32 %v3645, %v3617
      %v3654 = vadd.f32 %v3646, %v3622
      %v3655 = vadd.f32 %v3647, %v3625
      %v3656 = vadd.f32 %v3648, %v3630
      %v3657 = vadd.f32 %v3649, %v3633
      %v3658 = vadd.f32 %v3650, %v3638
      %v3659 = vadd.f32 %v3651, %v3641
      %3660 = vst [vmem:[#allocation3] sm:$0xff] %v3652
      %3661 = vst [vmem:[#allocation3 + $0x8] sm:$0xff] %v3653
      %3662 = vst [vmem:[#allocation3 + $0x10] sm:$0xff] %v3654
      %3663 = vst [vmem:[#allocation3 + $0x18] sm:$0xff] %v3655
      %3664 = vst [vmem:[#allocation3 + $0x20] sm:$0xff] %v3656
      %3665 = vst [vmem:[#allocation3 + $0x28] sm:$0xff] %v3657
      %3666 = vst [vmem:[#allocation3 + $0x30] sm:$0xff] %v3658
      %3667 = vst [vmem:[#allocation3 + $0x38] sm:$0xff] %v3659
      %v3668 = vld [vmem:[#allocation3] sm:$0xff]
      %v3669 = vld [vmem:[#allocation3 + $0x8] sm:$0xff]
      %v3670 = vld [vmem:[#allocation3 + $0x10] sm:$0xff]
      %v3671 = vld [vmem:[#allocation3 + $0x18] sm:$0xff]
      %v3672 = vld [vmem:[#allocation3 + $0x20] sm:$0xff]
      %v3673 = vld [vmem:[#allocation3 + $0x28] sm:$0xff]
      %v3674 = vld [vmem:[#allocation3 + $0x30] sm:$0xff]
      %v3675 = vld [vmem:[#allocation3 + $0x38] sm:$0xff]
      %v3676 = vpack.c.bf16 %v3669, %v3668
      %v3677 = vpack.c.bf16 %v3671, %v3670
      %v3678 = vpack.c.bf16 %v3673, %v3672
      %v3679 = vpack.c.bf16 %v3675, %v3674
      %v3684 = vunpack.c.l.b16 %v3676
      %v3685 = vunpack.c.h.b16 %v3676
      %v3686 = vunpack.c.l.b16 %v3677
      %v3687 = vunpack.c.h.b16 %v3677
      %v3688 = vunpack.c.l.b16 %v3678
      %v3689 = vunpack.c.h.b16 %v3678
      %v3690 = vunpack.c.l.b16 %v3679
      %v3691 = vunpack.c.h.b16 %v3679
      %v3692 = vpack.c.b16 %v3684, %v3684
      %v3693 = vpack.c.b16 %v3685, %v3685
      %v3694 = vpack.c.b16 %v3686, %v3686
      %v3695 = vpack.c.b16 %v3687, %v3687
      %v3696 = vpack.c.b16 %v3688, %v3688
      %v3697 = vpack.c.b16 %v3689, %v3689
      %v3698 = vpack.c.b16 %v3690, %v3690
      %v3699 = vpack.c.b16 %v3691, %v3691
      %3708 = vst [vmem:[%s336] sm:$0xf] %v3692
      %3709 = vst [vmem:[%s336 + $0x4] sm:$0xf] %v3693
      %3710 = vst [vmem:[%s336 + $0x8] sm:$0xf] %v3694
      %3711 = vst [vmem:[%s336 + $0xc] sm:$0xf] %v3695
      %3712 = vst [vmem:[%s336 + $0x10] sm:$0xf] %v3696
      %3713 = vst [vmem:[%s336 + $0x14] sm:$0xf] %v3697
      %3714 = vst [vmem:[%s336 + $0x18] sm:$0xf] %v3698
      %3715 = vst [vmem:[%s336 + $0x1c] sm:$0xf] %v3699
      %v3716 = vadd.f32 %v3668, %v3669
      %v3717 = vadd.f32 %v3716, %v3670
      %v3718 = vadd.f32 %v3717, %v3671
      %v3719 = vadd.f32 %v3718, %v3672
      %v3720 = vadd.f32 %v3719, %v3673
      %v3721 = vadd.f32 %v3720, %v3674
      %v3722 = vadd.f32 %v3721, %v3675
      %v3723 = vrot.slane %v3722, 4
      %v3724 = vadd.f32 %v3722, %v3723
      %v3725 = vrot.slane %v3724, 2
      %v3726 = vadd.f32 %v3724, %v3725
      %v3727 = vrot.slane %v3726, 1
      %v3728 = vadd.f32 %v3726, %v3727
      %3729 = vst [vmem:[%s342] sm:$0x1] %v3728
      %v3730 = vmul.f32 %v3668, %v3668
      %v3731 = vmul.f32 %v3669, %v3669
      %v3732 = vmul.f32 %v3670, %v3670
      %v3733 = vmul.f32 %v3671, %v3671
      %v3734 = vmul.f32 %v3672, %v3672
      %v3735 = vmul.f32 %v3673, %v3673
      %v3736 = vmul.f32 %v3674, %v3674
      %v3737 = vmul.f32 %v3675, %v3675
      %v3738 = vadd.f32 %v3730, %v3731
      %v3739 = vadd.f32 %v3738, %v3732
      %v3740 = vadd.f32 %v3739, %v3733
      %v3741 = vadd.f32 %v3740, %v3734
      %v3742 = vadd.f32 %v3741, %v3735
      %v3743 = vadd.f32 %v3742, %v3736
      %v3744 = vadd.f32 %v3743, %v3737
      %v3745 = vrot.slane %v3744, 4
      %v3746 = vadd.f32 %v3744, %v3745
      %v3747 = vrot.slane %v3746, 2
      %v3748 = vadd.f32 %v3746, %v3747
      %v3749 = vrot.slane %v3748, 1
      %v3750 = vadd.f32 %v3748, %v3749
      %3751 = vst [vmem:[%s348] sm:$0x1] %v3750
      %p3752 = scmp.lt.s32.totalorder %s23, 1
      %s3753 = scalar_select %p3752, %s23, 1
      %p3754 = scmp.lt.s32.totalorder %s24, 0
      %s3755 = scalar_select %p3754, %s24, 0
      %s3756 = smul.addr %s3753, 8
      %s3757 = sadd.s32 %s3755, %s3756
      %s3758 = smul.addr %s3757, 4
      %s3759 = scalar_lea.vmem %s5, %s3758
      %p3760 = scmp.lt.s32.totalorder %s23, 1
      %s3761 = scalar_select %p3760, %s23, 1
      %p3762 = scmp.lt.s32.totalorder %s24, 0
      %s3763 = scalar_select %p3762, %s24, 0
      %s3764 = sadd.s32 %s3763, %s3761
      %s3765 = scalar_lea.vmem %s6, %s3764
      %p3766 = scmp.lt.s32.totalorder %s23, 1
      %s3767 = scalar_select %p3766, %s23, 1
      %p3768 = scmp.lt.s32.totalorder %s24, 0
      %s3769 = scalar_select %p3768, %s24, 0
      %s3770 = sadd.s32 %s3769, %s3767
      %s3771 = scalar_lea.vmem %s7, %s3770
      // Predicated region
      $region45: #{block_forward.6} parent=39 // pred_check
        %p3772 = pneg %p166
      $region46: #{block_forward.6} parent=39 // pred_check_branch
        %3774 = sbr.rel (%p3772) target = $region48
      $region47: #{block_forward.6} parent=39 // pred_region
        _
      $region48: #{block_forward.6} parent=39 // pred_fallthru
        _
      // Predicated region
      $region49: #{block_forward.6} parent=39 // pred_check
        %p3775 = pneg %p194
      $region50: #{block_forward.6} parent=39 // pred_check_branch
        %3777 = sbr.rel (%p3775) target = $region52
      $region51: #{block_forward.6} parent=39 // pred_region
        _
      $region52: #{block_forward.6} parent=39 // pred_fallthru
        _
      // Predicated region
      $region53: #{block_forward.6} parent=39 // pred_check
        %p3778 = pneg %p222
      $region54: #{block_forward.6} parent=39 // pred_check_branch
        %3780 = sbr.rel (%p3778) target = $region56
      $region55: #{block_forward.6} parent=39 // pred_region
        _
      $region56: #{block_forward.6} parent=39 // pred_fallthru
        _
    $region40: #{block_forward.6} parent=5 // pred_fallthru
      _
    %p3781 = scmp.le.s32.totalorder 2, %s14
    // Predicated region
    $region57: #{block_forward.6} parent=5 // pred_check
      %p3782 = pneg %p3781
    $region58: #{block_forward.6} parent=5 // pred_check_branch
      %3784 = sbr.rel (%p3782) target = $region60
    $region59: #{block_forward.6} parent=5 // pred_region
      %s3785 = ssub.s32 %s14, 2
      // Predicated region
      $region61: #{block_forward.6} parent=59 // pred_check
        %p3786 = pneg %p172
      $region62: #{block_forward.6} parent=59 // pred_check_branch
        %3788 = sbr.rel (%p3786) target = $region64
      $region63: #{block_forward.6} parent=59 // pred_region
        %p3789 = scmp.lt.s32.totalorder %s25, 1
        %s3790 = scalar_select %p3789, %s25, 1
        %p3791 = scmp.lt.s32.totalorder %s26, 0
        %s3792 = scalar_select %p3791, %s26, 0
        %s3793 = smul.addr %s3790, 8
        %s3794 = sadd.s32 %s3792, %s3793
        %s3795 = smul.addr %s3794, 4
        %s3796 = scalar_lea.vmem %s5, %s3795
      $region64: #{block_forward.6} parent=59 // pred_fallthru
        _
      // Predicated region
      $region65: #{block_forward.6} parent=59 // pred_check
        %p3797 = pneg %p200
      $region66: #{block_forward.6} parent=59 // pred_check_branch
        %3799 = sbr.rel (%p3797) target = $region68
      $region67: #{block_forward.6} parent=59 // pred_region
        %p3800 = scmp.lt.s32.totalorder %s25, 1
        %s3801 = scalar_select %p3800, %s25, 1
        %p3802 = scmp.lt.s32.totalorder %s26, 0
        %s3803 = scalar_select %p3802, %s26, 0
        %s3804 = sadd.s32 %s3803, %s3801
        %s3805 = scalar_lea.vmem %s6, %s3804
      $region68: #{block_forward.6} parent=59 // pred_fallthru
        _
      // Predicated region
      $region69: #{block_forward.6} parent=59 // pred_check
        %p3806 = pneg %p228
      $region70: #{block_forward.6} parent=59 // pred_check_branch
        %3808 = sbr.rel (%p3806) target = $region72
      $region71: #{block_forward.6} parent=59 // pred_region
        %p3809 = scmp.lt.s32.totalorder %s25, 1
        %s3810 = scalar_select %p3809, %s25, 1
        %p3811 = scmp.lt.s32.totalorder %s26, 0
        %s3812 = scalar_select %p3811, %s26, 0
        %s3813 = sadd.s32 %s3812, %s3810
        %s3814 = scalar_lea.vmem %s7, %s3813
      $region72: #{block_forward.6} parent=59 // pred_fallthru
        _
    $region60: #{block_forward.6} parent=5 // pred_fallthru
      _
  $region6: #{block_forward.6} parent=0 // loop_footer
    %s18 = sadd.s32 1, %s14
  $region7: #{block_forward.6} parent=0 // loop_footer_branch
    %13 = sbr.rel target = $region3
  $region8: #{block_forward.6} parent=0 // loop_exit
    _

</llo_original>
